<compile_context>
chip_gen: v7x
topology: tpu7x:2x2x1
jax: 0.10.0
libtpu: 0.0.40
codegen_flags: <defaults>
</compile_context>

<pallas_src>
import functools
import math

import jax
import jax.numpy as jnp
from jax.experimental import pallas as pl
from jax.experimental.pallas import tpu as pltpu

LN_EPS = 1e-5


# ----------------------------- in-kernel helpers -----------------------------

def _recip(x):
    # EUP approximate reciprocal + one Newton-Raphson step -> ~f32 accuracy,
    # while the expensive part still runs in the (otherwise idle) EUP slot.
    r = pl.reciprocal(x, approx=True)
    return r * (2.0 - x * r)


def _erf(x):
    # Abramowitz & Stegun 7.1.26 rational approximation (max abs err ~1.5e-7):
    # keeps torch's exact (erf-based) GELU semantics.
    a1, a2, a3, a4, a5 = (0.254829592, -0.284496736, 1.421413741,
                          -1.453152027, 1.061405429)
    p = 0.3275911
    sign = jnp.where(x >= 0.0, 1.0, -1.0)
    ax = jnp.abs(x)
    t = _recip(1.0 + p * ax)
    poly = ((((a5 * t + a4) * t + a3) * t + a2) * t + a1) * t
    return sign * (1.0 - poly * jnp.exp(-ax * ax))


def _gelu_exact(x):
    # torch.nn.GELU() default = exact erf-based GELU
    return 0.5 * x * (1.0 + _erf(x * 0.7071067811865476))


def _layer_norm(x, g, b):
    mu = jnp.mean(x, axis=-1, keepdims=True)
    xc = x - mu
    var = jnp.mean(xc * xc, axis=-1, keepdims=True)
    return xc * jax.lax.rsqrt(var + LN_EPS) * g + b


# --------------------------------- kernel ------------------------------------

def encoder_unit_kernel(x_ref,
                        ln1_g, ln1_b,
                        w_qkv, b_qkv, wo, bo,
                        ln2_g, ln2_b,
                        w1, b1, w2, b2,
                        o_ref, *, heads_num, ffn_chunk):
    bt, S, E = x_ref.shape
    hd = E // heads_num
    m = bt * S

    x = x_ref[...].reshape(m, E).astype(jnp.float32)           # (M, E), M = Bt*S

    # ---------------- self-attention block (pre-norm) ----------------
    # 1/sqrt(hd) is already folded into the Q columns of w_qkv / b_qkv (host prep).
    y = _layer_norm(x, ln1_g[...], ln1_b[...])
    qkv = jnp.dot(y.astype(jnp.bfloat16), w_qkv[...],
                  preferred_element_type=jnp.float32) + b_qkv[...]       # (M, 3E) f32

    # Host-side column permutation grouped the columns per head as [q|k|v], so ONE
    # concat over per-head slices yields the head-major batch (heads*Bt, S, 3*hd).
    # TODO(synk): replace this relayout with a single pltpu.einshape once its
    # grouped-equation lowering is verified on all targets.
    qkv = qkv.reshape(bt, S, 3 * E)
    th = jnp.concatenate(
        [qkv[:, :, h * 3 * hd:(h + 1) * 3 * hd] for h in range(heads_num)], axis=0)
    q = th[:, :, :hd]
    k = th[:, :, hd:2 * hd]
    v = th[:, :, 2 * hd:]

    # TODO(synk): flash-style KV tiling (online softmax) for long S — the full
    # (heads*Bt, S, S) score tensor is still materialized here.
    s = jnp.einsum('bqd,bkd->bqk',
                   q.astype(jnp.bfloat16), k.astype(jnp.bfloat16),
                   preferred_element_type=jnp.float32)
    s = s - jnp.max(s, axis=-1, keepdims=True)
    p = jnp.exp(s)
    p = p * _recip(jnp.sum(p, axis=-1, keepdims=True))
    o = jnp.einsum('bqk,bkd->bqd',
                   p.astype(jnp.bfloat16), v.astype(jnp.bfloat16),
                   preferred_element_type=jnp.float32)                   # (heads*Bt, S, hd)

    # heads back onto the minor dim (head-major column order matches wo's row order)
    o = jnp.concatenate([o[h * bt:(h + 1) * bt] for h in range(heads_num)],
                        axis=-1).reshape(m, E)
    attn = jnp.dot(o.astype(jnp.bfloat16), wo[...],
                   preferred_element_type=jnp.float32) + bo[...]
    x1 = x + attn

    # ---------------- feed-forward block (pre-norm), hidden dim chunked ----------------
    y2 = _layer_norm(x1, ln2_g[...], ln2_b[...]).astype(jnp.bfloat16)
    H = w1.shape[1]
    ff = jnp.zeros((m, E), jnp.float32)
    for c0 in range(0, H, ffn_chunk):
        c1 = min(H, c0 + ffn_chunk)
        h1 = jnp.dot(y2, w1[:, c0:c1],
                     preferred_element_type=jnp.float32) + b1[:, c0:c1]
        g = _gelu_exact(h1)
        ff = ff + jnp.dot(g.astype(jnp.bfloat16), w2[c0:c1, :],
                          preferred_element_type=jnp.float32)
    ff = ff + b2[...]

    o_ref[...] = (x1 + ff).reshape(bt, S, E).astype(o_ref.dtype)


# ------------------------------ host-side prep --------------------------------

_PARAM_ORDER = ("ln1_g", "ln1_b", "w_qkv", "b_qkv", "wo", "bo",
                "ln2_g", "ln2_b", "w1", "b1", "w2", "b2")


def prepare_encoder_params(params, heads_num):
    """One-time host prep: fuse + head-permute QKV, fold 1/sqrt(hd) into the Q slice,
    cast weight matrices to bf16 (MXU operands); LN params / biases stay f32."""
    E = params["wq"].shape[0]
    assert E % heads_num == 0
    hd = E // heads_num
    scale = 1.0 / math.sqrt(hd)

    wq, bq = params["wq"] * scale, params["bq"] * scale
    w_blk, b_blk = [], []
    for h in range(heads_num):
        sl = slice(h * hd, (h + 1) * hd)
        w_blk += [wq[:, sl], params["wk"][:, sl], params["wv"][:, sl]]
        b_blk += [bq[:, sl], params["bk"][:, sl], params["bv"][:, sl]]

    f32, bf16 = jnp.float32, jnp.bfloat16
    # TODO(synk): pad E / 3E / H to 128/256 multiples here for awkward model dims so the
    # MXU K/N dims are filled and the output minor dim is lane-dense.
    return {
        "ln1_g": params["ln1_g"].astype(f32), "ln1_b": params["ln1_b"].astype(f32),
        "w_qkv": jnp.concatenate(w_blk, axis=1).astype(bf16),   # (E, 3E), per-head [q|k|v]
        "b_qkv": jnp.concatenate(b_blk, axis=1).astype(f32),    # (1, 3E)
        "wo": params["wo"].astype(bf16), "bo": params["bo"].astype(f32),
        "ln2_g": params["ln2_g"].astype(f32), "ln2_b": params["ln2_b"].astype(f32),
        "w1": params["w1"].astype(bf16), "b1": params["b1"].astype(f32),
        "w2": params["w2"].astype(bf16), "b2": params["b2"].astype(f32),
    }


def _pick_batch_tile(B, S, target_rows=512):
    bt = max(1, min(B, target_rows // max(S, 1)))
    if bt >= B and B >= 2:
        bt = (B + 1) // 2        # keep >=2 parallel grid steps so both v7x TCs get work
    while B % bt:                # only full blocks (no padded partial batch tiles)
        bt -= 1
    return bt


# --------------------------------- wrapper -----------------------------------

def encoder_unit(x, prep, heads_num, *, target_rows=512, ffn_chunk=512):
    B, S, E = x.shape
    assert E % heads_num == 0, "embedding_dim must be divisible by heads_num"
    H = prep["w1"].shape[1]
    param_list = [prep[k] for k in _PARAM_ORDER]
    bt = _pick_batch_tile(B, S, target_rows)
    hc = min(ffn_chunk, H)

    # VMEM budget derived from the actual footprint (not hard-coded), capped at 75% of
    # this chip's physical per-core VMEM.
    param_bytes = sum(int(p.size) * p.dtype.itemsize for p in param_list)
    m = bt * S
    act_bytes = 4 * (2 * m * 3 * E                 # qkv + head-major copy
                     + 2 * heads_num * bt * S * S  # scores + probs
                     + 6 * m * E                   # y / attn / x1 / y2 / ff / out
                     + 2 * m * hc)                 # FFN chunk intermediates
    need = 4 * bt * S * E * x.dtype.itemsize + 2 * param_bytes + act_bytes + (8 << 20)
    try:
        cap = int(getattr(pltpu.get_tpu_info(), "vmem_capacity_bytes", 64 << 20))
    except Exception:
        cap = 64 << 20                             # v7x per-TC VMEM (smallest current part)
    cap = max(cap, 64 << 20)
    vmem_limit = int(min(max(need, 32 << 20), (cap * 3) // 4))

    flops = 2 * B * S * E * (3 * E + E + 2 * H) + 4 * B * S * S * E
    transcendentals = B * heads_num * S * S + B * S * H
    bytes_accessed = 2 * B * S * E * x.dtype.itemsize + param_bytes

    kernel = functools.partial(encoder_unit_kernel, heads_num=heads_num, ffn_chunk=hc)

    def build(single_buffer_weights):
        # TODO(synk): for tiny E (<128) present a lane-dense (bt, S*E) output slab.
        x_spec = pl.BlockSpec((bt, S, E), lambda i: (i, 0, 0))
        if single_buffer_weights:
            # constant index_map + Buffered(1): one resident VMEM copy of the weights
            p_specs = [pl.BlockSpec(p.shape, lambda i: (0, 0),
                                    pipeline_mode=pl.Buffered(1)) for p in param_list]
        else:
            p_specs = [pl.BlockSpec(p.shape, lambda i: (0, 0)) for p in param_list]
        return pl.pallas_call(
            kernel,
            out_shape=jax.ShapeDtypeStruct((B, S, E), x.dtype),
            grid=(B // bt,),
            in_specs=[x_spec] + p_specs,
            out_specs=x_spec,
            compiler_params=pltpu.CompilerParams(
                dimension_semantics=("parallel",),
                vmem_limit_bytes=vmem_limit),
            cost_estimate=pl.CostEstimate(flops=flops,
                                          transcendentals=transcendentals,
                                          bytes_accessed=bytes_accessed),
        )

    try:
        return jax.block_until_ready(build(True)(x, *param_list))
    except Exception:
        # Compatibility fallback: some jax versions may reject pl.Buffered(1);
        # default (double-buffered) weight specs are still correct.
        return build(False)(x, *param_list)


# ----------------------------- reference (plain JAX) --------------------------

def encoder_unit_ref(x, p, heads_num, mxu_dtype=jnp.float32):
    """Plain-JAX reference. mxu_dtype=bfloat16 mirrors the kernel's MXU operand precision."""
    def mdot(a, b):
        return jnp.dot(a.astype(mxu_dtype), b.astype(mxu_dtype),
                       preferred_element_type=jnp.float32)

    def ln(z, g, b):
        mu = z.mean(-1, keepdims=True)
        zc = z - mu
        var = (zc * zc).mean(-1, keepdims=True)
        return zc * jax.lax.rsqrt(var + LN_EPS) * g[0] + b[0]

    B, S, E = x.shape
    hd = E // heads_num
    scale = 1.0 / math.sqrt(hd)

    y = ln(x, p["ln1_g"], p["ln1_b"])
    q = mdot(y, p["wq"] * scale) + p["bq"][0] * scale
    k = mdot(y, p["wk"]) + p["bk"][0]
    v = mdot(y, p["wv"]) + p["bv"][0]
    qh = q.reshape(B, S, heads_num, hd).transpose(0, 2, 1, 3)
    kh = k.reshape(B, S, heads_num, hd).transpose(0, 2, 1, 3)
    vh = v.reshape(B, S, heads_num, hd).transpose(0, 2, 1, 3)
    s = jnp.einsum('bhqd,bhkd->bhqk', qh.astype(mxu_dtype), kh.astype(mxu_dtype),
                   preferred_element_type=jnp.float32)
    a = jax.nn.softmax(s, axis=-1)
    o = jnp.einsum('bhqk,bhkd->bhqd', a.astype(mxu_dtype), vh.astype(mxu_dtype),
                   preferred_element_type=jnp.float32)
    o = o.transpose(0, 2, 1, 3).reshape(B, S, E)
    x1 = x + mdot(o, p["wo"]) + p["bo"][0]
    y2 = ln(x1, p["ln2_g"], p["ln2_b"])
    h1 = mdot(y2, p["w1"]) + p["b1"][0]
    g = jax.nn.gelu(h1, approximate=False)
    return x1 + mdot(g, p["w2"]) + p["b2"][0]


# ----------------------------------- main -------------------------------------

if __name__ == "__main__":
    B, S, E = 2, 8, 32
    heads_num = 4
    H = 64  # feed_forward_dim

    key = jax.random.PRNGKey(0)
    keys = jax.random.split(key, 10)

    x = jax.random.normal(keys[0], (B, S, E), dtype=jnp.float32)

    def rnd(k, shape, scale=0.05):
        return (scale * jax.random.normal(k, shape)).astype(jnp.float32)

    # torch MultiheadAttention: in_proj_weight (3E, E), out_proj (E, E)
    in_proj_w = rnd(keys[1], (3 * E, E))
    in_proj_b = rnd(keys[2], (3 * E,))
    out_proj_w = rnd(keys[3], (E, E))
    out_proj_b = rnd(keys[4], (E,))
    # FeedForward linears: (H, E) and (E, H) in torch convention
    lin1_w = rnd(keys[5], (H, E))
    lin1_b = rnd(keys[6], (H,))
    lin2_w = rnd(keys[7], (E, H))
    lin2_b = rnd(keys[8], (E,))

    params = {
        # LayerNorm default init: weight=1, bias=0
        "ln1_g": jnp.ones((1, E), jnp.float32), "ln1_b": jnp.zeros((1, E), jnp.float32),
        "ln2_g": jnp.ones((1, E), jnp.float32), "ln2_b": jnp.zeros((1, E), jnp.float32),
        # store as (in, out) so kernel does x @ W
        "wq": in_proj_w[:E].T, "wk": in_proj_w[E:2 * E].T, "wv": in_proj_w[2 * E:].T,
        "bq": in_proj_b[:E].reshape(1, E),
        "bk": in_proj_b[E:2 * E].reshape(1, E),
        "bv": in_proj_b[2 * E:].reshape(1, E),
        "wo": out_proj_w.T, "bo": out_proj_b.reshape(1, E),
        "w1": lin1_w.T, "b1": lin1_b.reshape(1, H),
        "w2": lin2_w.T, "b2": lin2_b.reshape(1, E),
    }

    prep = prepare_encoder_params(params, heads_num)   # one-time host-side prep
    out = encoder_unit(x, prep, heads_num)
    out = jax.block_until_ready(out)
    assert out.shape == (B, S, E)

    # (a) implementation check vs a reference mirroring the kernel's bf16 MXU operands
    ref_bf16 = encoder_unit_ref(x, params, heads_num, mxu_dtype=jnp.bfloat16)
    err_bf16 = float(jnp.max(jnp.abs(out - ref_bf16)))
    assert err_bf16 < 2e-3, f"mismatch vs bf16-MXU reference: {err_bf16}"

    # (b) semantic check vs the full-f32 reference (tolerance covers bf16 MXU rounding)
    ref_f32 = encoder_unit_ref(x, params, heads_num, mxu_dtype=jnp.float32)
    err_f32 = float(jnp.max(jnp.abs(out - ref_f32)))
    assert err_f32 < 1e-2, f"mismatch vs f32 reference: {err_f32}"

    print("KERNEL_OK")
</pallas_src>

<mosaic_0001>
module attributes {stable_mosaic.version = 11 : i64} {
  func.func @encoder_unit_kernel(%arg0: i32, %arg1: memref<1x8x32xf32, #tpu.memory_space<vmem>>, %arg2: memref<1x32xf32, #tpu.memory_space<vmem>>, %arg3: memref<1x32xf32, #tpu.memory_space<vmem>>, %arg4: memref<32x96xbf16, #tpu.memory_space<vmem>>, %arg5: memref<1x96xf32, #tpu.memory_space<vmem>>, %arg6: memref<32x32xbf16, #tpu.memory_space<vmem>>, %arg7: memref<1x32xf32, #tpu.memory_space<vmem>>, %arg8: memref<1x32xf32, #tpu.memory_space<vmem>>, %arg9: memref<1x32xf32, #tpu.memory_space<vmem>>, %arg10: memref<32x64xbf16, #tpu.memory_space<vmem>>, %arg11: memref<1x64xf32, #tpu.memory_space<vmem>>, %arg12: memref<64x32xbf16, #tpu.memory_space<vmem>>, %arg13: memref<1x32xf32, #tpu.memory_space<vmem>>, %arg14: memref<1x8x32xf32, #tpu.memory_space<vmem>>) attributes {dimension_semantics = [#tpu.dimension_semantics<parallel>], iteration_bounds = array<i64: 2>, scalar_prefetch = 0 : i64, scratch_operands = 0 : i64, tpu.core_type = #tpu.core_type<tc>, window_params = [{transform_indices = @transform_0, window_bounds = array<i64: 1, 8, 32>}, {pipeline_mode = #tpu.pipeline_mode<synchronous>, transform_indices = @transform_1, window_bounds = array<i64: 1, 32>}, {pipeline_mode = #tpu.pipeline_mode<synchronous>, transform_indices = @transform_2, window_bounds = array<i64: 1, 32>}, {pipeline_mode = #tpu.pipeline_mode<synchronous>, transform_indices = @transform_3, window_bounds = array<i64: 32, 96>}, {pipeline_mode = #tpu.pipeline_mode<synchronous>, transform_indices = @transform_4, window_bounds = array<i64: 1, 96>}, {pipeline_mode = #tpu.pipeline_mode<synchronous>, transform_indices = @transform_5, window_bounds = array<i64: 32, 32>}, {pipeline_mode = #tpu.pipeline_mode<synchronous>, transform_indices = @transform_6, window_bounds = array<i64: 1, 32>}, {pipeline_mode = #tpu.pipeline_mode<synchronous>, transform_indices = @transform_7, window_bounds = array<i64: 1, 32>}, {pipeline_mode = #tpu.pipeline_mode<synchronous>, transform_indices = @transform_8, window_bounds = array<i64: 1, 32>}, {pipeline_mode = #tpu.pipeline_mode<synchronous>, transform_indices = @transform_9, window_bounds = array<i64: 32, 64>}, {pipeline_mode = #tpu.pipeline_mode<synchronous>, transform_indices = @transform_10, window_bounds = array<i64: 1, 64>}, {pipeline_mode = #tpu.pipeline_mode<synchronous>, transform_indices = @transform_11, window_bounds = array<i64: 64, 32>}, {pipeline_mode = #tpu.pipeline_mode<synchronous>, transform_indices = @transform_12, window_bounds = array<i64: 1, 32>}, {transform_indices = @transform_13, window_bounds = array<i64: 1, 8, 32>}]} {
    %c0 = arith.constant 0 : index
    %c0_0 = arith.constant 0 : index
    %c0_1 = arith.constant 0 : index
    %0 = vector.load %arg1[%c0, %c0_0, %c0_1] : memref<1x8x32xf32, #tpu.memory_space<vmem>>, vector<1x8x32xf32>
    %1 = vector.shape_cast %0 : vector<1x8x32xf32> to vector<8x32xf32>
    %c0_2 = arith.constant 0 : index
    %c0_3 = arith.constant 0 : index
    %2 = vector.load %arg2[%c0_2, %c0_3] : memref<1x32xf32, #tpu.memory_space<vmem>>, vector<1x32xf32>
    %c0_4 = arith.constant 0 : index
    %c0_5 = arith.constant 0 : index
    %3 = vector.load %arg3[%c0_4, %c0_5] : memref<1x32xf32, #tpu.memory_space<vmem>>, vector<1x32xf32>
    %cst = arith.constant dense<0.000000e+00> : vector<8xf32>
    %4 = vector.multi_reduction <add>, %1, %cst [1] : vector<8x32xf32> to vector<8xf32>
    %5 = vector.shape_cast %4 : vector<8xf32> to vector<8x1xf32>
    %cst_6 = arith.constant 3.200000e+01 : f32
    %6 = vector.broadcast %cst_6 : f32 to vector<8x1xf32>
    %7 = arith.divf %5, %6 : vector<8x1xf32>
    %8 = vector.broadcast %7 : vector<8x1xf32> to vector<8x32xf32>
    %9 = arith.subf %1, %8 : vector<8x32xf32>
    %10 = arith.mulf %9, %9 : vector<8x32xf32>
    %cst_7 = arith.constant dense<0.000000e+00> : vector<8xf32>
    %11 = vector.multi_reduction <add>, %10, %cst_7 [1] : vector<8x32xf32> to vector<8xf32>
    %12 = vector.shape_cast %11 : vector<8xf32> to vector<8x1xf32>
    %cst_8 = arith.constant 3.200000e+01 : f32
    %13 = vector.broadcast %cst_8 : f32 to vector<8x1xf32>
    %14 = arith.divf %12, %13 : vector<8x1xf32>
    %cst_9 = arith.constant 9.99999974E-6 : f32
    %15 = vector.broadcast %cst_9 : f32 to vector<8x1xf32>
    %16 = arith.addf %14, %15 : vector<8x1xf32>
    %17 = math.rsqrt %16 : vector<8x1xf32>
    %18 = vector.broadcast %17 : vector<8x1xf32> to vector<8x32xf32>
    %19 = arith.mulf %9, %18 : vector<8x32xf32>
    %20 = vector.broadcast %2 : vector<1x32xf32> to vector<8x32xf32>
    %21 = arith.mulf %19, %20 : vector<8x32xf32>
    %22 = vector.broadcast %3 : vector<1x32xf32> to vector<8x32xf32>
    %23 = arith.addf %21, %22 : vector<8x32xf32>
    %24 = arith.truncf %23 : vector<8x32xf32> to vector<8x32xbf16>
    %c0_10 = arith.constant 0 : index
    %c0_11 = arith.constant 0 : index
    %25 = vector.load %arg4[%c0_10, %c0_11] : memref<32x96xbf16, #tpu.memory_space<vmem>>, vector<32x96xbf16>
    %cst_12 = arith.constant dense<0.000000e+00> : vector<8x96xf32>
    %26 = tpu.matmul %24, %25, %cst_12 {dimension_numbers = #tpu.dot_dimension_numbers<[1], [0], [0], [1], [0, 0, 1, 1], [], []>} : vector<8x32xbf16>, vector<32x96xbf16>, vector<8x96xf32> -> vector<8x96xf32>
    %c0_13 = arith.constant 0 : index
    %c0_14 = arith.constant 0 : index
    %27 = vector.load %arg5[%c0_13, %c0_14] : memref<1x96xf32, #tpu.memory_space<vmem>>, vector<1x96xf32>
    %28 = vector.broadcast %27 : vector<1x96xf32> to vector<8x96xf32>
    %29 = arith.addf %26, %28 : vector<8x96xf32>
    %30 = vector.shape_cast %29 : vector<8x96xf32> to vector<1x8x96xf32>
    %31 = vector.extract_strided_slice %30 {offsets = [0, 0, 0], sizes = [1, 8, 24], strides = [1, 1, 1]} : vector<1x8x96xf32> to vector<1x8x24xf32>
    %32 = vector.extract_strided_slice %30 {offsets = [0, 0, 24], sizes = [1, 8, 24], strides = [1, 1, 1]} : vector<1x8x96xf32> to vector<1x8x24xf32>
    %33 = vector.extract_strided_slice %30 {offsets = [0, 0, 48], sizes = [1, 8, 24], strides = [1, 1, 1]} : vector<1x8x96xf32> to vector<1x8x24xf32>
    %34 = vector.extract_strided_slice %30 {offsets = [0, 0, 72], sizes = [1, 8, 24], strides = [1, 1, 1]} : vector<1x8x96xf32> to vector<1x8x24xf32>
    %35 = tpu.concatenate %31, %32, %33, %34 in 0 : vector<1x8x24xf32>, vector<1x8x24xf32>, vector<1x8x24xf32>, vector<1x8x24xf32> -> vector<4x8x24xf32>
    %36 = vector.extract_strided_slice %35 {offsets = [0, 0, 0], sizes = [4, 8, 8], strides = [1, 1, 1]} : vector<4x8x24xf32> to vector<4x8x8xf32>
    %37 = vector.extract_strided_slice %35 {offsets = [0, 0, 8], sizes = [4, 8, 8], strides = [1, 1, 1]} : vector<4x8x24xf32> to vector<4x8x8xf32>
    %38 = vector.extract_strided_slice %35 {offsets = [0, 0, 16], sizes = [4, 8, 8], strides = [1, 1, 1]} : vector<4x8x24xf32> to vector<4x8x8xf32>
    %39 = arith.truncf %36 : vector<4x8x8xf32> to vector<4x8x8xbf16>
    %40 = arith.truncf %37 : vector<4x8x8xf32> to vector<4x8x8xbf16>
    "tpu.trace_start"() <{level = 10 : i32, message = "bqd,bkd->bqk"}> : () -> ()
    %cst_15 = arith.constant dense<0.000000e+00> : vector<4x8x8xf32>
    %41 = tpu.matmul %39, %40, %cst_15 {dimension_numbers = #tpu.dot_dimension_numbers<[2], [2], [1], [1], [0, 0, 0, 1, 1, 1], [0], [0]>} : vector<4x8x8xbf16>, vector<4x8x8xbf16>, vector<4x8x8xf32> -> vector<4x8x8xf32>
    "tpu.trace_stop"() : () -> ()
    %cst_16 = arith.constant dense<0xFF800000> : vector<4x8xf32>
    %42 = vector.multi_reduction <maximumf>, %41, %cst_16 [2] : vector<4x8x8xf32> to vector<4x8xf32>
    %43 = vector.shape_cast %42 : vector<4x8xf32> to vector<4x8x1xf32>
    %44 = vector.broadcast %43 : vector<4x8x1xf32> to vector<4x8x8xf32>
    %45 = arith.subf %41, %44 : vector<4x8x8xf32>
    %46 = math.exp %45 : vector<4x8x8xf32>
    %cst_17 = arith.constant dense<0.000000e+00> : vector<4x8xf32>
    %47 = vector.multi_reduction <add>, %46, %cst_17 [2] : vector<4x8x8xf32> to vector<4x8xf32>
    %48 = vector.shape_cast %47 : vector<4x8xf32> to vector<4x8x1xf32>
    %49 = tpu.reciprocal %48 {approx = true} : vector<4x8x1xf32> -> vector<4x8x1xf32>
    %50 = arith.mulf %48, %49 : vector<4x8x1xf32>
    %cst_18 = arith.constant 2.000000e+00 : f32
    %51 = vector.broadcast %cst_18 : f32 to vector<4x8x1xf32>
    %52 = arith.subf %51, %50 : vector<4x8x1xf32>
    %53 = arith.mulf %49, %52 : vector<4x8x1xf32>
    %54 = vector.broadcast %53 : vector<4x8x1xf32> to vector<4x8x8xf32>
    %55 = arith.mulf %46, %54 : vector<4x8x8xf32>
    %56 = arith.truncf %55 : vector<4x8x8xf32> to vector<4x8x8xbf16>
    %57 = arith.truncf %38 : vector<4x8x8xf32> to vector<4x8x8xbf16>
    "tpu.trace_start"() <{level = 10 : i32, message = "bqk,bkd->bqd"}> : () -> ()
    %cst_19 = arith.constant dense<0.000000e+00> : vector<4x8x8xf32>
    %58 = tpu.matmul %56, %57, %cst_19 {dimension_numbers = #tpu.dot_dimension_numbers<[2], [1], [1], [2], [0, 0, 0, 1, 1, 2], [0], [0]>} : vector<4x8x8xbf16>, vector<4x8x8xbf16>, vector<4x8x8xf32> -> vector<4x8x8xf32>
    "tpu.trace_stop"() : () -> ()
    %59 = vector.extract_strided_slice %58 {offsets = [0, 0, 0], sizes = [1, 8, 8], strides = [1, 1, 1]} : vector<4x8x8xf32> to vector<1x8x8xf32>
    %60 = vector.extract_strided_slice %58 {offsets = [1, 0, 0], sizes = [1, 8, 8], strides = [1, 1, 1]} : vector<4x8x8xf32> to vector<1x8x8xf32>
    %61 = vector.extract_strided_slice %58 {offsets = [2, 0, 0], sizes = [1, 8, 8], strides = [1, 1, 1]} : vector<4x8x8xf32> to vector<1x8x8xf32>
    %62 = vector.extract_strided_slice %58 {offsets = [3, 0, 0], sizes = [1, 8, 8], strides = [1, 1, 1]} : vector<4x8x8xf32> to vector<1x8x8xf32>
    %63 = tpu.concatenate %59, %60, %61, %62 in 2 : vector<1x8x8xf32>, vector<1x8x8xf32>, vector<1x8x8xf32>, vector<1x8x8xf32> -> vector<1x8x32xf32>
    %64 = vector.shape_cast %63 : vector<1x8x32xf32> to vector<8x32xf32>
    %65 = arith.truncf %64 : vector<8x32xf32> to vector<8x32xbf16>
    %c0_20 = arith.constant 0 : index
    %c0_21 = arith.constant 0 : index
    %66 = vector.load %arg6[%c0_20, %c0_21] : memref<32x32xbf16, #tpu.memory_space<vmem>>, vector<32x32xbf16>
    %cst_22 = arith.constant dense<0.000000e+00> : vector<8x32xf32>
    %67 = tpu.matmul %65, %66, %cst_22 {dimension_numbers = #tpu.dot_dimension_numbers<[1], [0], [0], [1], [0, 0, 1, 1], [], []>} : vector<8x32xbf16>, vector<32x32xbf16>, vector<8x32xf32> -> vector<8x32xf32>
    %c0_23 = arith.constant 0 : index
    %c0_24 = arith.constant 0 : index
    %68 = vector.load %arg7[%c0_23, %c0_24] : memref<1x32xf32, #tpu.memory_space<vmem>>, vector<1x32xf32>
    %69 = vector.broadcast %68 : vector<1x32xf32> to vector<8x32xf32>
    %70 = arith.addf %67, %69 : vector<8x32xf32>
    %71 = arith.addf %1, %70 : vector<8x32xf32>
    %c0_25 = arith.constant 0 : index
    %c0_26 = arith.constant 0 : index
    %72 = vector.load %arg8[%c0_25, %c0_26] : memref<1x32xf32, #tpu.memory_space<vmem>>, vector<1x32xf32>
    %c0_27 = arith.constant 0 : index
    %c0_28 = arith.constant 0 : index
    %73 = vector.load %arg9[%c0_27, %c0_28] : memref<1x32xf32, #tpu.memory_space<vmem>>, vector<1x32xf32>
    %cst_29 = arith.constant dense<0.000000e+00> : vector<8xf32>
    %74 = vector.multi_reduction <add>, %71, %cst_29 [1] : vector<8x32xf32> to vector<8xf32>
    %75 = vector.shape_cast %74 : vector<8xf32> to vector<8x1xf32>
    %cst_30 = arith.constant 3.200000e+01 : f32
    %76 = vector.broadcast %cst_30 : f32 to vector<8x1xf32>
    %77 = arith.divf %75, %76 : vector<8x1xf32>
    %78 = vector.broadcast %77 : vector<8x1xf32> to vector<8x32xf32>
    %79 = arith.subf %71, %78 : vector<8x32xf32>
    %80 = arith.mulf %79, %79 : vector<8x32xf32>
    %cst_31 = arith.constant dense<0.000000e+00> : vector<8xf32>
    %81 = vector.multi_reduction <add>, %80, %cst_31 [1] : vector<8x32xf32> to vector<8xf32>
    %82 = vector.shape_cast %81 : vector<8xf32> to vector<8x1xf32>
    %cst_32 = arith.constant 3.200000e+01 : f32
    %83 = vector.broadcast %cst_32 : f32 to vector<8x1xf32>
    %84 = arith.divf %82, %83 : vector<8x1xf32>
    %cst_33 = arith.constant 9.99999974E-6 : f32
    %85 = vector.broadcast %cst_33 : f32 to vector<8x1xf32>
    %86 = arith.addf %84, %85 : vector<8x1xf32>
    %87 = math.rsqrt %86 : vector<8x1xf32>
    %88 = vector.broadcast %87 : vector<8x1xf32> to vector<8x32xf32>
    %89 = arith.mulf %79, %88 : vector<8x32xf32>
    %90 = vector.broadcast %72 : vector<1x32xf32> to vector<8x32xf32>
    %91 = arith.mulf %89, %90 : vector<8x32xf32>
    %92 = vector.broadcast %73 : vector<1x32xf32> to vector<8x32xf32>
    %93 = arith.addf %91, %92 : vector<8x32xf32>
    %94 = arith.truncf %93 : vector<8x32xf32> to vector<8x32xbf16>
    %cst_34 = arith.constant 0.000000e+00 : f32
    %95 = vector.broadcast %cst_34 : f32 to vector<8x32xf32>
    %c0_35 = arith.constant 0 : index
    %c0_36 = arith.constant 0 : index
    %96 = vector.load %arg10[%c0_35, %c0_36] : memref<32x64xbf16, #tpu.memory_space<vmem>>, vector<32x64xbf16>
    %cst_37 = arith.constant dense<0.000000e+00> : vector<8x64xf32>
    %97 = tpu.matmul %94, %96, %cst_37 {dimension_numbers = #tpu.dot_dimension_numbers<[1], [0], [0], [1], [0, 0, 1, 1], [], []>} : vector<8x32xbf16>, vector<32x64xbf16>, vector<8x64xf32> -> vector<8x64xf32>
    %c0_38 = arith.constant 0 : index
    %c0_39 = arith.constant 0 : index
    %98 = vector.load %arg11[%c0_38, %c0_39] : memref<1x64xf32, #tpu.memory_space<vmem>>, vector<1x64xf32>
    %99 = vector.broadcast %98 : vector<1x64xf32> to vector<8x64xf32>
    %100 = arith.addf %97, %99 : vector<8x64xf32>
    %cst_40 = arith.constant 5.000000e-01 : f32
    %101 = vector.broadcast %cst_40 : f32 to vector<8x64xf32>
    %102 = arith.mulf %101, %100 : vector<8x64xf32>
    %cst_41 = arith.constant 0.707106769 : f32
    %103 = vector.broadcast %cst_41 : f32 to vector<8x64xf32>
    %104 = arith.mulf %100, %103 : vector<8x64xf32>
    %cst_42 = arith.constant 0.000000e+00 : f32
    %105 = vector.broadcast %cst_42 : f32 to vector<8x64xf32>
    %106 = arith.cmpf oge, %104, %105 : vector<8x64xf32>
    %cst_43 = arith.constant 1.000000e+00 : f32
    %cst_44 = arith.constant -1.000000e+00 : f32
    %107 = vector.broadcast %cst_43 : f32 to vector<8x64xf32>
    %108 = vector.broadcast %cst_44 : f32 to vector<8x64xf32>
    %109 = arith.select %106, %107, %108 : vector<8x64xi1>, vector<8x64xf32>
    %110 = math.absf %104 : vector<8x64xf32>
    %cst_45 = arith.constant 0.327591091 : f32
    %111 = vector.broadcast %cst_45 : f32 to vector<8x64xf32>
    %112 = arith.mulf %111, %110 : vector<8x64xf32>
    %cst_46 = arith.constant 1.000000e+00 : f32
    %113 = vector.broadcast %cst_46 : f32 to vector<8x64xf32>
    %114 = arith.addf %113, %112 : vector<8x64xf32>
    %115 = tpu.reciprocal %114 {approx = true} : vector<8x64xf32> -> vector<8x64xf32>
    %116 = arith.mulf %114, %115 : vector<8x64xf32>
    %cst_47 = arith.constant 2.000000e+00 : f32
    %117 = vector.broadcast %cst_47 : f32 to vector<8x64xf32>
    %118 = arith.subf %117, %116 : vector<8x64xf32>
    %119 = arith.mulf %115, %118 : vector<8x64xf32>
    %cst_48 = arith.constant 1.06140542 : f32
    %120 = vector.broadcast %cst_48 : f32 to vector<8x64xf32>
    %121 = arith.mulf %120, %119 : vector<8x64xf32>
    %cst_49 = arith.constant -1.45315206 : f32
    %122 = vector.broadcast %cst_49 : f32 to vector<8x64xf32>
    %123 = arith.addf %121, %122 : vector<8x64xf32>
    %124 = arith.mulf %123, %119 : vector<8x64xf32>
    %cst_50 = arith.constant 1.42141378 : f32
    %125 = vector.broadcast %cst_50 : f32 to vector<8x64xf32>
    %126 = arith.addf %124, %125 : vector<8x64xf32>
    %127 = arith.mulf %126, %119 : vector<8x64xf32>
    %cst_51 = arith.constant -0.284496725 : f32
    %128 = vector.broadcast %cst_51 : f32 to vector<8x64xf32>
    %129 = arith.addf %127, %128 : vector<8x64xf32>
    %130 = arith.mulf %129, %119 : vector<8x64xf32>
    %cst_52 = arith.constant 0.254829586 : f32
    %131 = vector.broadcast %cst_52 : f32 to vector<8x64xf32>
    %132 = arith.addf %130, %131 : vector<8x64xf32>
    %133 = arith.mulf %132, %119 : vector<8x64xf32>
    %cst_53 = arith.constant 0.000000e+00 : f32
    %134 = vector.broadcast %cst_53 : f32 to vector<8x64xf32>
    %135 = arith.subf %134, %110 : vector<8x64xf32>
    %136 = arith.mulf %135, %110 : vector<8x64xf32>
    %137 = math.exp %136 : vector<8x64xf32>
    %138 = arith.mulf %133, %137 : vector<8x64xf32>
    %cst_54 = arith.constant 1.000000e+00 : f32
    %139 = vector.broadcast %cst_54 : f32 to vector<8x64xf32>
    %140 = arith.subf %139, %138 : vector<8x64xf32>
    %141 = arith.mulf %109, %140 : vector<8x64xf32>
    %cst_55 = arith.constant 1.000000e+00 : f32
    %142 = vector.broadcast %cst_55 : f32 to vector<8x64xf32>
    %143 = arith.addf %142, %141 : vector<8x64xf32>
    %144 = arith.mulf %102, %143 : vector<8x64xf32>
    %145 = arith.truncf %144 : vector<8x64xf32> to vector<8x64xbf16>
    %c0_56 = arith.constant 0 : index
    %c0_57 = arith.constant 0 : index
    %146 = vector.load %arg12[%c0_56, %c0_57] : memref<64x32xbf16, #tpu.memory_space<vmem>>, vector<64x32xbf16>
    %cst_58 = arith.constant dense<0.000000e+00> : vector<8x32xf32>
    %147 = tpu.matmul %145, %146, %cst_58 {dimension_numbers = #tpu.dot_dimension_numbers<[1], [0], [0], [1], [0, 0, 1, 1], [], []>} : vector<8x64xbf16>, vector<64x32xbf16>, vector<8x32xf32> -> vector<8x32xf32>
    %148 = arith.addf %95, %147 : vector<8x32xf32>
    %c0_59 = arith.constant 0 : index
    %c0_60 = arith.constant 0 : index
    %149 = vector.load %arg13[%c0_59, %c0_60] : memref<1x32xf32, #tpu.memory_space<vmem>>, vector<1x32xf32>
    %150 = vector.broadcast %149 : vector<1x32xf32> to vector<8x32xf32>
    %151 = arith.addf %148, %150 : vector<8x32xf32>
    %152 = arith.addf %71, %151 : vector<8x32xf32>
    %153 = vector.shape_cast %152 : vector<8x32xf32> to vector<1x8x32xf32>
    %c0_61 = arith.constant 0 : index
    %c0_62 = arith.constant 0 : index
    %c0_63 = arith.constant 0 : index
    %154 = vector.load %arg14[%c0_61, %c0_62, %c0_63] : memref<1x8x32xf32, #tpu.memory_space<vmem>>, vector<1x8x32xf32>
    tpu.vector_store %arg14[%c0_61, %c0_62, %c0_63], %153 {strides = array<i32>} : memref<1x8x32xf32, #tpu.memory_space<vmem>>, vector<1x8x32xf32>,
    return
  }
  func.func @transform_0(%arg0: i32) -> (i32, i32, i32) {
    %c0_i32 = arith.constant 0 : i32
    %c0_i32_0 = arith.constant 0 : i32
    %c0_i32_1 = arith.constant 0 : i32
    return %arg0, %c0_i32, %c0_i32_0 : i32, i32, i32
  }
  func.func @transform_1(%arg0: i32) -> (i32, i32) {
    %c0_i32 = arith.constant 0 : i32
    %c0_i32_0 = arith.constant 0 : i32
    %c0_i32_1 = arith.constant 0 : i32
    return %c0_i32, %c0_i32_0 : i32, i32
  }
  func.func @transform_2(%arg0: i32) -> (i32, i32) {
    %c0_i32 = arith.constant 0 : i32
    %c0_i32_0 = arith.constant 0 : i32
    %c0_i32_1 = arith.constant 0 : i32
    return %c0_i32, %c0_i32_0 : i32, i32
  }
  func.func @transform_3(%arg0: i32) -> (i32, i32) {
    %c0_i32 = arith.constant 0 : i32
    %c0_i32_0 = arith.constant 0 : i32
    %c0_i32_1 = arith.constant 0 : i32
    return %c0_i32, %c0_i32_0 : i32, i32
  }
  func.func @transform_4(%arg0: i32) -> (i32, i32) {
    %c0_i32 = arith.constant 0 : i32
    %c0_i32_0 = arith.constant 0 : i32
    %c0_i32_1 = arith.constant 0 : i32
    return %c0_i32, %c0_i32_0 : i32, i32
  }
  func.func @transform_5(%arg0: i32) -> (i32, i32) {
    %c0_i32 = arith.constant 0 : i32
    %c0_i32_0 = arith.constant 0 : i32
    %c0_i32_1 = arith.constant 0 : i32
    return %c0_i32, %c0_i32_0 : i32, i32
  }
  func.func @transform_6(%arg0: i32) -> (i32, i32) {
    %c0_i32 = arith.constant 0 : i32
    %c0_i32_0 = arith.constant 0 : i32
    %c0_i32_1 = arith.constant 0 : i32
    return %c0_i32, %c0_i32_0 : i32, i32
  }
  func.func @transform_7(%arg0: i32) -> (i32, i32) {
    %c0_i32 = arith.constant 0 : i32
    %c0_i32_0 = arith.constant 0 : i32
    %c0_i32_1 = arith.constant 0 : i32
    return %c0_i32, %c0_i32_0 : i32, i32
  }
  func.func @transform_8(%arg0: i32) -> (i32, i32) {
    %c0_i32 = arith.constant 0 : i32
    %c0_i32_0 = arith.constant 0 : i32
    %c0_i32_1 = arith.constant 0 : i32
    return %c0_i32, %c0_i32_0 : i32, i32
  }
  func.func @transform_9(%arg0: i32) -> (i32, i32) {
    %c0_i32 = arith.constant 0 : i32
    %c0_i32_0 = arith.constant 0 : i32
    %c0_i32_1 = arith.constant 0 : i32
    return %c0_i32, %c0_i32_0 : i32, i32
  }
  func.func @transform_10(%arg0: i32) -> (i32, i32) {
    %c0_i32 = arith.constant 0 : i32
    %c0_i32_0 = arith.constant 0 : i32
    %c0_i32_1 = arith.constant 0 : i32
    return %c0_i32, %c0_i32_0 : i32, i32
  }
  func.func @transform_11(%arg0: i32) -> (i32, i32) {
    %c0_i32 = arith.constant 0 : i32
    %c0_i32_0 = arith.constant 0 : i32
    %c0_i32_1 = arith.constant 0 : i32
    return %c0_i32, %c0_i32_0 : i32, i32
  }
  func.func @transform_12(%arg0: i32) -> (i32, i32) {
    %c0_i32 = arith.constant 0 : i32
    %c0_i32_0 = arith.constant 0 : i32
    %c0_i32_1 = arith.constant 0 : i32
    return %c0_i32, %c0_i32_0 : i32, i32
  }
  func.func @transform_13(%arg0: i32) -> (i32, i32, i32) {
    %c0_i32 = arith.constant 0 : i32
    %c0_i32_0 = arith.constant 0 : i32
    %c0_i32_1 = arith.constant 0 : i32
    return %arg0, %c0_i32, %c0_i32_0 : i32, i32, i32
  }
}

module attributes {stable_mosaic.version = 11 : i64} {
  func.func @encoder_unit_kernel(%arg0: i32, %arg1: memref<1x8x32xf32, #tpu.memory_space<vmem>>, %arg2: memref<1x32xf32, #tpu.memory_space<vmem>>, %arg3: memref<1x32xf32, #tpu.memory_space<vmem>>, %arg4: memref<32x96xbf16, #tpu.memory_space<vmem>>, %arg5: memref<1x96xf32, #tpu.memory_space<vmem>>, %arg6: memref<32x32xbf16, #tpu.memory_space<vmem>>, %arg7: memref<1x32xf32, #tpu.memory_space<vmem>>, %arg8: memref<1x32xf32, #tpu.memory_space<vmem>>, %arg9: memref<1x32xf32, #tpu.memory_space<vmem>>, %arg10: memref<32x64xbf16, #tpu.memory_space<vmem>>, %arg11: memref<1x64xf32, #tpu.memory_space<vmem>>, %arg12: memref<64x32xbf16, #tpu.memory_space<vmem>>, %arg13: memref<1x32xf32, #tpu.memory_space<vmem>>, %arg14: memref<1x8x32xf32, #tpu.memory_space<vmem>>) attributes {dimension_semantics = [#tpu.dimension_semantics<parallel>], iteration_bounds = array<i64: 2>, scalar_prefetch = 0 : i64, scratch_operands = 0 : i64, tpu.core_type = #tpu.core_type<tc>, window_params = [{transform_indices = @transform_0, window_bounds = array<i64: 1, 8, 32>}, {pipeline_mode = #tpu.pipeline_mode<synchronous>, transform_indices = @transform_1, window_bounds = array<i64: 1, 32>}, {pipeline_mode = #tpu.pipeline_mode<synchronous>, transform_indices = @transform_2, window_bounds = array<i64: 1, 32>}, {pipeline_mode = #tpu.pipeline_mode<synchronous>, transform_indices = @transform_3, window_bounds = array<i64: 32, 96>}, {pipeline_mode = #tpu.pipeline_mode<synchronous>, transform_indices = @transform_4, window_bounds = array<i64: 1, 96>}, {pipeline_mode = #tpu.pipeline_mode<synchronous>, transform_indices = @transform_5, window_bounds = array<i64: 32, 32>}, {pipeline_mode = #tpu.pipeline_mode<synchronous>, transform_indices = @transform_6, window_bounds = array<i64: 1, 32>}, {pipeline_mode = #tpu.pipeline_mode<synchronous>, transform_indices = @transform_7, window_bounds = array<i64: 1, 32>}, {pipeline_mode = #tpu.pipeline_mode<synchronous>, transform_indices = @transform_8, window_bounds = array<i64: 1, 32>}, {pipeline_mode = #tpu.pipeline_mode<synchronous>, transform_indices = @transform_9, window_bounds = array<i64: 32, 64>}, {pipeline_mode = #tpu.pipeline_mode<synchronous>, transform_indices = @transform_10, window_bounds = array<i64: 1, 64>}, {pipeline_mode = #tpu.pipeline_mode<synchronous>, transform_indices = @transform_11, window_bounds = array<i64: 64, 32>}, {pipeline_mode = #tpu.pipeline_mode<synchronous>, transform_indices = @transform_12, window_bounds = array<i64: 1, 32>}, {transform_indices = @transform_13, window_bounds = array<i64: 1, 8, 32>}]} {
    %c0 = arith.constant 0 : index
    %c0_0 = arith.constant 0 : index
    %c0_1 = arith.constant 0 : index
    %0 = vector.load %arg1[%c0, %c0_0, %c0_1] : memref<1x8x32xf32, #tpu.memory_space<vmem>>, vector<1x8x32xf32>
    %1 = vector.shape_cast %0 : vector<1x8x32xf32> to vector<8x32xf32>
    %c0_2 = arith.constant 0 : index
    %c0_3 = arith.constant 0 : index
    %2 = vector.load %arg2[%c0_2, %c0_3] : memref<1x32xf32, #tpu.memory_space<vmem>>, vector<1x32xf32>
    %c0_4 = arith.constant 0 : index
    %c0_5 = arith.constant 0 : index
    %3 = vector.load %arg3[%c0_4, %c0_5] : memref<1x32xf32, #tpu.memory_space<vmem>>, vector<1x32xf32>
    %cst = arith.constant dense<0.000000e+00> : vector<8xf32>
    %4 = vector.multi_reduction <add>, %1, %cst [1] : vector<8x32xf32> to vector<8xf32>
    %5 = vector.shape_cast %4 : vector<8xf32> to vector<8x1xf32>
    %cst_6 = arith.constant 3.200000e+01 : f32
    %6 = vector.broadcast %cst_6 : f32 to vector<8x1xf32>
    %7 = arith.divf %5, %6 : vector<8x1xf32>
    %8 = vector.broadcast %7 : vector<8x1xf32> to vector<8x32xf32>
    %9 = arith.subf %1, %8 : vector<8x32xf32>
    %10 = arith.mulf %9, %9 : vector<8x32xf32>
    %cst_7 = arith.constant dense<0.000000e+00> : vector<8xf32>
    %11 = vector.multi_reduction <add>, %10, %cst_7 [1] : vector<8x32xf32> to vector<8xf32>
    %12 = vector.shape_cast %11 : vector<8xf32> to vector<8x1xf32>
    %cst_8 = arith.constant 3.200000e+01 : f32
    %13 = vector.broadcast %cst_8 : f32 to vector<8x1xf32>
    %14 = arith.divf %12, %13 : vector<8x1xf32>
    %cst_9 = arith.constant 9.99999974E-6 : f32
    %15 = vector.broadcast %cst_9 : f32 to vector<8x1xf32>
    %16 = arith.addf %14, %15 : vector<8x1xf32>
    %17 = math.rsqrt %16 : vector<8x1xf32>
    %18 = vector.broadcast %17 : vector<8x1xf32> to vector<8x32xf32>
    %19 = arith.mulf %9, %18 : vector<8x32xf32>
    %20 = vector.broadcast %2 : vector<1x32xf32> to vector<8x32xf32>
    %21 = arith.mulf %19, %20 : vector<8x32xf32>
    %22 = vector.broadcast %3 : vector<1x32xf32> to vector<8x32xf32>
    %23 = arith.addf %21, %22 : vector<8x32xf32>
    %24 = arith.truncf %23 : vector<8x32xf32> to vector<8x32xbf16>
    %c0_10 = arith.constant 0 : index
    %c0_11 = arith.constant 0 : index
    %25 = vector.load %arg4[%c0_10, %c0_11] : memref<32x96xbf16, #tpu.memory_space<vmem>>, vector<32x96xbf16>
    %cst_12 = arith.constant dense<0.000000e+00> : vector<8x96xf32>
    %26 = tpu.matmul %24, %25, %cst_12 {dimension_numbers = #tpu.dot_dimension_numbers<[1], [0], [0], [1], [0, 0, 1, 1], [], []>} : vector<8x32xbf16>, vector<32x96xbf16>, vector<8x96xf32> -> vector<8x96xf32>
    %c0_13 = arith.constant 0 : index
    %c0_14 = arith.constant 0 : index
    %27 = vector.load %arg5[%c0_13, %c0_14] : memref<1x96xf32, #tpu.memory_space<vmem>>, vector<1x96xf32>
    %28 = vector.broadcast %27 : vector<1x96xf32> to vector<8x96xf32>
    %29 = arith.addf %26, %28 : vector<8x96xf32>
    %30 = vector.shape_cast %29 : vector<8x96xf32> to vector<1x8x96xf32>
    %31 = vector.extract_strided_slice %30 {offsets = [0, 0, 0], sizes = [1, 8, 24], strides = [1, 1, 1]} : vector<1x8x96xf32> to vector<1x8x24xf32>
    %32 = vector.extract_strided_slice %30 {offsets = [0, 0, 24], sizes = [1, 8, 24], strides = [1, 1, 1]} : vector<1x8x96xf32> to vector<1x8x24xf32>
    %33 = vector.extract_strided_slice %30 {offsets = [0, 0, 48], sizes = [1, 8, 24], strides = [1, 1, 1]} : vector<1x8x96xf32> to vector<1x8x24xf32>
    %34 = vector.extract_strided_slice %30 {offsets = [0, 0, 72], sizes = [1, 8, 24], strides = [1, 1, 1]} : vector<1x8x96xf32> to vector<1x8x24xf32>
    %35 = tpu.concatenate %31, %32, %33, %34 in 0 : vector<1x8x24xf32>, vector<1x8x24xf32>, vector<1x8x24xf32>, vector<1x8x24xf32> -> vector<4x8x24xf32>
    %36 = vector.extract_strided_slice %35 {offsets = [0, 0, 0], sizes = [4, 8, 8], strides = [1, 1, 1]} : vector<4x8x24xf32> to vector<4x8x8xf32>
    %37 = vector.extract_strided_slice %35 {offsets = [0, 0, 8], sizes = [4, 8, 8], strides = [1, 1, 1]} : vector<4x8x24xf32> to vector<4x8x8xf32>
    %38 = vector.extract_strided_slice %35 {offsets = [0, 0, 16], sizes = [4, 8, 8], strides = [1, 1, 1]} : vector<4x8x24xf32> to vector<4x8x8xf32>
    %39 = arith.truncf %36 : vector<4x8x8xf32> to vector<4x8x8xbf16>
    %40 = arith.truncf %37 : vector<4x8x8xf32> to vector<4x8x8xbf16>
    "tpu.trace_start"() <{level = 10 : i32, message = "bqd,bkd->bqk"}> : () -> ()
    %cst_15 = arith.constant dense<0.000000e+00> : vector<4x8x8xf32>
    %41 = tpu.matmul %39, %40, %cst_15 {dimension_numbers = #tpu.dot_dimension_numbers<[2], [2], [1], [1], [0, 0, 0, 1, 1, 1], [0], [0]>} : vector<4x8x8xbf16>, vector<4x8x8xbf16>, vector<4x8x8xf32> -> vector<4x8x8xf32>
    "tpu.trace_stop"() : () -> ()
    %cst_16 = arith.constant dense<0xFF800000> : vector<4x8xf32>
    %42 = vector.multi_reduction <maximumf>, %41, %cst_16 [2] : vector<4x8x8xf32> to vector<4x8xf32>
    %43 = vector.shape_cast %42 : vector<4x8xf32> to vector<4x8x1xf32>
    %44 = vector.broadcast %43 : vector<4x8x1xf32> to vector<4x8x8xf32>
    %45 = arith.subf %41, %44 : vector<4x8x8xf32>
    %46 = math.exp %45 : vector<4x8x8xf32>
    %cst_17 = arith.constant dense<0.000000e+00> : vector<4x8xf32>
    %47 = vector.multi_reduction <add>, %46, %cst_17 [2] : vector<4x8x8xf32> to vector<4x8xf32>
    %48 = vector.shape_cast %47 : vector<4x8xf32> to vector<4x8x1xf32>
    %49 = tpu.reciprocal %48 {approx = true} : vector<4x8x1xf32> -> vector<4x8x1xf32>
    %50 = arith.mulf %48, %49 : vector<4x8x1xf32>
    %cst_18 = arith.constant 2.000000e+00 : f32
    %51 = vector.broadcast %cst_18 : f32 to vector<4x8x1xf32>
    %52 = arith.subf %51, %50 : vector<4x8x1xf32>
    %53 = arith.mulf %49, %52 : vector<4x8x1xf32>
    %54 = vector.broadcast %53 : vector<4x8x1xf32> to vector<4x8x8xf32>
    %55 = arith.mulf %46, %54 : vector<4x8x8xf32>
    %56 = arith.truncf %55 : vector<4x8x8xf32> to vector<4x8x8xbf16>
    %57 = arith.truncf %38 : vector<4x8x8xf32> to vector<4x8x8xbf16>
    "tpu.trace_start"() <{level = 10 : i32, message = "bqk,bkd->bqd"}> : () -> ()
    %cst_19 = arith.constant dense<0.000000e+00> : vector<4x8x8xf32>
    %58 = tpu.matmul %56, %57, %cst_19 {dimension_numbers = #tpu.dot_dimension_numbers<[2], [1], [1], [2], [0, 0, 0, 1, 1, 2], [0], [0]>} : vector<4x8x8xbf16>, vector<4x8x8xbf16>, vector<4x8x8xf32> -> vector<4x8x8xf32>
    "tpu.trace_stop"() : () -> ()
    %59 = vector.extract_strided_slice %58 {offsets = [0, 0, 0], sizes = [1, 8, 8], strides = [1, 1, 1]} : vector<4x8x8xf32> to vector<1x8x8xf32>
    %60 = vector.extract_strided_slice %58 {offsets = [1, 0, 0], sizes = [1, 8, 8], strides = [1, 1, 1]} : vector<4x8x8xf32> to vector<1x8x8xf32>
    %61 = vector.extract_strided_slice %58 {offsets = [2, 0, 0], sizes = [1, 8, 8], strides = [1, 1, 1]} : vector<4x8x8xf32> to vector<1x8x8xf32>
    %62 = vector.extract_strided_slice %58 {offsets = [3, 0, 0], sizes = [1, 8, 8], strides = [1, 1, 1]} : vector<4x8x8xf32> to vector<1x8x8xf32>
    %63 = tpu.concatenate %59, %60, %61, %62 in 2 : vector<1x8x8xf32>, vector<1x8x8xf32>, vector<1x8x8xf32>, vector<1x8x8xf32> -> vector<1x8x32xf32>
    %64 = vector.shape_cast %63 : vector<1x8x32xf32> to vector<8x32xf32>
    %65 = arith.truncf %64 : vector<8x32xf32> to vector<8x32xbf16>
    %c0_20 = arith.constant 0 : index
    %c0_21 = arith.constant 0 : index
    %66 = vector.load %arg6[%c0_20, %c0_21] : memref<32x32xbf16, #tpu.memory_space<vmem>>, vector<32x32xbf16>
    %cst_22 = arith.constant dense<0.000000e+00> : vector<8x32xf32>
    %67 = tpu.matmul %65, %66, %cst_22 {dimension_numbers = #tpu.dot_dimension_numbers<[1], [0], [0], [1], [0, 0, 1, 1], [], []>} : vector<8x32xbf16>, vector<32x32xbf16>, vector<8x32xf32> -> vector<8x32xf32>
    %c0_23 = arith.constant 0 : index
    %c0_24 = arith.constant 0 : index
    %68 = vector.load %arg7[%c0_23, %c0_24] : memref<1x32xf32, #tpu.memory_space<vmem>>, vector<1x32xf32>
    %69 = vector.broadcast %68 : vector<1x32xf32> to vector<8x32xf32>
    %70 = arith.addf %67, %69 : vector<8x32xf32>
    %71 = arith.addf %1, %70 : vector<8x32xf32>
    %c0_25 = arith.constant 0 : index
    %c0_26 = arith.constant 0 : index
    %72 = vector.load %arg8[%c0_25, %c0_26] : memref<1x32xf32, #tpu.memory_space<vmem>>, vector<1x32xf32>
    %c0_27 = arith.constant 0 : index
    %c0_28 = arith.constant 0 : index
    %73 = vector.load %arg9[%c0_27, %c0_28] : memref<1x32xf32, #tpu.memory_space<vmem>>, vector<1x32xf32>
    %cst_29 = arith.constant dense<0.000000e+00> : vector<8xf32>
    %74 = vector.multi_reduction <add>, %71, %cst_29 [1] : vector<8x32xf32> to vector<8xf32>
    %75 = vector.shape_cast %74 : vector<8xf32> to vector<8x1xf32>
    %cst_30 = arith.constant 3.200000e+01 : f32
    %76 = vector.broadcast %cst_30 : f32 to vector<8x1xf32>
    %77 = arith.divf %75, %76 : vector<8x1xf32>
    %78 = vector.broadcast %77 : vector<8x1xf32> to vector<8x32xf32>
    %79 = arith.subf %71, %78 : vector<8x32xf32>
    %80 = arith.mulf %79, %79 : vector<8x32xf32>
    %cst_31 = arith.constant dense<0.000000e+00> : vector<8xf32>
    %81 = vector.multi_reduction <add>, %80, %cst_31 [1] : vector<8x32xf32> to vector<8xf32>
    %82 = vector.shape_cast %81 : vector<8xf32> to vector<8x1xf32>
    %cst_32 = arith.constant 3.200000e+01 : f32
    %83 = vector.broadcast %cst_32 : f32 to vector<8x1xf32>
    %84 = arith.divf %82, %83 : vector<8x1xf32>
    %cst_33 = arith.constant 9.99999974E-6 : f32
    %85 = vector.broadcast %cst_33 : f32 to vector<8x1xf32>
    %86 = arith.addf %84, %85 : vector<8x1xf32>
    %87 = math.rsqrt %86 : vector<8x1xf32>
    %88 = vector.broadcast %87 : vector<8x1xf32> to vector<8x32xf32>
    %89 = arith.mulf %79, %88 : vector<8x32xf32>
    %90 = vector.broadcast %72 : vector<1x32xf32> to vector<8x32xf32>
    %91 = arith.mulf %89, %90 : vector<8x32xf32>
    %92 = vector.broadcast %73 : vector<1x32xf32> to vector<8x32xf32>
    %93 = arith.addf %91, %92 : vector<8x32xf32>
    %94 = arith.truncf %93 : vector<8x32xf32> to vector<8x32xbf16>
    %cst_34 = arith.constant 0.000000e+00 : f32
    %95 = vector.broadcast %cst_34 : f32 to vector<8x32xf32>
    %c0_35 = arith.constant 0 : index
    %c0_36 = arith.constant 0 : index
    %96 = vector.load %arg10[%c0_35, %c0_36] : memref<32x64xbf16, #tpu.memory_space<vmem>>, vector<32x64xbf16>
    %cst_37 = arith.constant dense<0.000000e+00> : vector<8x64xf32>
    %97 = tpu.matmul %94, %96, %cst_37 {dimension_numbers = #tpu.dot_dimension_numbers<[1], [0], [0], [1], [0, 0, 1, 1], [], []>} : vector<8x32xbf16>, vector<32x64xbf16>, vector<8x64xf32> -> vector<8x64xf32>
    %c0_38 = arith.constant 0 : index
    %c0_39 = arith.constant 0 : index
    %98 = vector.load %arg11[%c0_38, %c0_39] : memref<1x64xf32, #tpu.memory_space<vmem>>, vector<1x64xf32>
    %99 = vector.broadcast %98 : vector<1x64xf32> to vector<8x64xf32>
    %100 = arith.addf %97, %99 : vector<8x64xf32>
    %cst_40 = arith.constant 5.000000e-01 : f32
    %101 = vector.broadcast %cst_40 : f32 to vector<8x64xf32>
    %102 = arith.mulf %101, %100 : vector<8x64xf32>
    %cst_41 = arith.constant 0.707106769 : f32
    %103 = vector.broadcast %cst_41 : f32 to vector<8x64xf32>
    %104 = arith.mulf %100, %103 : vector<8x64xf32>
    %cst_42 = arith.constant 0.000000e+00 : f32
    %105 = vector.broadcast %cst_42 : f32 to vector<8x64xf32>
    %106 = arith.cmpf oge, %104, %105 : vector<8x64xf32>
    %cst_43 = arith.constant 1.000000e+00 : f32
    %cst_44 = arith.constant -1.000000e+00 : f32
    %107 = vector.broadcast %cst_43 : f32 to vector<8x64xf32>
    %108 = vector.broadcast %cst_44 : f32 to vector<8x64xf32>
    %109 = arith.select %106, %107, %108 : vector<8x64xi1>, vector<8x64xf32>
    %110 = math.absf %104 : vector<8x64xf32>
    %cst_45 = arith.constant 0.327591091 : f32
    %111 = vector.broadcast %cst_45 : f32 to vector<8x64xf32>
    %112 = arith.mulf %111, %110 : vector<8x64xf32>
    %cst_46 = arith.constant 1.000000e+00 : f32
    %113 = vector.broadcast %cst_46 : f32 to vector<8x64xf32>
    %114 = arith.addf %113, %112 : vector<8x64xf32>
    %115 = tpu.reciprocal %114 {approx = true} : vector<8x64xf32> -> vector<8x64xf32>
    %116 = arith.mulf %114, %115 : vector<8x64xf32>
    %cst_47 = arith.constant 2.000000e+00 : f32
    %117 = vector.broadcast %cst_47 : f32 to vector<8x64xf32>
    %118 = arith.subf %117, %116 : vector<8x64xf32>
    %119 = arith.mulf %115, %118 : vector<8x64xf32>
    %cst_48 = arith.constant 1.06140542 : f32
    %120 = vector.broadcast %cst_48 : f32 to vector<8x64xf32>
    %121 = arith.mulf %120, %119 : vector<8x64xf32>
    %cst_49 = arith.constant -1.45315206 : f32
    %122 = vector.broadcast %cst_49 : f32 to vector<8x64xf32>
    %123 = arith.addf %121, %122 : vector<8x64xf32>
    %124 = arith.mulf %123, %119 : vector<8x64xf32>
    %cst_50 = arith.constant 1.42141378 : f32
    %125 = vector.broadcast %cst_50 : f32 to vector<8x64xf32>
    %126 = arith.addf %124, %125 : vector<8x64xf32>
    %127 = arith.mulf %126, %119 : vector<8x64xf32>
    %cst_51 = arith.constant -0.284496725 : f32
    %128 = vector.broadcast %cst_51 : f32 to vector<8x64xf32>
    %129 = arith.addf %127, %128 : vector<8x64xf32>
    %130 = arith.mulf %129, %119 : vector<8x64xf32>
    %cst_52 = arith.constant 0.254829586 : f32
    %131 = vector.broadcast %cst_52 : f32 to vector<8x64xf32>
    %132 = arith.addf %130, %131 : vector<8x64xf32>
    %133 = arith.mulf %132, %119 : vector<8x64xf32>
    %cst_53 = arith.constant 0.000000e+00 : f32
    %134 = vector.broadcast %cst_53 : f32 to vector<8x64xf32>
    %135 = arith.subf %134, %110 : vector<8x64xf32>
    %136 = arith.mulf %135, %110 : vector<8x64xf32>
    %137 = math.exp %136 : vector<8x64xf32>
    %138 = arith.mulf %133, %137 : vector<8x64xf32>
    %cst_54 = arith.constant 1.000000e+00 : f32
    %139 = vector.broadcast %cst_54 : f32 to vector<8x64xf32>
    %140 = arith.subf %139, %138 : vector<8x64xf32>
    %141 = arith.mulf %109, %140 : vector<8x64xf32>
    %cst_55 = arith.constant 1.000000e+00 : f32
    %142 = vector.broadcast %cst_55 : f32 to vector<8x64xf32>
    %143 = arith.addf %142, %141 : vector<8x64xf32>
    %144 = arith.mulf %102, %143 : vector<8x64xf32>
    %145 = arith.truncf %144 : vector<8x64xf32> to vector<8x64xbf16>
    %c0_56 = arith.constant 0 : index
    %c0_57 = arith.constant 0 : index
    %146 = vector.load %arg12[%c0_56, %c0_57] : memref<64x32xbf16, #tpu.memory_space<vmem>>, vector<64x32xbf16>
    %cst_58 = arith.constant dense<0.000000e+00> : vector<8x32xf32>
    %147 = tpu.matmul %145, %146, %cst_58 {dimension_numbers = #tpu.dot_dimension_numbers<[1], [0], [0], [1], [0, 0, 1, 1], [], []>} : vector<8x64xbf16>, vector<64x32xbf16>, vector<8x32xf32> -> vector<8x32xf32>
    %148 = arith.addf %95, %147 : vector<8x32xf32>
    %c0_59 = arith.constant 0 : index
    %c0_60 = arith.constant 0 : index
    %149 = vector.load %arg13[%c0_59, %c0_60] : memref<1x32xf32, #tpu.memory_space<vmem>>, vector<1x32xf32>
    %150 = vector.broadcast %149 : vector<1x32xf32> to vector<8x32xf32>
    %151 = arith.addf %148, %150 : vector<8x32xf32>
    %152 = arith.addf %71, %151 : vector<8x32xf32>
    %153 = vector.shape_cast %152 : vector<8x32xf32> to vector<1x8x32xf32>
    %c0_61 = arith.constant 0 : index
    %c0_62 = arith.constant 0 : index
    %c0_63 = arith.constant 0 : index
    %154 = vector.load %arg14[%c0_61, %c0_62, %c0_63] : memref<1x8x32xf32, #tpu.memory_space<vmem>>, vector<1x8x32xf32>
    tpu.vector_store %arg14[%c0_61, %c0_62, %c0_63], %153 {strides = array<i32>} : memref<1x8x32xf32, #tpu.memory_space<vmem>>, vector<1x8x32xf32>,
    return
  }
  func.func @transform_0(%arg0: i32) -> (i32, i32, i32) {
    %c0_i32 = arith.constant 0 : i32
    %c0_i32_0 = arith.constant 0 : i32
    %c0_i32_1 = arith.constant 0 : i32
    return %arg0, %c0_i32, %c0_i32_0 : i32, i32, i32
  }
  func.func @transform_1(%arg0: i32) -> (i32, i32) {
    %c0_i32 = arith.constant 0 : i32
    %c0_i32_0 = arith.constant 0 : i32
    %c0_i32_1 = arith.constant 0 : i32
    return %c0_i32, %c0_i32_0 : i32, i32
  }
  func.func @transform_2(%arg0: i32) -> (i32, i32) {
    %c0_i32 = arith.constant 0 : i32
    %c0_i32_0 = arith.constant 0 : i32
    %c0_i32_1 = arith.constant 0 : i32
    return %c0_i32, %c0_i32_0 : i32, i32
  }
  func.func @transform_3(%arg0: i32) -> (i32, i32) {
    %c0_i32 = arith.constant 0 : i32
    %c0_i32_0 = arith.constant 0 : i32
    %c0_i32_1 = arith.constant 0 : i32
    return %c0_i32, %c0_i32_0 : i32, i32
  }
  func.func @transform_4(%arg0: i32) -> (i32, i32) {
    %c0_i32 = arith.constant 0 : i32
    %c0_i32_0 = arith.constant 0 : i32
    %c0_i32_1 = arith.constant 0 : i32
    return %c0_i32, %c0_i32_0 : i32, i32
  }
  func.func @transform_5(%arg0: i32) -> (i32, i32) {
    %c0_i32 = arith.constant 0 : i32
    %c0_i32_0 = arith.constant 0 : i32
    %c0_i32_1 = arith.constant 0 : i32
    return %c0_i32, %c0_i32_0 : i32, i32
  }
  func.func @transform_6(%arg0: i32) -> (i32, i32) {
    %c0_i32 = arith.constant 0 : i32
    %c0_i32_0 = arith.constant 0 : i32
    %c0_i32_1 = arith.constant 0 : i32
    return %c0_i32, %c0_i32_0 : i32, i32
  }
  func.func @transform_7(%arg0: i32) -> (i32, i32) {
    %c0_i32 = arith.constant 0 : i32
    %c0_i32_0 = arith.constant 0 : i32
    %c0_i32_1 = arith.constant 0 : i32
    return %c0_i32, %c0_i32_0 : i32, i32
  }
  func.func @transform_8(%arg0: i32) -> (i32, i32) {
    %c0_i32 = arith.constant 0 : i32
    %c0_i32_0 = arith.constant 0 : i32
    %c0_i32_1 = arith.constant 0 : i32
    return %c0_i32, %c0_i32_0 : i32, i32
  }
  func.func @transform_9(%arg0: i32) -> (i32, i32) {
    %c0_i32 = arith.constant 0 : i32
    %c0_i32_0 = arith.constant 0 : i32
    %c0_i32_1 = arith.constant 0 : i32
    return %c0_i32, %c0_i32_0 : i32, i32
  }
  func.func @transform_10(%arg0: i32) -> (i32, i32) {
    %c0_i32 = arith.constant 0 : i32
    %c0_i32_0 = arith.constant 0 : i32
    %c0_i32_1 = arith.constant 0 : i32
    return %c0_i32, %c0_i32_0 : i32, i32
  }
  func.func @transform_11(%arg0: i32) -> (i32, i32) {
    %c0_i32 = arith.constant 0 : i32
    %c0_i32_0 = arith.constant 0 : i32
    %c0_i32_1 = arith.constant 0 : i32
    return %c0_i32, %c0_i32_0 : i32, i32
  }
  func.func @transform_12(%arg0: i32) -> (i32, i32) {
    %c0_i32 = arith.constant 0 : i32
    %c0_i32_0 = arith.constant 0 : i32
    %c0_i32_1 = arith.constant 0 : i32
    return %c0_i32, %c0_i32_0 : i32, i32
  }
  func.func @transform_13(%arg0: i32) -> (i32, i32, i32) {
    %c0_i32 = arith.constant 0 : i32
    %c0_i32_0 = arith.constant 0 : i32
    %c0_i32_1 = arith.constant 0 : i32
    return %arg0, %c0_i32, %c0_i32_0 : i32, i32, i32
  }
}

</mosaic_0001>

<llo_original>
// kernel: tpu_custom_call.1
$region0: #{tpu_custom_call.1}
  #allocation0 [shape = 'u32[]', space=smem, size = 0x4, offset = 0x4, fixed_abs, tag = 'smem constant byte address 0x4 - core index']
  #allocation1 [shape = 'u32[144,128]{1,0:T(1,128)}', space=vmem, size = 0x12000, scoped, tag = 'internal scratch']
  %s0 = inlined_call_operand.vmem [shape: f32[2,8,32], index: 0, kind: input, shape index: {}]
  %s1 = inlined_call_operand.vmem [shape: f32[1,32], index: 1, kind: input, shape index: {}]
  %s2 = inlined_call_operand.vmem [shape: f32[1,32], index: 2, kind: input, shape index: {}]
  %s3 = inlined_call_operand.vmem [shape: bf16[32,96], index: 3, kind: input, shape index: {}]
  %s4 = inlined_call_operand.hbm [shape: f32[1,96], index: 4, kind: input, shape index: {}]
  %s5 = inlined_call_operand.vmem [shape: bf16[32,32], index: 5, kind: input, shape index: {}]
  %s6 = inlined_call_operand.hbm [shape: f32[1,32], index: 6, kind: input, shape index: {}]
  %s7 = inlined_call_operand.hbm [shape: f32[1,32], index: 7, kind: input, shape index: {}]
  %s8 = inlined_call_operand.hbm [shape: f32[1,32], index: 8, kind: input, shape index: {}]
  %s9 = inlined_call_operand.vmem [shape: bf16[32,64], index: 9, kind: input, shape index: {}]
  %s10 = inlined_call_operand.vmem [shape: f32[1,64], index: 10, kind: input, shape index: {}]
  %s11 = inlined_call_operand.vmem [shape: bf16[64,32], index: 11, kind: input, shape index: {}]
  %s12 = inlined_call_operand.vmem [shape: f32[1,32], index: 12, kind: input, shape index: {}]
  %s13 = inlined_call_operand.hbm [shape: f32[2,8,32], index: 13, kind: output, shape index: {}]
  %s14 = sld [smem:[#allocation0]]
  $region101: #{tpu_custom_call.1} parent=0
    _
  %s16 = ssub.s32 1, %s14
  %s17 = scalar_select 0, %s16, %s14
  $region1: #{tpu_custom_call.1} parent=0
    #allocation2 [shape = 'u8[512]{0}', space=vmem, size = 0x400, scoped, tag = 'input window, operand 4, single buffered']
    #allocation3 [shape = 's32[2]{0}', space=sflag, size = 0x8, scoped, tag = 'scoped memory for tpu_custom_call.1']
    #allocation4 [shape = 's32[2]{0}', space=sflag, size = 0x8, scoped, tag = 'scoped memory for tpu_custom_call.1']
    #allocation5 [shape = 'u8[512]{0}', space=vmem, size = 0x400, scoped, tag = 'input window, operand 6, single buffered']
    #allocation6 [shape = 's32[1]{0}', space=sflag, size = 0x4, scoped, tag = 'scoped memory for tpu_custom_call.1']
    #allocation7 [shape = 'u8[512]{0}', space=vmem, size = 0x400, scoped, tag = 'input window, operand 7, single buffered']
    #allocation8 [shape = 'u8[512]{0}', space=vmem, size = 0x400, scoped, tag = 'input window, operand 8, single buffered']
    #allocation9 [shape = 's32[1]{0}', space=sflag, size = 0x4, scoped, tag = 'scoped memory for tpu_custom_call.1']
    #allocation10 [shape = 'u8[8192]{0}', space=vmem, size = 0x2000, scoped, tag = 'output window, operand 0']
    %18 = vsyncpa [#allocation3], 0
    %19 = vsyncpa [#allocation6], 0
    %20 = vsyncpa [#allocation9], 0
    %21 = vsyncpa [#allocation4], 0
    %s22 = scalar_lea.sflag [#allocation4], 1
    %23 = vsyncpa %s22, 0
    loop: start=0, step=1, limit=4
    $region2: #{tpu_custom_call.1} parent=1 // loop_pre_header
      _
    $region3: #{tpu_custom_call.1} parent=1 // loop_header
      %s25 = sphi 0, %s29
      %p26 = scmp.ge.s32.totalorder %s25, 4
      %s35 = sphi 0, %s37
      %s38 = sphi 0, %s35
      %s39 = sphi 0, %s38
      %s55 = sphi 0, %s39
      %s59 = sphi 0, %s59
      %s61 = sphi 0, %s59
      %s62 = sphi 0, %s61
      %s76 = sphi 0, %s62
      %s80 = sphi 0, %s80
      %s82 = sphi 0, %s80
      %s83 = sphi 0, %s82
      %s97 = sphi 0, %s83
      %s101 = sphi 0, %s101
      %s103 = sphi 0, %s101
      %s104 = sphi 0, %s103
      %s118 = sphi 0, %s104
      %s122 = sphi 0, %s122
      %s124 = sphi 0, %s122
      %s125 = sphi 0, %s124
      %s139 = sphi 0, %s125
      %s143 = sphi 0, %s143
      %s145 = sphi 0, %s143
      %s146 = sphi 0, %s145
      %s160 = sphi 0, %s146
      %s164 = sphi 0, %s164
      %s166 = sphi 0, %s164
      %s167 = sphi 0, %s166
      %s181 = sphi 0, %s167
      %s185 = sphi 0, %s185
      %s187 = sphi 0, %s185
      %s188 = sphi 0, %s187
      %s202 = sphi 0, %s188
      %s206 = sphi 0, %s206
      %s208 = sphi 0, %s206
      %s209 = sphi 0, %s208
      %s223 = sphi 0, %s209
      %s227 = sphi 0, %s227
      %s229 = sphi 0, %s227
      %s230 = sphi 0, %s229
      %s244 = sphi 0, %s230
      %s248 = sphi 0, %s248
      %s250 = sphi 0, %s248
      %s251 = sphi 0, %s250
      %s265 = sphi 0, %s251
      %s269 = sphi 0, %s269
      %s271 = sphi 0, %s269
      %s272 = sphi 0, %s271
      %s286 = sphi 0, %s272
      %s290 = sphi 0, %s290
      %s292 = sphi 0, %s290
      %s293 = sphi 0, %s292
      %s307 = sphi 0, %s293
      %s313 = sphi 0, %s315
      %s316 = sphi 0, %s313
      %s317 = sphi 0, %s316
      %s333 = sphi 0, %s317
    $region4: #{tpu_custom_call.1} parent=1 // loop_header_branch
      %28 = sbr.rel (%p26) target = $region8
    $region5: #{tpu_custom_call.1} parent=1 // loop_body
      %s30 = ssub.s32 %s25, 1
      %s31 = ssub.s32 %s25, 2
      %s32 = sadd.s32 %s25, 1
      %s33 = ssub.s32 %s25, %s32
      %p34 = scmp.eq.s32.totalorder %s33, 0
      %s36 = sadd.s32 %s35, 1
      %s37 = scalar_select %p34, %s35, %s36
      %p40 = pneg %p34
      %p41 = scmp.eq.s32.totalorder %s25, 1
      %p42 = por %p40, %p41
      %p43 = scmp.ne.s32.totalorder %s35, %s38
      %p44 = scmp.eq.s32.totalorder %s25, 0
      %p45 = por %p43, %p44
      %p46 = scmp.ne.s32.totalorder %s35, %s38
      %p47 = scmp.eq.s32.totalorder %s30, 1
      %p48 = por %p46, %p47
      %p49 = scmp.ne.s32.totalorder %s38, %s39
      %p50 = scmp.eq.s32.totalorder %s30, 0
      %p51 = por %p49, %p50
      %p52 = scmp.ne.s32.totalorder %s38, %s39
      %p53 = scmp.eq.s32.totalorder %s31, 1
      %p54 = por %p52, %p53
      %p56 = scmp.ne.s32.totalorder %s39, %s55
      %p57 = scmp.eq.s32.totalorder %s31, 0
      %p58 = por %p56, %p57
      %s60 = sadd.s32 %s59, 1
      %p63 = scmp.eq.s32.totalorder %s25, 1
      %p64 = scmp.ne.s32.totalorder %s59, %s61
      %p65 = scmp.eq.s32.totalorder %s25, 0
      %p66 = por %p64, %p65
      %p67 = scmp.ne.s32.totalorder %s59, %s61
      %p68 = scmp.eq.s32.totalorder %s30, 1
      %p69 = por %p67, %p68
      %p70 = scmp.ne.s32.totalorder %s61, %s62
      %p71 = scmp.eq.s32.totalorder %s30, 0
      %p72 = por %p70, %p71
      %p73 = scmp.ne.s32.totalorder %s61, %s62
      %p74 = scmp.eq.s32.totalorder %s31, 1
      %p75 = por %p73, %p74
      %p77 = scmp.ne.s32.totalorder %s62, %s76
      %p78 = scmp.eq.s32.totalorder %s31, 0
      %p79 = por %p77, %p78
      %s81 = sadd.s32 %s80, 1
      %p84 = scmp.eq.s32.totalorder %s25, 1
      %p85 = scmp.ne.s32.totalorder %s80, %s82
      %p86 = scmp.eq.s32.totalorder %s25, 0
      %p87 = por %p85, %p86
      %p88 = scmp.ne.s32.totalorder %s80, %s82
      %p89 = scmp.eq.s32.totalorder %s30, 1
      %p90 = por %p88, %p89
      %p91 = scmp.ne.s32.totalorder %s82, %s83
      %p92 = scmp.eq.s32.totalorder %s30, 0
      %p93 = por %p91, %p92
      %p94 = scmp.ne.s32.totalorder %s82, %s83
      %p95 = scmp.eq.s32.totalorder %s31, 1
      %p96 = por %p94, %p95
      %p98 = scmp.ne.s32.totalorder %s83, %s97
      %p99 = scmp.eq.s32.totalorder %s31, 0
      %p100 = por %p98, %p99
      %s102 = sadd.s32 %s101, 1
      %p105 = scmp.eq.s32.totalorder %s25, 1
      %p106 = scmp.ne.s32.totalorder %s101, %s103
      %p107 = scmp.eq.s32.totalorder %s25, 0
      %p108 = por %p106, %p107
      %p109 = scmp.ne.s32.totalorder %s101, %s103
      %p110 = scmp.eq.s32.totalorder %s30, 1
      %p111 = por %p109, %p110
      %p112 = scmp.ne.s32.totalorder %s103, %s104
      %p113 = scmp.eq.s32.totalorder %s30, 0
      %p114 = por %p112, %p113
      %p115 = scmp.ne.s32.totalorder %s103, %s104
      %p116 = scmp.eq.s32.totalorder %s31, 1
      %p117 = por %p115, %p116
      %p119 = scmp.ne.s32.totalorder %s104, %s118
      %p120 = scmp.eq.s32.totalorder %s31, 0
      %p121 = por %p119, %p120
      %s123 = sadd.s32 %s122, 1
      %p126 = scmp.eq.s32.totalorder %s25, 1
      %p127 = scmp.ne.s32.totalorder %s122, %s124
      %p128 = scmp.eq.s32.totalorder %s25, 0
      %p129 = por %p127, %p128
      %p130 = scmp.ne.s32.totalorder %s122, %s124
      %p131 = scmp.eq.s32.totalorder %s30, 1
      %p132 = por %p130, %p131
      %p133 = scmp.ne.s32.totalorder %s124, %s125
      %p134 = scmp.eq.s32.totalorder %s30, 0
      %p135 = por %p133, %p134
      %p136 = scmp.ne.s32.totalorder %s124, %s125
      %p137 = scmp.eq.s32.totalorder %s31, 1
      %p138 = por %p136, %p137
      %p140 = scmp.ne.s32.totalorder %s125, %s139
      %p141 = scmp.eq.s32.totalorder %s31, 0
      %p142 = por %p140, %p141
      %s144 = sadd.s32 %s143, 1
      %p147 = scmp.eq.s32.totalorder %s25, 1
      %p148 = scmp.ne.s32.totalorder %s143, %s145
      %p149 = scmp.eq.s32.totalorder %s25, 0
      %p150 = por %p148, %p149
      %p151 = scmp.ne.s32.totalorder %s143, %s145
      %p152 = scmp.eq.s32.totalorder %s30, 1
      %p153 = por %p151, %p152
      %p154 = scmp.ne.s32.totalorder %s145, %s146
      %p155 = scmp.eq.s32.totalorder %s30, 0
      %p156 = por %p154, %p155
      %p157 = scmp.ne.s32.totalorder %s145, %s146
      %p158 = scmp.eq.s32.totalorder %s31, 1
      %p159 = por %p157, %p158
      %p161 = scmp.ne.s32.totalorder %s146, %s160
      %p162 = scmp.eq.s32.totalorder %s31, 0
      %p163 = por %p161, %p162
      %s165 = sadd.s32 %s164, 1
      %p168 = scmp.eq.s32.totalorder %s25, 1
      %p169 = scmp.ne.s32.totalorder %s164, %s166
      %p170 = scmp.eq.s32.totalorder %s25, 0
      %p171 = por %p169, %p170
      %p172 = scmp.ne.s32.totalorder %s164, %s166
      %p173 = scmp.eq.s32.totalorder %s30, 1
      %p174 = por %p172, %p173
      %p175 = scmp.ne.s32.totalorder %s166, %s167
      %p176 = scmp.eq.s32.totalorder %s30, 0
      %p177 = por %p175, %p176
      %p178 = scmp.ne.s32.totalorder %s166, %s167
      %p179 = scmp.eq.s32.totalorder %s31, 1
      %p180 = por %p178, %p179
      %p182 = scmp.ne.s32.totalorder %s167, %s181
      %p183 = scmp.eq.s32.totalorder %s31, 0
      %p184 = por %p182, %p183
      %s186 = sadd.s32 %s185, 1
      %p189 = scmp.eq.s32.totalorder %s25, 1
      %p190 = scmp.ne.s32.totalorder %s185, %s187
      %p191 = scmp.eq.s32.totalorder %s25, 0
      %p192 = por %p190, %p191
      %p193 = scmp.ne.s32.totalorder %s185, %s187
      %p194 = scmp.eq.s32.totalorder %s30, 1
      %p195 = por %p193, %p194
      %p196 = scmp.ne.s32.totalorder %s187, %s188
      %p197 = scmp.eq.s32.totalorder %s30, 0
      %p198 = por %p196, %p197
      %p199 = scmp.ne.s32.totalorder %s187, %s188
      %p200 = scmp.eq.s32.totalorder %s31, 1
      %p201 = por %p199, %p200
      %p203 = scmp.ne.s32.totalorder %s188, %s202
      %p204 = scmp.eq.s32.totalorder %s31, 0
      %p205 = por %p203, %p204
      %s207 = sadd.s32 %s206, 1
      %p210 = scmp.eq.s32.totalorder %s25, 1
      %p211 = scmp.ne.s32.totalorder %s206, %s208
      %p212 = scmp.eq.s32.totalorder %s25, 0
      %p213 = por %p211, %p212
      %p214 = scmp.ne.s32.totalorder %s206, %s208
      %p215 = scmp.eq.s32.totalorder %s30, 1
      %p216 = por %p214, %p215
      %p217 = scmp.ne.s32.totalorder %s208, %s209
      %p218 = scmp.eq.s32.totalorder %s30, 0
      %p219 = por %p217, %p218
      %p220 = scmp.ne.s32.totalorder %s208, %s209
      %p221 = scmp.eq.s32.totalorder %s31, 1
      %p222 = por %p220, %p221
      %p224 = scmp.ne.s32.totalorder %s209, %s223
      %p225 = scmp.eq.s32.totalorder %s31, 0
      %p226 = por %p224, %p225
      %s228 = sadd.s32 %s227, 1
      %p231 = scmp.eq.s32.totalorder %s25, 1
      %p232 = scmp.ne.s32.totalorder %s227, %s229
      %p233 = scmp.eq.s32.totalorder %s25, 0
      %p234 = por %p232, %p233
      %p235 = scmp.ne.s32.totalorder %s227, %s229
      %p236 = scmp.eq.s32.totalorder %s30, 1
      %p237 = por %p235, %p236
      %p238 = scmp.ne.s32.totalorder %s229, %s230
      %p239 = scmp.eq.s32.totalorder %s30, 0
      %p240 = por %p238, %p239
      %p241 = scmp.ne.s32.totalorder %s229, %s230
      %p242 = scmp.eq.s32.totalorder %s31, 1
      %p243 = por %p241, %p242
      %p245 = scmp.ne.s32.totalorder %s230, %s244
      %p246 = scmp.eq.s32.totalorder %s31, 0
      %p247 = por %p245, %p246
      %s249 = sadd.s32 %s248, 1
      %p252 = scmp.eq.s32.totalorder %s25, 1
      %p253 = scmp.ne.s32.totalorder %s248, %s250
      %p254 = scmp.eq.s32.totalorder %s25, 0
      %p255 = por %p253, %p254
      %p256 = scmp.ne.s32.totalorder %s248, %s250
      %p257 = scmp.eq.s32.totalorder %s30, 1
      %p258 = por %p256, %p257
      %p259 = scmp.ne.s32.totalorder %s250, %s251
      %p260 = scmp.eq.s32.totalorder %s30, 0
      %p261 = por %p259, %p260
      %p262 = scmp.ne.s32.totalorder %s250, %s251
      %p263 = scmp.eq.s32.totalorder %s31, 1
      %p264 = por %p262, %p263
      %p266 = scmp.ne.s32.totalorder %s251, %s265
      %p267 = scmp.eq.s32.totalorder %s31, 0
      %p268 = por %p266, %p267
      %s270 = sadd.s32 %s269, 1
      %p273 = scmp.eq.s32.totalorder %s25, 1
      %p274 = scmp.ne.s32.totalorder %s269, %s271
      %p275 = scmp.eq.s32.totalorder %s25, 0
      %p276 = por %p274, %p275
      %p277 = scmp.ne.s32.totalorder %s269, %s271
      %p278 = scmp.eq.s32.totalorder %s30, 1
      %p279 = por %p277, %p278
      %p280 = scmp.ne.s32.totalorder %s271, %s272
      %p281 = scmp.eq.s32.totalorder %s30, 0
      %p282 = por %p280, %p281
      %p283 = scmp.ne.s32.totalorder %s271, %s272
      %p284 = scmp.eq.s32.totalorder %s31, 1
      %p285 = por %p283, %p284
      %p287 = scmp.ne.s32.totalorder %s272, %s286
      %p288 = scmp.eq.s32.totalorder %s31, 0
      %p289 = por %p287, %p288
      %s291 = sadd.s32 %s290, 1
      %p294 = scmp.eq.s32.totalorder %s25, 1
      %p295 = scmp.ne.s32.totalorder %s290, %s292
      %p296 = scmp.eq.s32.totalorder %s25, 0
      %p297 = por %p295, %p296
      %p298 = scmp.ne.s32.totalorder %s290, %s292
      %p299 = scmp.eq.s32.totalorder %s30, 1
      %p300 = por %p298, %p299
      %p301 = scmp.ne.s32.totalorder %s292, %s293
      %p302 = scmp.eq.s32.totalorder %s30, 0
      %p303 = por %p301, %p302
      %p304 = scmp.ne.s32.totalorder %s292, %s293
      %p305 = scmp.eq.s32.totalorder %s31, 1
      %p306 = por %p304, %p305
      %p308 = scmp.ne.s32.totalorder %s293, %s307
      %p309 = scmp.eq.s32.totalorder %s31, 0
      %p310 = por %p308, %p309
      %s311 = ssub.s32 %s25, %s32
      %p312 = scmp.eq.s32.totalorder %s311, 0
      %s314 = sadd.s32 %s313, 1
      %s315 = scalar_select %p312, %s313, %s314
      %p318 = pneg %p312
      %p319 = scmp.eq.s32.totalorder %s25, 1
      %p320 = por %p318, %p319
      %p321 = scmp.ne.s32.totalorder %s313, %s316
      %p322 = scmp.eq.s32.totalorder %s25, 0
      %p323 = por %p321, %p322
      %p324 = scmp.ne.s32.totalorder %s313, %s316
      %p325 = scmp.eq.s32.totalorder %s30, 1
      %p326 = por %p324, %p325
      %p327 = scmp.ne.s32.totalorder %s316, %s317
      %p328 = scmp.eq.s32.totalorder %s30, 0
      %p329 = por %p327, %p328
      %p330 = scmp.ne.s32.totalorder %s316, %s317
      %p331 = scmp.eq.s32.totalorder %s31, 1
      %p332 = por %p330, %p331
      %p334 = scmp.ne.s32.totalorder %s317, %s333
      %p335 = scmp.eq.s32.totalorder %s31, 0
      %p336 = por %p334, %p335
      %p337 = scmp.le.s32.totalorder 1, %s25
      %p338 = scmp.lt.s32.totalorder %s25, 3
      %p339 = pnand %p337, %p338
      %p340 = pneg %p339
      // Predicated region
      $region9: #{tpu_custom_call.1} parent=5 // pred_check
        _
      $region10: #{tpu_custom_call.1} parent=5 // pred_check_branch
        %342 = sbr.rel (%p339) target = $region12
      $region11: #{tpu_custom_call.1} parent=5 // pred_region
        %s343 = ssub.s32 %s25, 1
        // Predicated region
        $region13: #{tpu_custom_call.1} parent=11 // pred_check
          %p344 = pneg %p72
        $region14: #{tpu_custom_call.1} parent=11 // pred_check_branch
          %346 = sbr.rel (%p344) target = $region16
        $region15: #{tpu_custom_call.1} parent=11 // pred_region
          _
        $region16: #{tpu_custom_call.1} parent=11 // pred_fallthru
          _
        // Predicated region
        $region17: #{tpu_custom_call.1} parent=11 // pred_check
          %p347 = pneg %p93
        $region18: #{tpu_custom_call.1} parent=11 // pred_check_branch
          %349 = sbr.rel (%p347) target = $region20
        $region19: #{tpu_custom_call.1} parent=11 // pred_region
          _
        $region20: #{tpu_custom_call.1} parent=11 // pred_fallthru
          _
        // Predicated region
        $region21: #{tpu_custom_call.1} parent=11 // pred_check
          %p350 = pneg %p114
        $region22: #{tpu_custom_call.1} parent=11 // pred_check_branch
          %352 = sbr.rel (%p350) target = $region24
        $region23: #{tpu_custom_call.1} parent=11 // pred_region
          _
        $region24: #{tpu_custom_call.1} parent=11 // pred_fallthru
          _
        // Predicated region
        $region25: #{tpu_custom_call.1} parent=11 // pred_check
          %p353 = pneg %p135
        $region26: #{tpu_custom_call.1} parent=11 // pred_check_branch
          %355 = sbr.rel (%p353) target = $region28
        $region27: #{tpu_custom_call.1} parent=11 // pred_region
          %s357 = ssub.s32 16, 16
          %358 = vsyncadd [#allocation3], %s357
          %s360 = sshll.u32 [#allocation2], 4
          %s361 = int_to_ptr.vmem [resolvable:$true] %s360
          %363 = dma.hbm_to_vmem [thread:$0]  %s4, 16, %s361, [#allocation3]
        $region28: #{tpu_custom_call.1} parent=11 // pred_fallthru
          _
        // Predicated region
        $region29: #{tpu_custom_call.1} parent=11 // pred_check
          %p364 = pneg %p156
        $region30: #{tpu_custom_call.1} parent=11 // pred_check_branch
          %366 = sbr.rel (%p364) target = $region32
        $region31: #{tpu_custom_call.1} parent=11 // pred_region
          _
        $region32: #{tpu_custom_call.1} parent=11 // pred_fallthru
          _
        // Predicated region
        $region33: #{tpu_custom_call.1} parent=11 // pred_check
          %p367 = pneg %p177
        $region34: #{tpu_custom_call.1} parent=11 // pred_check_branch
          %369 = sbr.rel (%p367) target = $region36
        $region35: #{tpu_custom_call.1} parent=11 // pred_region
          %s371 = ssub.s32 16, 16
          %372 = vsyncadd [#allocation6], %s371
          %s374 = sshll.u32 [#allocation5], 4
          %s375 = int_to_ptr.vmem [resolvable:$true] %s374
          %377 = dma.hbm_to_vmem [thread:$0]  %s6, 16, %s375, [#allocation6]
        $region36: #{tpu_custom_call.1} parent=11 // pred_fallthru
          _
        // Predicated region
        $region37: #{tpu_custom_call.1} parent=11 // pred_check
          %p378 = pneg %p198
        $region38: #{tpu_custom_call.1} parent=11 // pred_check_branch
          %380 = sbr.rel (%p378) target = $region40
        $region39: #{tpu_custom_call.1} parent=11 // pred_region
          %s382 = ssub.s32 16, 16
          %383 = vsyncadd [#allocation6], %s382
          %s385 = sshll.u32 [#allocation7], 4
          %s386 = int_to_ptr.vmem [resolvable:$true] %s385
          %388 = dma.hbm_to_vmem [thread:$0]  %s7, 16, %s386, [#allocation6]
        $region40: #{tpu_custom_call.1} parent=11 // pred_fallthru
          _
        // Predicated region
        $region41: #{tpu_custom_call.1} parent=11 // pred_check
          %p389 = pneg %p219
        $region42: #{tpu_custom_call.1} parent=11 // pred_check_branch
          %391 = sbr.rel (%p389) target = $region44
        $region43: #{tpu_custom_call.1} parent=11 // pred_region
          %s393 = ssub.s32 16, 16
          %394 = vsyncadd [#allocation9], %s393
          %s396 = sshll.u32 [#allocation8], 4
          %s397 = int_to_ptr.vmem [resolvable:$true] %s396
          %399 = dma.hbm_to_vmem [thread:$0]  %s8, 16, %s397, [#allocation9]
        $region44: #{tpu_custom_call.1} parent=11 // pred_fallthru
          _
        // Predicated region
        $region45: #{tpu_custom_call.1} parent=11 // pred_check
          %p400 = pneg %p240
        $region46: #{tpu_custom_call.1} parent=11 // pred_check_branch
          %402 = sbr.rel (%p400) target = $region48
        $region47: #{tpu_custom_call.1} parent=11 // pred_region
          _
        $region48: #{tpu_custom_call.1} parent=11 // pred_fallthru
          _
        // Predicated region
        $region49: #{tpu_custom_call.1} parent=11 // pred_check
          %p403 = pneg %p261
        $region50: #{tpu_custom_call.1} parent=11 // pred_check_branch
          %405 = sbr.rel (%p403) target = $region52
        $region51: #{tpu_custom_call.1} parent=11 // pred_region
          _
        $region52: #{tpu_custom_call.1} parent=11 // pred_fallthru
          _
        // Predicated region
        $region53: #{tpu_custom_call.1} parent=11 // pred_check
          %p406 = pneg %p282
        $region54: #{tpu_custom_call.1} parent=11 // pred_check_branch
          %408 = sbr.rel (%p406) target = $region56
        $region55: #{tpu_custom_call.1} parent=11 // pred_region
          _
        $region56: #{tpu_custom_call.1} parent=11 // pred_fallthru
          _
        // Predicated region
        $region57: #{tpu_custom_call.1} parent=11 // pred_check
          %p409 = pneg %p303
        $region58: #{tpu_custom_call.1} parent=11 // pred_check_branch
          %411 = sbr.rel (%p409) target = $region60
        $region59: #{tpu_custom_call.1} parent=11 // pred_region
          _
        $region60: #{tpu_custom_call.1} parent=11 // pred_fallthru
          _
      $region12: #{tpu_custom_call.1} parent=5 // pred_fallthru
        _
      %p412 = scmp.lt.s32.totalorder %s25, 2
      // Predicated region
      $region61: #{tpu_custom_call.1} parent=5 // pred_check
        %p413 = pneg %p412
      $region62: #{tpu_custom_call.1} parent=5 // pred_check_branch
        %415 = sbr.rel (%p413) target = $region64
      $region63: #{tpu_custom_call.1} parent=5 // pred_region
        // Predicated region
        $region65: #{tpu_custom_call.1} parent=63 // pred_check
          %p416 = pneg %p45
        $region66: #{tpu_custom_call.1} parent=63 // pred_check_branch
          %418 = sbr.rel (%p416) target = $region68
        $region67: #{tpu_custom_call.1} parent=63 // pred_region
          %p419 = scmp.lt.s32.totalorder %s25, 1
          %s420 = scalar_select %p419, %s25, 1
          %s421 = smul.addr %s420, 8
          %s422 = scalar_lea.vmem %s0, %s421
        $region68: #{tpu_custom_call.1} parent=63 // pred_fallthru
          _
      $region64: #{tpu_custom_call.1} parent=5 // pred_fallthru
        _
      %p423 = scmp.le.s32.totalorder 1, %s25
      %p424 = scmp.lt.s32.totalorder %s25, 3
      %p425 = pnand %p423, %p424
      %p426 = pneg %p425
      // Predicated region
      $region69: #{tpu_custom_call.1} parent=5 // pred_check
        _
      $region70: #{tpu_custom_call.1} parent=5 // pred_check_branch
        %428 = sbr.rel (%p425) target = $region72
      $region71: #{tpu_custom_call.1} parent=5 // pred_region
        %s429 = ssub.s32 %s25, 1
        // Predicated region
        $region73: #{tpu_custom_call.1} parent=71 // pred_check
          %p430 = pneg %p135
        $region74: #{tpu_custom_call.1} parent=71 // pred_check_branch
          %432 = sbr.rel (%p430) target = $region76
        $region75: #{tpu_custom_call.1} parent=71 // pred_region
          %433 = dma.done [#allocation3], 16
        $region76: #{tpu_custom_call.1} parent=71 // pred_fallthru
          _
        // Predicated region
        $region77: #{tpu_custom_call.1} parent=71 // pred_check
          %p434 = pneg %p177
        $region78: #{tpu_custom_call.1} parent=71 // pred_check_branch
          %436 = sbr.rel (%p434) target = $region80
        $region79: #{tpu_custom_call.1} parent=71 // pred_region
          %437 = dma.done [#allocation6], 16
        $region80: #{tpu_custom_call.1} parent=71 // pred_fallthru
          _
        // Predicated region
        $region81: #{tpu_custom_call.1} parent=71 // pred_check
          %p438 = pneg %p198
        $region82: #{tpu_custom_call.1} parent=71 // pred_check_branch
          %440 = sbr.rel (%p438) target = $region84
        $region83: #{tpu_custom_call.1} parent=71 // pred_region
          %441 = dma.done [#allocation6], 16
        $region84: #{tpu_custom_call.1} parent=71 // pred_fallthru
          _
        // Predicated region
        $region85: #{tpu_custom_call.1} parent=71 // pred_check
          %p442 = pneg %p219
        $region86: #{tpu_custom_call.1} parent=71 // pred_check_branch
          %444 = sbr.rel (%p442) target = $region88
        $region87: #{tpu_custom_call.1} parent=71 // pred_region
          %445 = dma.done [#allocation9], 16
        $region88: #{tpu_custom_call.1} parent=71 // pred_fallthru
          _
        %p446 = scmp.lt.s32.totalorder %s30, 1
        %s447 = scalar_select %p446, %s30, 1
        %s448 = smul.addr %s447, 8
        %s449 = scalar_lea.vmem %s0, %s448
        %p450 = pneg %p51
        %p451 = pneg %p48
        %p452 = pneg %p72
        %p453 = pneg %p69
        %p454 = pneg %p93
        %p455 = pneg %p90
        %p456 = pneg %p114
        %p457 = pneg %p111
        %p458 = pneg %p135
        %p459 = pneg %p132
        %p460 = pneg %p156
        %p461 = pneg %p153
        %p462 = pneg %p177
        %p463 = pneg %p174
        %p464 = pneg %p198
        %p465 = pneg %p195
        %p466 = pneg %p219
        %p467 = pneg %p216
        %p468 = pneg %p240
        %p469 = pneg %p237
        %p470 = pneg %p261
        %p471 = pneg %p258
        %p472 = pneg %p282
        %p473 = pneg %p279
        %p474 = pneg %p303
        %p475 = pneg %p300
        %p476 = pneg %p329
        %p477 = pneg %p326
        %s478 = sand.u32 %s316, 1
        %s479 = scalar_lea.sflag [#allocation4], %s478
        %s480 = sand.u32 %s316, 1
        %s481 = smul.addr %s480, 8
        %s482 = scalar_lea.vmem [#allocation10], %s481
        %p483 = scmp.lt.s32.totalorder %s30, 1
        %s484 = scalar_select %p483, %s30, 1
        %s485 = smul.addr %s484, 8
        %s486 = scalar_lea.vmem %s0, %s485
        %v488 = vld [vmem:[%s486] sm:$0xff]
        %v489 = vld [vmem:[%s1] sm:$0x1]
        %v490 = vld [vmem:[%s2] sm:$0x1]
        %vm491 = vcmask 261120
        %v492 = vsel %vm491, %v488, 0.0
        %493 = vadd.xlane.f32.xlu0 %v492
        %v494 = vpop.xlane.xlu0 %493
        %v495 = vrcp.pop 32.0
        %v496 = vmul.f32 %v494, %v495
        %v497 = vsub.f32 %v488, %v496
        %v498 = vmul.f32 %v497, %v497
        %v499 = vsel %vm491, %v498, 0.0
        %500 = vadd.xlane.f32.xlu0 %v499
        %v501 = vpop.xlane.xlu0 %500
        %v502 = vmul.f32 %v501, %v495
        %v503 = vadd.f32 %v502, 1e-05
        %v504 = vrsqrt.pop %v503
        %v505 = vmul.f32 %v497, %v504
        %v507 = vlaneseq
        %v508 = vshrl.u32 %v507, 7
        %v509 = vsub.s32 0, %v508
        %v510 = vrot.slane %v489, %v509
        %v512 = vmul.f32 %v505, %v510
        %v514 = vlaneseq
        %v515 = vshrl.u32 %v514, 7
        %v516 = vsub.s32 0, %v515
        %v517 = vrot.slane %v490, %v516
        %v519 = vadd.f32 %v512, %v517
        %v520 = vpack.c.bf16 %v519, %v519
        %v521 = vld [vmem:[%s3] sm:$0xf]
        %v522 = vld [vmem:[%s3 + $0x4] sm:$0xf]
        %v523 = vld [vmem:[%s3 + $0x8] sm:$0xf]
        %v524 = vld [vmem:[%s3 + $0xc] sm:$0xf]
        %v525 = vld [vmem:[#allocation2] sm:$0x1]
        %v527 = vlaneseq
        %v528 = vshrl.u32 %v527, 7
        %v529 = vsub.s32 0, %v528
        %v530 = vrot.slane %v525, %v529
        %v536 = vunpack.c.l.b16 %v521
        %v537 = vunpack.c.l.b16 %v522
        %v538 = vunpack.c.l.b16 %v523
        %v539 = vunpack.c.l.b16 %v524
        %v540 = vpack.c.b16 %v537, %v536
        %v541 = vpack.c.b16 %v539, %v538
        %v545 = vsel %vm491, %v520, 0
        %547 = vmatprep.subr.bf16.mxu0 0
        %548 = vmatpush1.bf16.msra.mxu0 %v540
        %549 = vmatprep.subr.bf16.mxu0 0
        %550 = vmatpush1.bf16.msra.mxu0 %v541
        %551 = vmatprep.subr.bf16.mxu0 0
        %552 = vmatpush1.bf16.msra.mxu0 0
        %553 = vmatprep.subr.bf16.mxu0 0
        %554 = vmatpush1.bf16.msra.mxu0 0
        %555 = vmatprep.subr.bf16.mxu0 0
        %556 = vmatpush1.bf16.msra.mxu0 0
        %557 = vmatprep.subr.bf16.mxu0 0
        %558 = vmatpush1.bf16.msra.mxu0 0
        %559 = vmatprep.subr.bf16.mxu0 0
        %560 = vmatpush1.bf16.msra.mxu0 0
        %561 = vmatprep.subr.bf16.mxu0 0
        %562 = vmatpush1.bf16.msra.mxu0 0
        %563 = vmatprep.subr.bf16.mxu0 0
        %564 = vmatpush1.bf16.msra.mxu0 0
        %565 = vmatprep.subr.bf16.mxu0 0
        %566 = vmatpush1.bf16.msra.mxu0 0
        %567 = vmatprep.subr.bf16.mxu0 0
        %568 = vmatpush1.bf16.msra.mxu0 0
        %569 = vmatprep.subr.bf16.mxu0 0
        %570 = vmatpush1.bf16.msra.mxu0 0
        %571 = vmatprep.subr.bf16.mxu0 0
        %572 = vmatpush1.bf16.msra.mxu0 0
        %573 = vmatprep.subr.bf16.mxu0 0
        %574 = vmatpush1.bf16.msra.mxu0 0
        %575 = vmatprep.subr.bf16.mxu0 0
        %576 = vmatpush1.bf16.msra.mxu0 0
        %577 = vmatprep.subr.bf16.mxu0 0
        %578 = vmatpush1.bf16.msra.mxu0 0
        %579 = vmatprep.mubr.bf16.mxu0 0
        %580 = vmatmul.mubr.bf16.gmra.mrb[0].mxu0 %v545
        %v581 = vpop.f32.mrb[0].mxu0
        %v582 = vadd.f32 %v530, %v581
        %v583 = vpop.f32.mrb[0].mxu0
        %v584 = vpop.f32.mrb[0].mxu0
        %v585 = vpop.f32.mrb[0].mxu0
        %586 = vdwg.mxu0
        %588 = vrot.lane.b32.xlu0 %v582, 104
        %v589 = vpop.permute.xlu0 %588
        %591 = vrot.lane.b32.xlu0 %v582, 80
        %v592 = vpop.permute.xlu0 %591
        %594 = vrot.lane.b32.xlu0 %v582, 56
        %v595 = vpop.permute.xlu0 %594
        %v597 = vpack.c.bf16 %v582, %v582
        %v598 = vpack.c.bf16 %v589, %v589
        %v599 = vpack.c.bf16 %v592, %v592
        %v600 = vpack.c.bf16 %v595, %v595
        %602 = vrot.lane.b32.xlu0 %v597, 120
        %v603 = vpop.permute.xlu0 %602
        %vm604 = vcmask 64512
        %v606 = vsel %vm604, %v597, 0
        %v609 = vsel %vm604, %v603, 0
        %611 = vmatprep.subr.bf16.mxu0 0
        %612 = vmatpush1.bf16.xpose.msra.mxu0 %v609
        %613 = vmatprep.subr.bf16.mxu0 0
        %614 = vmatpush1.bf16.xpose.msra.mxu0 0
        %615 = vmatprep.subr.bf16.mxu0 0
        %616 = vmatpush1.bf16.xpose.msra.mxu0 0
        %617 = vmatprep.subr.bf16.mxu0 0
        %618 = vmatpush1.bf16.xpose.msra.mxu0 0
        %619 = vmatprep.subr.bf16.mxu0 0
        %620 = vmatpush1.bf16.xpose.msra.mxu0 0
        %621 = vmatprep.subr.bf16.mxu0 0
        %622 = vmatpush1.bf16.xpose.msra.mxu0 0
        %623 = vmatprep.subr.bf16.mxu0 0
        %624 = vmatpush1.bf16.xpose.msra.mxu0 0
        %625 = vmatprep.subr.bf16.mxu0 0
        %626 = vmatpush1.bf16.xpose.msra.mxu0 0
        %627 = vmatprep.subr.bf16.mxu0 0
        %628 = vmatpush1.bf16.xpose.msra.mxu0 0
        %629 = vmatprep.subr.bf16.mxu0 0
        %630 = vmatpush1.bf16.xpose.msra.mxu0 0
        %631 = vmatprep.subr.bf16.mxu0 0
        %632 = vmatpush1.bf16.xpose.msra.mxu0 0
        %633 = vmatprep.subr.bf16.mxu0 0
        %634 = vmatpush1.bf16.xpose.msra.mxu0 0
        %635 = vmatprep.subr.bf16.mxu0 0
        %636 = vmatpush1.bf16.xpose.msra.mxu0 0
        %637 = vmatprep.subr.bf16.mxu0 0
        %638 = vmatpush1.bf16.xpose.msra.mxu0 0
        %639 = vmatprep.subr.bf16.mxu0 0
        %640 = vmatpush1.bf16.xpose.msra.mxu0 0
        %641 = vmatprep.subr.bf16.mxu0 0
        %642 = vmatpush1.bf16.xpose.msra.mxu0 0
        %643 = vmatprep.mubr.bf16.mxu0 0
        %644 = vmatmul.mubr.bf16.gmra.mrb[0].mxu0 %v606
        %v645 = vpop.f32.mrb[0].mxu0
        %v646 = vadd.f32 0.0, %v645
        %v647 = vpop.f32.mrb[0].mxu0
        %v648 = vpop.f32.mrb[0].mxu0
        %v649 = vpop.f32.mrb[0].mxu0
        %650 = vdwg.mxu0
        %652 = vrot.lane.b32.xlu0 %v598, 120
        %v653 = vpop.permute.xlu0 %652
        %v655 = vsel %vm604, %v598, 0
        %v658 = vsel %vm604, %v653, 0
        %660 = vmatprep.subr.bf16.mxu0 0
        %661 = vmatpush1.bf16.xpose.msra.mxu0 %v658
        %662 = vmatprep.subr.bf16.mxu0 0
        %663 = vmatpush1.bf16.xpose.msra.mxu0 0
        %664 = vmatprep.subr.bf16.mxu0 0
        %665 = vmatpush1.bf16.xpose.msra.mxu0 0
        %666 = vmatprep.subr.bf16.mxu0 0
        %667 = vmatpush1.bf16.xpose.msra.mxu0 0
        %668 = vmatprep.subr.bf16.mxu0 0
        %669 = vmatpush1.bf16.xpose.msra.mxu0 0
        %670 = vmatprep.subr.bf16.mxu0 0
        %671 = vmatpush1.bf16.xpose.msra.mxu0 0
        %672 = vmatprep.subr.bf16.mxu0 0
        %673 = vmatpush1.bf16.xpose.msra.mxu0 0
        %674 = vmatprep.subr.bf16.mxu0 0
        %675 = vmatpush1.bf16.xpose.msra.mxu0 0
        %676 = vmatprep.subr.bf16.mxu0 0
        %677 = vmatpush1.bf16.xpose.msra.mxu0 0
        %678 = vmatprep.subr.bf16.mxu0 0
        %679 = vmatpush1.bf16.xpose.msra.mxu0 0
        %680 = vmatprep.subr.bf16.mxu0 0
        %681 = vmatpush1.bf16.xpose.msra.mxu0 0
        %682 = vmatprep.subr.bf16.mxu0 0
        %683 = vmatpush1.bf16.xpose.msra.mxu0 0
        %684 = vmatprep.subr.bf16.mxu0 0
        %685 = vmatpush1.bf16.xpose.msra.mxu0 0
        %686 = vmatprep.subr.bf16.mxu0 0
        %687 = vmatpush1.bf16.xpose.msra.mxu0 0
        %688 = vmatprep.subr.bf16.mxu0 0
        %689 = vmatpush1.bf16.xpose.msra.mxu0 0
        %690 = vmatprep.subr.bf16.mxu0 0
        %691 = vmatpush1.bf16.xpose.msra.mxu0 0
        %692 = vmatprep.mubr.bf16.mxu0 0
        %693 = vmatmul.mubr.bf16.gmra.mrb[0].mxu0 %v655
        %v694 = vpop.f32.mrb[0].mxu0
        %v695 = vadd.f32 0.0, %v694
        %v696 = vpop.f32.mrb[0].mxu0
        %v697 = vpop.f32.mrb[0].mxu0
        %v698 = vpop.f32.mrb[0].mxu0
        %699 = vdwg.mxu0
        %701 = vrot.lane.b32.xlu0 %v599, 120
        %v702 = vpop.permute.xlu0 %701
        %v704 = vsel %vm604, %v599, 0
        %v707 = vsel %vm604, %v702, 0
        %709 = vmatprep.subr.bf16.mxu0 0
        %710 = vmatpush1.bf16.xpose.msra.mxu0 %v707
        %711 = vmatprep.subr.bf16.mxu0 0
        %712 = vmatpush1.bf16.xpose.msra.mxu0 0
        %713 = vmatprep.subr.bf16.mxu0 0
        %714 = vmatpush1.bf16.xpose.msra.mxu0 0
        %715 = vmatprep.subr.bf16.mxu0 0
        %716 = vmatpush1.bf16.xpose.msra.mxu0 0
        %717 = vmatprep.subr.bf16.mxu0 0
        %718 = vmatpush1.bf16.xpose.msra.mxu0 0
        %719 = vmatprep.subr.bf16.mxu0 0
        %720 = vmatpush1.bf16.xpose.msra.mxu0 0
        %721 = vmatprep.subr.bf16.mxu0 0
        %722 = vmatpush1.bf16.xpose.msra.mxu0 0
        %723 = vmatprep.subr.bf16.mxu0 0
        %724 = vmatpush1.bf16.xpose.msra.mxu0 0
        %725 = vmatprep.subr.bf16.mxu0 0
        %726 = vmatpush1.bf16.xpose.msra.mxu0 0
        %727 = vmatprep.subr.bf16.mxu0 0
        %728 = vmatpush1.bf16.xpose.msra.mxu0 0
        %729 = vmatprep.subr.bf16.mxu0 0
        %730 = vmatpush1.bf16.xpose.msra.mxu0 0
        %731 = vmatprep.subr.bf16.mxu0 0
        %732 = vmatpush1.bf16.xpose.msra.mxu0 0
        %733 = vmatprep.subr.bf16.mxu0 0
        %734 = vmatpush1.bf16.xpose.msra.mxu0 0
        %735 = vmatprep.subr.bf16.mxu0 0
        %736 = vmatpush1.bf16.xpose.msra.mxu0 0
        %737 = vmatprep.subr.bf16.mxu0 0
        %738 = vmatpush1.bf16.xpose.msra.mxu0 0
        %739 = vmatprep.subr.bf16.mxu0 0
        %740 = vmatpush1.bf16.xpose.msra.mxu0 0
        %741 = vmatprep.mubr.bf16.mxu0 0
        %742 = vmatmul.mubr.bf16.gmra.mrb[0].mxu0 %v704
        %v743 = vpop.f32.mrb[0].mxu0
        %v744 = vadd.f32 0.0, %v743
        %v745 = vpop.f32.mrb[0].mxu0
        %v746 = vpop.f32.mrb[0].mxu0
        %v747 = vpop.f32.mrb[0].mxu0
        %748 = vdwg.mxu0
        %750 = vrot.lane.b32.xlu0 %v600, 120
        %v751 = vpop.permute.xlu0 %750
        %v753 = vsel %vm604, %v600, 0
        %v756 = vsel %vm604, %v751, 0
        %758 = vmatprep.subr.bf16.mxu0 0
        %759 = vmatpush1.bf16.xpose.msra.mxu0 %v756
        %760 = vmatprep.subr.bf16.mxu0 0
        %761 = vmatpush1.bf16.xpose.msra.mxu0 0
        %762 = vmatprep.subr.bf16.mxu0 0
        %763 = vmatpush1.bf16.xpose.msra.mxu0 0
        %764 = vmatprep.subr.bf16.mxu0 0
        %765 = vmatpush1.bf16.xpose.msra.mxu0 0
        %766 = vmatprep.subr.bf16.mxu0 0
        %767 = vmatpush1.bf16.xpose.msra.mxu0 0
        %768 = vmatprep.subr.bf16.mxu0 0
        %769 = vmatpush1.bf16.xpose.msra.mxu0 0
        %770 = vmatprep.subr.bf16.mxu0 0
        %771 = vmatpush1.bf16.xpose.msra.mxu0 0
        %772 = vmatprep.subr.bf16.mxu0 0
        %773 = vmatpush1.bf16.xpose.msra.mxu0 0
        %774 = vmatprep.subr.bf16.mxu0 0
        %775 = vmatpush1.bf16.xpose.msra.mxu0 0
        %776 = vmatprep.subr.bf16.mxu0 0
        %777 = vmatpush1.bf16.xpose.msra.mxu0 0
        %778 = vmatprep.subr.bf16.mxu0 0
        %779 = vmatpush1.bf16.xpose.msra.mxu0 0
        %780 = vmatprep.subr.bf16.mxu0 0
        %781 = vmatpush1.bf16.xpose.msra.mxu0 0
        %782 = vmatprep.subr.bf16.mxu0 0
        %783 = vmatpush1.bf16.xpose.msra.mxu0 0
        %784 = vmatprep.subr.bf16.mxu0 0
        %785 = vmatpush1.bf16.xpose.msra.mxu0 0
        %786 = vmatprep.subr.bf16.mxu0 0
        %787 = vmatpush1.bf16.xpose.msra.mxu0 0
        %788 = vmatprep.subr.bf16.mxu0 0
        %789 = vmatpush1.bf16.xpose.msra.mxu0 0
        %790 = vmatprep.mubr.bf16.mxu0 0
        %791 = vmatmul.mubr.bf16.gmra.mrb[0].mxu0 %v753
        %v792 = vpop.f32.mrb[0].mxu0
        %v793 = vadd.f32 0.0, %v792
        %v794 = vpop.f32.mrb[0].mxu0
        %v795 = vpop.f32.mrb[0].mxu0
        %v796 = vpop.f32.mrb[0].mxu0
        %797 = vdwg.mxu0
        %v798 = vsel %vm604, %v646, -inf
        %799 = vmax.xlane.f32.xlu0 %v798
        %v800 = vpop.xlane.xlu0 %799
        %v801 = vsel %vm604, %v695, -inf
        %802 = vmax.xlane.f32.xlu0 %v801
        %v803 = vpop.xlane.xlu0 %802
        %v804 = vsel %vm604, %v744, -inf
        %805 = vmax.xlane.f32.xlu0 %v804
        %v806 = vpop.xlane.xlu0 %805
        %v807 = vsel %vm604, %v793, -inf
        %808 = vmax.xlane.f32.xlu0 %v807
        %v809 = vpop.xlane.xlu0 %808
        %v810 = vsub.f32 %v646, %v800
        %v811 = vsub.f32 %v695, %v803
        %v812 = vsub.f32 %v744, %v806
        %v813 = vsub.f32 %v793, %v809
        %v814 = vmul.f32 %v810, 1.442695
        %v815 = vpow.pop %v814
        %v816 = vmul.f32 %v811, 1.442695
        %v817 = vpow.pop %v816
        %v818 = vmul.f32 %v812, 1.442695
        %v819 = vpow.pop %v818
        %v820 = vmul.f32 %v813, 1.442695
        %v821 = vpow.pop %v820
        %v822 = vsel %vm604, %v815, 0.0
        %823 = vadd.xlane.f32.xlu0 %v822
        %v824 = vpop.xlane.xlu0 %823
        %v825 = vsel %vm604, %v817, 0.0
        %826 = vadd.xlane.f32.xlu0 %v825
        %v827 = vpop.xlane.xlu0 %826
        %v828 = vsel %vm604, %v819, 0.0
        %829 = vadd.xlane.f32.xlu0 %v828
        %v830 = vpop.xlane.xlu0 %829
        %v831 = vsel %vm604, %v821, 0.0
        %832 = vadd.xlane.f32.xlu0 %v831
        %v833 = vpop.xlane.xlu0 %832
        %v834 = vrcp.pop %v824
        %v835 = vrcp.pop %v827
        %v836 = vrcp.pop %v830
        %v837 = vrcp.pop %v833
        %v838 = vmul.f32 %v824, %v834
        %v839 = vmul.f32 %v827, %v835
        %v840 = vmul.f32 %v830, %v836
        %v841 = vmul.f32 %v833, %v837
        %v842 = vsub.f32 2.0, %v838
        %v843 = vsub.f32 2.0, %v839
        %v844 = vsub.f32 2.0, %v840
        %v845 = vsub.f32 2.0, %v841
        %v846 = vmul.f32 %v834, %v842
        %v847 = vmul.f32 %v835, %v843
        %v848 = vmul.f32 %v836, %v844
        %v849 = vmul.f32 %v837, %v845
        %v850 = vmul.f32 %v815, %v846
        %v851 = vmul.f32 %v817, %v847
        %v852 = vmul.f32 %v819, %v848
        %v853 = vmul.f32 %v821, %v849
        %v854 = vpack.c.bf16 %v850, %v850
        %v855 = vpack.c.bf16 %v851, %v851
        %v856 = vpack.c.bf16 %v852, %v852
        %v857 = vpack.c.bf16 %v853, %v853
        %858 = vrot.lane.b32.xlu0 %v597, 112
        %v859 = vpop.permute.xlu0 %858
        %v861 = vsel %vm604, %v854, 0
        %vm863 = vcmask 1043456
        %v865 = vsel %vm863, %v859, 0
        %867 = vmatprep.subr.bf16.mxu0 0
        %868 = vmatpush1.bf16.msra.mxu0 %v865
        %869 = vmatprep.subr.bf16.mxu0 0
        %870 = vmatpush1.bf16.msra.mxu0 0
        %871 = vmatprep.subr.bf16.mxu0 0
        %872 = vmatpush1.bf16.msra.mxu0 0
        %873 = vmatprep.subr.bf16.mxu0 0
        %874 = vmatpush1.bf16.msra.mxu0 0
        %875 = vmatprep.subr.bf16.mxu0 0
        %876 = vmatpush1.bf16.msra.mxu0 0
        %877 = vmatprep.subr.bf16.mxu0 0
        %878 = vmatpush1.bf16.msra.mxu0 0
        %879 = vmatprep.subr.bf16.mxu0 0
        %880 = vmatpush1.bf16.msra.mxu0 0
        %881 = vmatprep.subr.bf16.mxu0 0
        %882 = vmatpush1.bf16.msra.mxu0 0
        %883 = vmatprep.subr.bf16.mxu0 0
        %884 = vmatpush1.bf16.msra.mxu0 0
        %885 = vmatprep.subr.bf16.mxu0 0
        %886 = vmatpush1.bf16.msra.mxu0 0
        %887 = vmatprep.subr.bf16.mxu0 0
        %888 = vmatpush1.bf16.msra.mxu0 0
        %889 = vmatprep.subr.bf16.mxu0 0
        %890 = vmatpush1.bf16.msra.mxu0 0
        %891 = vmatprep.subr.bf16.mxu0 0
        %892 = vmatpush1.bf16.msra.mxu0 0
        %893 = vmatprep.subr.bf16.mxu0 0
        %894 = vmatpush1.bf16.msra.mxu0 0
        %895 = vmatprep.subr.bf16.mxu0 0
        %896 = vmatpush1.bf16.msra.mxu0 0
        %897 = vmatprep.subr.bf16.mxu0 0
        %898 = vmatpush1.bf16.msra.mxu0 0
        %899 = vmatprep.mubr.bf16.mxu0 0
        %900 = vmatmul.mubr.bf16.gmra.mrb[0].mxu0 %v861
        %v901 = vpop.f32.mrb[0].mxu0
        %v902 = vadd.f32 0.0, %v901
        %v903 = vpop.f32.mrb[0].mxu0
        %v904 = vpop.f32.mrb[0].mxu0
        %v905 = vpop.f32.mrb[0].mxu0
        %906 = vdwg.mxu0
        %907 = vrot.lane.b32.xlu0 %v598, 112
        %v908 = vpop.permute.xlu0 %907
        %v910 = vsel %vm604, %v855, 0
        %v913 = vsel %vm863, %v908, 0
        %915 = vmatprep.subr.bf16.mxu0 0
        %916 = vmatpush1.bf16.msra.mxu0 %v913
        %917 = vmatprep.subr.bf16.mxu0 0
        %918 = vmatpush1.bf16.msra.mxu0 0
        %919 = vmatprep.subr.bf16.mxu0 0
        %920 = vmatpush1.bf16.msra.mxu0 0
        %921 = vmatprep.subr.bf16.mxu0 0
        %922 = vmatpush1.bf16.msra.mxu0 0
        %923 = vmatprep.subr.bf16.mxu0 0
        %924 = vmatpush1.bf16.msra.mxu0 0
        %925 = vmatprep.subr.bf16.mxu0 0
        %926 = vmatpush1.bf16.msra.mxu0 0
        %927 = vmatprep.subr.bf16.mxu0 0
        %928 = vmatpush1.bf16.msra.mxu0 0
        %929 = vmatprep.subr.bf16.mxu0 0
        %930 = vmatpush1.bf16.msra.mxu0 0
        %931 = vmatprep.subr.bf16.mxu0 0
        %932 = vmatpush1.bf16.msra.mxu0 0
        %933 = vmatprep.subr.bf16.mxu0 0
        %934 = vmatpush1.bf16.msra.mxu0 0
        %935 = vmatprep.subr.bf16.mxu0 0
        %936 = vmatpush1.bf16.msra.mxu0 0
        %937 = vmatprep.subr.bf16.mxu0 0
        %938 = vmatpush1.bf16.msra.mxu0 0
        %939 = vmatprep.subr.bf16.mxu0 0
        %940 = vmatpush1.bf16.msra.mxu0 0
        %941 = vmatprep.subr.bf16.mxu0 0
        %942 = vmatpush1.bf16.msra.mxu0 0
        %943 = vmatprep.subr.bf16.mxu0 0
        %944 = vmatpush1.bf16.msra.mxu0 0
        %945 = vmatprep.subr.bf16.mxu0 0
        %946 = vmatpush1.bf16.msra.mxu0 0
        %947 = vmatprep.mubr.bf16.mxu0 0
        %948 = vmatmul.mubr.bf16.gmra.mrb[0].mxu0 %v910
        %v949 = vpop.f32.mrb[0].mxu0
        %v950 = vadd.f32 0.0, %v949
        %v951 = vpop.f32.mrb[0].mxu0
        %v952 = vpop.f32.mrb[0].mxu0
        %v953 = vpop.f32.mrb[0].mxu0
        %954 = vdwg.mxu0
        %955 = vrot.lane.b32.xlu0 %v599, 112
        %v956 = vpop.permute.xlu0 %955
        %v958 = vsel %vm604, %v856, 0
        %v961 = vsel %vm863, %v956, 0
        %963 = vmatprep.subr.bf16.mxu0 0
        %964 = vmatpush1.bf16.msra.mxu0 %v961
        %965 = vmatprep.subr.bf16.mxu0 0
        %966 = vmatpush1.bf16.msra.mxu0 0
        %967 = vmatprep.subr.bf16.mxu0 0
        %968 = vmatpush1.bf16.msra.mxu0 0
        %969 = vmatprep.subr.bf16.mxu0 0
        %970 = vmatpush1.bf16.msra.mxu0 0
        %971 = vmatprep.subr.bf16.mxu0 0
        %972 = vmatpush1.bf16.msra.mxu0 0
        %973 = vmatprep.subr.bf16.mxu0 0
        %974 = vmatpush1.bf16.msra.mxu0 0
        %975 = vmatprep.subr.bf16.mxu0 0
        %976 = vmatpush1.bf16.msra.mxu0 0
        %977 = vmatprep.subr.bf16.mxu0 0
        %978 = vmatpush1.bf16.msra.mxu0 0
        %979 = vmatprep.subr.bf16.mxu0 0
        %980 = vmatpush1.bf16.msra.mxu0 0
        %981 = vmatprep.subr.bf16.mxu0 0
        %982 = vmatpush1.bf16.msra.mxu0 0
        %983 = vmatprep.subr.bf16.mxu0 0
        %984 = vmatpush1.bf16.msra.mxu0 0
        %985 = vmatprep.subr.bf16.mxu0 0
        %986 = vmatpush1.bf16.msra.mxu0 0
        %987 = vmatprep.subr.bf16.mxu0 0
        %988 = vmatpush1.bf16.msra.mxu0 0
        %989 = vmatprep.subr.bf16.mxu0 0
        %990 = vmatpush1.bf16.msra.mxu0 0
        %991 = vmatprep.subr.bf16.mxu0 0
        %992 = vmatpush1.bf16.msra.mxu0 0
        %993 = vmatprep.subr.bf16.mxu0 0
        %994 = vmatpush1.bf16.msra.mxu0 0
        %995 = vmatprep.mubr.bf16.mxu0 0
        %996 = vmatmul.mubr.bf16.gmra.mrb[0].mxu0 %v958
        %v997 = vpop.f32.mrb[0].mxu0
        %v998 = vadd.f32 0.0, %v997
        %v999 = vpop.f32.mrb[0].mxu0
        %v1000 = vpop.f32.mrb[0].mxu0
        %v1001 = vpop.f32.mrb[0].mxu0
        %1002 = vdwg.mxu0
        %1003 = vrot.lane.b32.xlu0 %v600, 112
        %v1004 = vpop.permute.xlu0 %1003
        %v1006 = vsel %vm604, %v857, 0
        %v1009 = vsel %vm863, %v1004, 0
        %1011 = vmatprep.subr.bf16.mxu0 0
        %1012 = vmatpush1.bf16.msra.mxu0 %v1009
        %1013 = vmatprep.subr.bf16.mxu0 0
        %1014 = vmatpush1.bf16.msra.mxu0 0
        %1015 = vmatprep.subr.bf16.mxu0 0
        %1016 = vmatpush1.bf16.msra.mxu0 0
        %1017 = vmatprep.subr.bf16.mxu0 0
        %1018 = vmatpush1.bf16.msra.mxu0 0
        %1019 = vmatprep.subr.bf16.mxu0 0
        %1020 = vmatpush1.bf16.msra.mxu0 0
        %1021 = vmatprep.subr.bf16.mxu0 0
        %1022 = vmatpush1.bf16.msra.mxu0 0
        %1023 = vmatprep.subr.bf16.mxu0 0
        %1024 = vmatpush1.bf16.msra.mxu0 0
        %1025 = vmatprep.subr.bf16.mxu0 0
        %1026 = vmatpush1.bf16.msra.mxu0 0
        %1027 = vmatprep.subr.bf16.mxu0 0
        %1028 = vmatpush1.bf16.msra.mxu0 0
        %1029 = vmatprep.subr.bf16.mxu0 0
        %1030 = vmatpush1.bf16.msra.mxu0 0
        %1031 = vmatprep.subr.bf16.mxu0 0
        %1032 = vmatpush1.bf16.msra.mxu0 0
        %1033 = vmatprep.subr.bf16.mxu0 0
        %1034 = vmatpush1.bf16.msra.mxu0 0
        %1035 = vmatprep.subr.bf16.mxu0 0
        %1036 = vmatpush1.bf16.msra.mxu0 0
        %1037 = vmatprep.subr.bf16.mxu0 0
        %1038 = vmatpush1.bf16.msra.mxu0 0
        %1039 = vmatprep.subr.bf16.mxu0 0
        %1040 = vmatpush1.bf16.msra.mxu0 0
        %1041 = vmatprep.subr.bf16.mxu0 0
        %1042 = vmatpush1.bf16.msra.mxu0 0
        %1043 = vmatprep.mubr.bf16.mxu0 0
        %1044 = vmatmul.mubr.bf16.gmra.mrb[0].mxu0 %v1006
        %v1045 = vpop.f32.mrb[0].mxu0
        %v1046 = vadd.f32 0.0, %v1045
        %v1047 = vpop.f32.mrb[0].mxu0
        %v1048 = vpop.f32.mrb[0].mxu0
        %v1049 = vpop.f32.mrb[0].mxu0
        %1050 = vdwg.mxu0
        %1052 = vrot.lane.b32.xlu0 %v950, 8
        %v1053 = vpop.permute.xlu0 %1052
        %1056 = vrot.lane.b32.xlu0 %v998, 16
        %v1057 = vpop.permute.xlu0 %1056
        %1060 = vrot.lane.b32.xlu0 %v1046, 24
        %v1061 = vpop.permute.xlu0 %1060
        %v1063 = vsel %vm604, %v902, %v1053
        %vm1064 = vcmask 130048
        %v1065 = vsel %vm1064, %v1063, %v1057
        %vm1066 = vcmask 195584
        %v1067 = vsel %vm1066, %v1065, %v1061
        %v1068 = vpack.c.bf16 %v1067, %v1067
        %v1069 = vld [vmem:[%s5] sm:$0xf]
        %v1070 = vld [vmem:[%s5 + $0x4] sm:$0xf]
        %v1071 = vld [vmem:[%s5 + $0x8] sm:$0xf]
        %v1072 = vld [vmem:[%s5 + $0xc] sm:$0xf]
        %v1073 = vld [vmem:[#allocation5] sm:$0x1]
        %v1075 = vlaneseq
        %v1076 = vshrl.u32 %v1075, 7
        %v1077 = vsub.s32 0, %v1076
        %v1078 = vrot.slane %v1073, %v1077
        %v1084 = vunpack.c.l.b16 %v1069
        %v1085 = vunpack.c.l.b16 %v1070
        %v1086 = vunpack.c.l.b16 %v1071
        %v1087 = vunpack.c.l.b16 %v1072
        %v1088 = vpack.c.b16 %v1085, %v1084
        %v1089 = vpack.c.b16 %v1087, %v1086
        %v1093 = vsel %vm491, %v1068, 0
        %1095 = vmatprep.subr.bf16.mxu0 0
        %1096 = vmatpush1.bf16.msra.mxu0 %v1088
        %1097 = vmatprep.subr.bf16.mxu0 0
        %1098 = vmatpush1.bf16.msra.mxu0 %v1089
        %1099 = vmatprep.subr.bf16.mxu0 0
        %1100 = vmatpush1.bf16.msra.mxu0 0
        %1101 = vmatprep.subr.bf16.mxu0 0
        %1102 = vmatpush1.bf16.msra.mxu0 0
        %1103 = vmatprep.subr.bf16.mxu0 0
        %1104 = vmatpush1.bf16.msra.mxu0 0
        %1105 = vmatprep.subr.bf16.mxu0 0
        %1106 = vmatpush1.bf16.msra.mxu0 0
        %1107 = vmatprep.subr.bf16.mxu0 0
        %1108 = vmatpush1.bf16.msra.mxu0 0
        %1109 = vmatprep.subr.bf16.mxu0 0
        %1110 = vmatpush1.bf16.msra.mxu0 0
        %1111 = vmatprep.subr.bf16.mxu0 0
        %1112 = vmatpush1.bf16.msra.mxu0 0
        %1113 = vmatprep.subr.bf16.mxu0 0
        %1114 = vmatpush1.bf16.msra.mxu0 0
        %1115 = vmatprep.subr.bf16.mxu0 0
        %1116 = vmatpush1.bf16.msra.mxu0 0
        %1117 = vmatprep.subr.bf16.mxu0 0
        %1118 = vmatpush1.bf16.msra.mxu0 0
        %1119 = vmatprep.subr.bf16.mxu0 0
        %1120 = vmatpush1.bf16.msra.mxu0 0
        %1121 = vmatprep.subr.bf16.mxu0 0
        %1122 = vmatpush1.bf16.msra.mxu0 0
        %1123 = vmatprep.subr.bf16.mxu0 0
        %1124 = vmatpush1.bf16.msra.mxu0 0
        %1125 = vmatprep.subr.bf16.mxu0 0
        %1126 = vmatpush1.bf16.msra.mxu0 0
        %1127 = vmatprep.mubr.bf16.mxu0 0
        %1128 = vmatmul.mubr.bf16.gmra.mrb[0].mxu0 %v1093
        %v1129 = vpop.f32.mrb[0].mxu0
        %v1130 = vadd.f32 %v1078, %v1129
        %v1131 = vpop.f32.mrb[0].mxu0
        %v1132 = vpop.f32.mrb[0].mxu0
        %v1133 = vpop.f32.mrb[0].mxu0
        %1134 = vdwg.mxu0
        %v1135 = vadd.f32 %v488, %v1130
        %v1136 = vld [vmem:[#allocation7] sm:$0x1]
        %v1137 = vld [vmem:[#allocation8] sm:$0x1]
        %v1138 = vsel %vm491, %v1135, 0.0
        %1139 = vadd.xlane.f32.xlu0 %v1138
        %v1140 = vpop.xlane.xlu0 %1139
        %v1141 = vmul.f32 %v1140, %v495
        %v1142 = vsub.f32 %v1135, %v1141
        %v1143 = vmul.f32 %v1142, %v1142
        %v1144 = vsel %vm491, %v1143, 0.0
        %1145 = vadd.xlane.f32.xlu0 %v1144
        %v1146 = vpop.xlane.xlu0 %1145
        %v1147 = vmul.f32 %v1146, %v495
        %v1148 = vadd.f32 %v1147, 1e-05
        %v1149 = vrsqrt.pop %v1148
        %v1150 = vmul.f32 %v1142, %v1149
        %v1152 = vlaneseq
        %v1153 = vshrl.u32 %v1152, 7
        %v1154 = vsub.s32 0, %v1153
        %v1155 = vrot.slane %v1136, %v1154
        %v1157 = vmul.f32 %v1150, %v1155
        %v1159 = vlaneseq
        %v1160 = vshrl.u32 %v1159, 7
        %v1161 = vsub.s32 0, %v1160
        %v1162 = vrot.slane %v1137, %v1161
        %v1164 = vadd.f32 %v1157, %v1162
        %v1165 = vpack.c.bf16 %v1164, %v1164
        %v1166 = vld [vmem:[%s9] sm:$0xf]
        %v1167 = vld [vmem:[%s9 + $0x4] sm:$0xf]
        %v1168 = vld [vmem:[%s9 + $0x8] sm:$0xf]
        %v1169 = vld [vmem:[%s9 + $0xc] sm:$0xf]
        %v1170 = vld [vmem:[%s10] sm:$0x1]
        %v1172 = vlaneseq
        %v1173 = vshrl.u32 %v1172, 7
        %v1174 = vsub.s32 0, %v1173
        %v1175 = vrot.slane %v1170, %v1174
        %v1181 = vunpack.c.l.b16 %v1166
        %v1182 = vunpack.c.l.b16 %v1167
        %v1183 = vunpack.c.l.b16 %v1168
        %v1184 = vunpack.c.l.b16 %v1169
        %v1185 = vpack.c.b16 %v1182, %v1181
        %v1186 = vpack.c.b16 %v1184, %v1183
        %v1190 = vsel %vm491, %v1165, 0
        %1192 = vmatprep.subr.bf16.mxu0 0
        %1193 = vmatpush1.bf16.msra.mxu0 %v1185
        %1194 = vmatprep.subr.bf16.mxu0 0
        %1195 = vmatpush1.bf16.msra.mxu0 %v1186
        %1196 = vmatprep.subr.bf16.mxu0 0
        %1197 = vmatpush1.bf16.msra.mxu0 0
        %1198 = vmatprep.subr.bf16.mxu0 0
        %1199 = vmatpush1.bf16.msra.mxu0 0
        %1200 = vmatprep.subr.bf16.mxu0 0
        %1201 = vmatpush1.bf16.msra.mxu0 0
        %1202 = vmatprep.subr.bf16.mxu0 0
        %1203 = vmatpush1.bf16.msra.mxu0 0
        %1204 = vmatprep.subr.bf16.mxu0 0
        %1205 = vmatpush1.bf16.msra.mxu0 0
        %1206 = vmatprep.subr.bf16.mxu0 0
        %1207 = vmatpush1.bf16.msra.mxu0 0
        %1208 = vmatprep.subr.bf16.mxu0 0
        %1209 = vmatpush1.bf16.msra.mxu0 0
        %1210 = vmatprep.subr.bf16.mxu0 0
        %1211 = vmatpush1.bf16.msra.mxu0 0
        %1212 = vmatprep.subr.bf16.mxu0 0
        %1213 = vmatpush1.bf16.msra.mxu0 0
        %1214 = vmatprep.subr.bf16.mxu0 0
        %1215 = vmatpush1.bf16.msra.mxu0 0
        %1216 = vmatprep.subr.bf16.mxu0 0
        %1217 = vmatpush1.bf16.msra.mxu0 0
        %1218 = vmatprep.subr.bf16.mxu0 0
        %1219 = vmatpush1.bf16.msra.mxu0 0
        %1220 = vmatprep.subr.bf16.mxu0 0
        %1221 = vmatpush1.bf16.msra.mxu0 0
        %1222 = vmatprep.subr.bf16.mxu0 0
        %1223 = vmatpush1.bf16.msra.mxu0 0
        %1224 = vmatprep.mubr.bf16.mxu0 0
        %1225 = vmatmul.mubr.bf16.gmra.mrb[0].mxu0 %v1190
        %v1226 = vpop.f32.mrb[0].mxu0
        %v1227 = vadd.f32 %v1175, %v1226
        %v1228 = vpop.f32.mrb[0].mxu0
        %v1229 = vpop.f32.mrb[0].mxu0
        %v1230 = vpop.f32.mrb[0].mxu0
        %1231 = vdwg.mxu0
        %v1232 = vmul.f32 %v1227, 0.5
        %v1233 = vmul.f32 %v1227, 0.70710677
        %vm1234 = vcmp.ge.f32.partialorder %v1233, 0.0
        %v1235 = vsel %vm1234, 1.0, -1.0
        %v1236 = vand.u32 2147483647, %v1233
        %v1237 = vmul.f32 %v1236, 0.3275911
        %v1238 = vadd.f32 %v1237, 1.0
        %v1239 = vrcp.pop %v1238
        %v1240 = vmul.f32 %v1238, %v1239
        %v1241 = vsub.f32 2.0, %v1240
        %v1242 = vmul.f32 %v1239, %v1241
        %v1243 = vmul.f32 %v1242, 1.0614054
        %v1244 = vadd.f32 %v1243, -1.4531521
        %v1245 = vmul.f32 %v1244, %v1242
        %v1246 = vadd.f32 %v1245, 1.4214138
        %v1247 = vmul.f32 %v1246, %v1242
        %v1248 = vadd.f32 %v1247, -0.28449672
        %v1249 = vmul.f32 %v1248, %v1242
        %v1250 = vadd.f32 %v1249, 0.2548296
        %v1251 = vmul.f32 %v1250, %v1242
        %v1252 = vsub.f32 0.0, %v1236
        %v1253 = vmul.f32 %v1252, %v1236
        %v1254 = vmul.f32 %v1253, 1.442695
        %v1255 = vpow.pop %v1254
        %v1256 = vmul.f32 %v1251, %v1255
        %v1257 = vsub.f32 1.0, %v1256
        %v1258 = vmul.f32 %v1235, %v1257
        %v1259 = vadd.f32 %v1258, 1.0
        %v1260 = vmul.f32 %v1232, %v1259
        %v1261 = vpack.c.bf16 %v1260, %v1260
        %v1262 = vld [vmem:[%s11] sm:$0xf]
        %v1263 = vld [vmem:[%s11 + $0x4] sm:$0xf]
        %v1264 = vld [vmem:[%s11 + $0x8] sm:$0xf]
        %v1265 = vld [vmem:[%s11 + $0xc] sm:$0xf]
        %v1266 = vld [vmem:[%s11 + $0x10] sm:$0xf]
        %v1267 = vld [vmem:[%s11 + $0x14] sm:$0xf]
        %v1268 = vld [vmem:[%s11 + $0x18] sm:$0xf]
        %v1269 = vld [vmem:[%s11 + $0x1c] sm:$0xf]
        %v1270 = vld [vmem:[%s12] sm:$0x1]
        %v1272 = vlaneseq
        %v1273 = vshrl.u32 %v1272, 7
        %v1274 = vsub.s32 0, %v1273
        %v1275 = vrot.slane %v1270, %v1274
        %v1285 = vunpack.c.l.b16 %v1262
        %v1286 = vunpack.c.l.b16 %v1263
        %v1287 = vunpack.c.l.b16 %v1264
        %v1288 = vunpack.c.l.b16 %v1265
        %v1289 = vunpack.c.l.b16 %v1266
        %v1290 = vunpack.c.l.b16 %v1267
        %v1291 = vunpack.c.l.b16 %v1268
        %v1292 = vunpack.c.l.b16 %v1269
        %v1293 = vpack.c.b16 %v1286, %v1285
        %v1294 = vpack.c.b16 %v1288, %v1287
        %v1295 = vpack.c.b16 %v1290, %v1289
        %v1296 = vpack.c.b16 %v1292, %v1291
        %vm1301 = vcmask 523264
        %v1303 = vsel %vm1301, %v1261, 0
        %1305 = vmatprep.subr.bf16.mxu0 0
        %1306 = vmatpush1.bf16.msra.mxu0 %v1293
        %1307 = vmatprep.subr.bf16.mxu0 0
        %1308 = vmatpush1.bf16.msra.mxu0 %v1294
        %1309 = vmatprep.subr.bf16.mxu0 0
        %1310 = vmatpush1.bf16.msra.mxu0 %v1295
        %1311 = vmatprep.subr.bf16.mxu0 0
        %1312 = vmatpush1.bf16.msra.mxu0 %v1296
        %1313 = vmatprep.subr.bf16.mxu0 0
        %1314 = vmatpush1.bf16.msra.mxu0 0
        %1315 = vmatprep.subr.bf16.mxu0 0
        %1316 = vmatpush1.bf16.msra.mxu0 0
        %1317 = vmatprep.subr.bf16.mxu0 0
        %1318 = vmatpush1.bf16.msra.mxu0 0
        %1319 = vmatprep.subr.bf16.mxu0 0
        %1320 = vmatpush1.bf16.msra.mxu0 0
        %1321 = vmatprep.subr.bf16.mxu0 0
        %1322 = vmatpush1.bf16.msra.mxu0 0
        %1323 = vmatprep.subr.bf16.mxu0 0
        %1324 = vmatpush1.bf16.msra.mxu0 0
        %1325 = vmatprep.subr.bf16.mxu0 0
        %1326 = vmatpush1.bf16.msra.mxu0 0
        %1327 = vmatprep.subr.bf16.mxu0 0
        %1328 = vmatpush1.bf16.msra.mxu0 0
        %1329 = vmatprep.subr.bf16.mxu0 0
        %1330 = vmatpush1.bf16.msra.mxu0 0
        %1331 = vmatprep.subr.bf16.mxu0 0
        %1332 = vmatpush1.bf16.msra.mxu0 0
        %1333 = vmatprep.subr.bf16.mxu0 0
        %1334 = vmatpush1.bf16.msra.mxu0 0
        %1335 = vmatprep.subr.bf16.mxu0 0
        %1336 = vmatpush1.bf16.msra.mxu0 0
        %1337 = vmatprep.mubr.bf16.mxu0 0
        %1338 = vmatmul.mubr.bf16.gmra.mrb[0].mxu0 %v1303
        %v1339 = vpop.f32.mrb[0].mxu0
        %v1340 = vadd.f32 %v1275, %v1339
        %v1341 = vpop.f32.mrb[0].mxu0
        %v1342 = vpop.f32.mrb[0].mxu0
        %v1343 = vpop.f32.mrb[0].mxu0
        %1344 = vdwg.mxu0
        %v1345 = vadd.f32 %v1135, %v1340
        %1346 = vst.msk [vmem:[%s482] sm:$0xff] %vm491, %v1345
        %s1347 = sand.u32 %s316, 1
        %s1348 = scalar_lea.sflag [#allocation4], %s1347
        %s1349 = sand.u32 %s316, 1
        %s1350 = smul.addr %s1349, 8
        %s1351 = scalar_lea.vmem [#allocation10], %s1350
        // Predicated region
        $region89: #{tpu_custom_call.1} parent=71 // pred_check
          %p1352 = pneg %p326
        $region90: #{tpu_custom_call.1} parent=71 // pred_check_branch
          %1354 = sbr.rel (%p1352) target = $region92
        $region91: #{tpu_custom_call.1} parent=71 // pred_region
          %s1356 = ssub.s32 128, 128
          %1357 = vsyncadd %s1348, %s1356
          %s1358 = smul.addr %s30, 128
          %s1359 = scalar_lea.hbm %s13, %s1358
          %s1361 = sshll.u32 %s1351, 4
          %s1362 = int_to_ptr.vmem [resolvable:$true] %s1361
          %1364 = dma.vmem_to_hbm [thread:$0]  %s1362, 128, %s1359, %s1348
        $region92: #{tpu_custom_call.1} parent=71 // pred_fallthru
          _
      $region72: #{tpu_custom_call.1} parent=5 // pred_fallthru
        _
      %p1365 = scmp.le.s32.totalorder 2, %s25
      // Predicated region
      $region93: #{tpu_custom_call.1} parent=5 // pred_check
        %p1366 = pneg %p1365
      $region94: #{tpu_custom_call.1} parent=5 // pred_check_branch
        %1368 = sbr.rel (%p1366) target = $region96
      $region95: #{tpu_custom_call.1} parent=5 // pred_region
        %s1369 = ssub.s32 %s25, 2
        // Predicated region
        $region97: #{tpu_custom_call.1} parent=95 // pred_check
          %p1370 = pneg %p332
        $region98: #{tpu_custom_call.1} parent=95 // pred_check_branch
          %1372 = sbr.rel (%p1370) target = $region100
        $region99: #{tpu_custom_call.1} parent=95 // pred_region
          %s1373 = sand.u32 %s317, 1
          %s1374 = scalar_lea.sflag [#allocation4], %s1373
          %s1375 = sand.u32 %s317, 1
          %s1376 = smul.addr %s1375, 8
          %s1377 = scalar_lea.vmem [#allocation10], %s1376
          %1378 = dma.done %s1374, 128
        $region100: #{tpu_custom_call.1} parent=95 // pred_fallthru
          _
      $region96: #{tpu_custom_call.1} parent=5 // pred_fallthru
        _
    $region6: #{tpu_custom_call.1} parent=1 // loop_footer
      %s29 = sadd.s32 1, %s25
    $region7: #{tpu_custom_call.1} parent=1 // loop_footer_branch
      %24 = sbr.rel target = $region3
    $region8: #{tpu_custom_call.1} parent=1 // loop_exit
      _
    %1379 = vsyncpa [#allocation3], 1
    %s1380 = scalar_lea.sflag [#allocation3], 1
    %1381 = vsyncpa %s1380, 1
    %1382 = vsyncpa [#allocation6], 1
    %1383 = vsyncpa [#allocation9], 1
    %1384 = vsyncpa [#allocation4], 1
    %s1385 = scalar_lea.sflag [#allocation4], 1
    %1386 = vsyncpa %s1385, 1

// kernel: tpu_custom_call.1
$region0: #{tpu_custom_call.1}
  #allocation0 [shape = 'u32[]', space=smem, size = 0x4, offset = 0x4, fixed_abs, tag = 'smem constant byte address 0x4 - core index']
  #allocation1 [shape = 'u32[144,128]{1,0:T(1,128)}', space=vmem, size = 0x12000, scoped, tag = 'internal scratch']
  %s0 = inlined_call_operand.vmem [shape: f32[2,8,32], index: 0, kind: input, shape index: {}]
  %s1 = inlined_call_operand.vmem [shape: f32[1,32], index: 1, kind: input, shape index: {}]
  %s2 = inlined_call_operand.vmem [shape: f32[1,32], index: 2, kind: input, shape index: {}]
  %s3 = inlined_call_operand.vmem [shape: bf16[32,96], index: 3, kind: input, shape index: {}]
  %s4 = inlined_call_operand.hbm [shape: f32[1,96], index: 4, kind: input, shape index: {}]
  %s5 = inlined_call_operand.vmem [shape: bf16[32,32], index: 5, kind: input, shape index: {}]
  %s6 = inlined_call_operand.hbm [shape: f32[1,32], index: 6, kind: input, shape index: {}]
  %s7 = inlined_call_operand.hbm [shape: f32[1,32], index: 7, kind: input, shape index: {}]
  %s8 = inlined_call_operand.hbm [shape: f32[1,32], index: 8, kind: input, shape index: {}]
  %s9 = inlined_call_operand.vmem [shape: bf16[32,64], index: 9, kind: input, shape index: {}]
  %s10 = inlined_call_operand.vmem [shape: f32[1,64], index: 10, kind: input, shape index: {}]
  %s11 = inlined_call_operand.vmem [shape: bf16[64,32], index: 11, kind: input, shape index: {}]
  %s12 = inlined_call_operand.vmem [shape: f32[1,32], index: 12, kind: input, shape index: {}]
  %s13 = inlined_call_operand.hbm [shape: f32[2,8,32], index: 13, kind: output, shape index: {}]
  %s14 = sld [smem:[#allocation0]]
  $region101: #{tpu_custom_call.1} parent=0
    _
  %s16 = ssub.s32 1, %s14
  %s17 = scalar_select 0, %s16, %s14
  $region1: #{tpu_custom_call.1} parent=0
    #allocation2 [shape = 'u8[512]{0}', space=vmem, size = 0x400, scoped, tag = 'input window, operand 4, single buffered']
    #allocation3 [shape = 's32[2]{0}', space=sflag, size = 0x8, scoped, tag = 'scoped memory for tpu_custom_call.1']
    #allocation4 [shape = 's32[2]{0}', space=sflag, size = 0x8, scoped, tag = 'scoped memory for tpu_custom_call.1']
    #allocation5 [shape = 'u8[512]{0}', space=vmem, size = 0x400, scoped, tag = 'input window, operand 6, single buffered']
    #allocation6 [shape = 's32[1]{0}', space=sflag, size = 0x4, scoped, tag = 'scoped memory for tpu_custom_call.1']
    #allocation7 [shape = 'u8[512]{0}', space=vmem, size = 0x400, scoped, tag = 'input window, operand 7, single buffered']
    #allocation8 [shape = 'u8[512]{0}', space=vmem, size = 0x400, scoped, tag = 'input window, operand 8, single buffered']
    #allocation9 [shape = 's32[1]{0}', space=sflag, size = 0x4, scoped, tag = 'scoped memory for tpu_custom_call.1']
    #allocation10 [shape = 'u8[8192]{0}', space=vmem, size = 0x2000, scoped, tag = 'output window, operand 0']
    %18 = vsyncpa [#allocation3], 0
    %19 = vsyncpa [#allocation6], 0
    %20 = vsyncpa [#allocation9], 0
    %21 = vsyncpa [#allocation4], 0
    %s22 = scalar_lea.sflag [#allocation4], 1
    %23 = vsyncpa %s22, 0
    loop: start=0, step=1, limit=4
    $region2: #{tpu_custom_call.1} parent=1 // loop_pre_header
      _
    $region3: #{tpu_custom_call.1} parent=1 // loop_header
      %s25 = sphi 0, %s29
      %p26 = scmp.ge.s32.totalorder %s25, 4
      %s35 = sphi 0, %s37
      %s38 = sphi 0, %s35
      %s39 = sphi 0, %s38
      %s55 = sphi 0, %s39
      %s59 = sphi 0, %s59
      %s61 = sphi 0, %s59
      %s62 = sphi 0, %s61
      %s76 = sphi 0, %s62
      %s80 = sphi 0, %s80
      %s82 = sphi 0, %s80
      %s83 = sphi 0, %s82
      %s97 = sphi 0, %s83
      %s101 = sphi 0, %s101
      %s103 = sphi 0, %s101
      %s104 = sphi 0, %s103
      %s118 = sphi 0, %s104
      %s122 = sphi 0, %s122
      %s124 = sphi 0, %s122
      %s125 = sphi 0, %s124
      %s139 = sphi 0, %s125
      %s143 = sphi 0, %s143
      %s145 = sphi 0, %s143
      %s146 = sphi 0, %s145
      %s160 = sphi 0, %s146
      %s164 = sphi 0, %s164
      %s166 = sphi 0, %s164
      %s167 = sphi 0, %s166
      %s181 = sphi 0, %s167
      %s185 = sphi 0, %s185
      %s187 = sphi 0, %s185
      %s188 = sphi 0, %s187
      %s202 = sphi 0, %s188
      %s206 = sphi 0, %s206
      %s208 = sphi 0, %s206
      %s209 = sphi 0, %s208
      %s223 = sphi 0, %s209
      %s227 = sphi 0, %s227
      %s229 = sphi 0, %s227
      %s230 = sphi 0, %s229
      %s244 = sphi 0, %s230
      %s248 = sphi 0, %s248
      %s250 = sphi 0, %s248
      %s251 = sphi 0, %s250
      %s265 = sphi 0, %s251
      %s269 = sphi 0, %s269
      %s271 = sphi 0, %s269
      %s272 = sphi 0, %s271
      %s286 = sphi 0, %s272
      %s290 = sphi 0, %s290
      %s292 = sphi 0, %s290
      %s293 = sphi 0, %s292
      %s307 = sphi 0, %s293
      %s313 = sphi 0, %s315
      %s316 = sphi 0, %s313
      %s317 = sphi 0, %s316
      %s333 = sphi 0, %s317
    $region4: #{tpu_custom_call.1} parent=1 // loop_header_branch
      %28 = sbr.rel (%p26) target = $region8
    $region5: #{tpu_custom_call.1} parent=1 // loop_body
      %s30 = ssub.s32 %s25, 1
      %s31 = ssub.s32 %s25, 2
      %s32 = sadd.s32 %s25, 1
      %s33 = ssub.s32 %s25, %s32
      %p34 = scmp.eq.s32.totalorder %s33, 0
      %s36 = sadd.s32 %s35, 1
      %s37 = scalar_select %p34, %s35, %s36
      %p40 = pneg %p34
      %p41 = scmp.eq.s32.totalorder %s25, 1
      %p42 = por %p40, %p41
      %p43 = scmp.ne.s32.totalorder %s35, %s38
      %p44 = scmp.eq.s32.totalorder %s25, 0
      %p45 = por %p43, %p44
      %p46 = scmp.ne.s32.totalorder %s35, %s38
      %p47 = scmp.eq.s32.totalorder %s30, 1
      %p48 = por %p46, %p47
      %p49 = scmp.ne.s32.totalorder %s38, %s39
      %p50 = scmp.eq.s32.totalorder %s30, 0
      %p51 = por %p49, %p50
      %p52 = scmp.ne.s32.totalorder %s38, %s39
      %p53 = scmp.eq.s32.totalorder %s31, 1
      %p54 = por %p52, %p53
      %p56 = scmp.ne.s32.totalorder %s39, %s55
      %p57 = scmp.eq.s32.totalorder %s31, 0
      %p58 = por %p56, %p57
      %s60 = sadd.s32 %s59, 1
      %p63 = scmp.eq.s32.totalorder %s25, 1
      %p64 = scmp.ne.s32.totalorder %s59, %s61
      %p65 = scmp.eq.s32.totalorder %s25, 0
      %p66 = por %p64, %p65
      %p67 = scmp.ne.s32.totalorder %s59, %s61
      %p68 = scmp.eq.s32.totalorder %s30, 1
      %p69 = por %p67, %p68
      %p70 = scmp.ne.s32.totalorder %s61, %s62
      %p71 = scmp.eq.s32.totalorder %s30, 0
      %p72 = por %p70, %p71
      %p73 = scmp.ne.s32.totalorder %s61, %s62
      %p74 = scmp.eq.s32.totalorder %s31, 1
      %p75 = por %p73, %p74
      %p77 = scmp.ne.s32.totalorder %s62, %s76
      %p78 = scmp.eq.s32.totalorder %s31, 0
      %p79 = por %p77, %p78
      %s81 = sadd.s32 %s80, 1
      %p84 = scmp.eq.s32.totalorder %s25, 1
      %p85 = scmp.ne.s32.totalorder %s80, %s82
      %p86 = scmp.eq.s32.totalorder %s25, 0
      %p87 = por %p85, %p86
      %p88 = scmp.ne.s32.totalorder %s80, %s82
      %p89 = scmp.eq.s32.totalorder %s30, 1
      %p90 = por %p88, %p89
      %p91 = scmp.ne.s32.totalorder %s82, %s83
      %p92 = scmp.eq.s32.totalorder %s30, 0
      %p93 = por %p91, %p92
      %p94 = scmp.ne.s32.totalorder %s82, %s83
      %p95 = scmp.eq.s32.totalorder %s31, 1
      %p96 = por %p94, %p95
      %p98 = scmp.ne.s32.totalorder %s83, %s97
      %p99 = scmp.eq.s32.totalorder %s31, 0
      %p100 = por %p98, %p99
      %s102 = sadd.s32 %s101, 1
      %p105 = scmp.eq.s32.totalorder %s25, 1
      %p106 = scmp.ne.s32.totalorder %s101, %s103
      %p107 = scmp.eq.s32.totalorder %s25, 0
      %p108 = por %p106, %p107
      %p109 = scmp.ne.s32.totalorder %s101, %s103
      %p110 = scmp.eq.s32.totalorder %s30, 1
      %p111 = por %p109, %p110
      %p112 = scmp.ne.s32.totalorder %s103, %s104
      %p113 = scmp.eq.s32.totalorder %s30, 0
      %p114 = por %p112, %p113
      %p115 = scmp.ne.s32.totalorder %s103, %s104
      %p116 = scmp.eq.s32.totalorder %s31, 1
      %p117 = por %p115, %p116
      %p119 = scmp.ne.s32.totalorder %s104, %s118
      %p120 = scmp.eq.s32.totalorder %s31, 0
      %p121 = por %p119, %p120
      %s123 = sadd.s32 %s122, 1
      %p126 = scmp.eq.s32.totalorder %s25, 1
      %p127 = scmp.ne.s32.totalorder %s122, %s124
      %p128 = scmp.eq.s32.totalorder %s25, 0
      %p129 = por %p127, %p128
      %p130 = scmp.ne.s32.totalorder %s122, %s124
      %p131 = scmp.eq.s32.totalorder %s30, 1
      %p132 = por %p130, %p131
      %p133 = scmp.ne.s32.totalorder %s124, %s125
      %p134 = scmp.eq.s32.totalorder %s30, 0
      %p135 = por %p133, %p134
      %p136 = scmp.ne.s32.totalorder %s124, %s125
      %p137 = scmp.eq.s32.totalorder %s31, 1
      %p138 = por %p136, %p137
      %p140 = scmp.ne.s32.totalorder %s125, %s139
      %p141 = scmp.eq.s32.totalorder %s31, 0
      %p142 = por %p140, %p141
      %s144 = sadd.s32 %s143, 1
      %p147 = scmp.eq.s32.totalorder %s25, 1
      %p148 = scmp.ne.s32.totalorder %s143, %s145
      %p149 = scmp.eq.s32.totalorder %s25, 0
      %p150 = por %p148, %p149
      %p151 = scmp.ne.s32.totalorder %s143, %s145
      %p152 = scmp.eq.s32.totalorder %s30, 1
      %p153 = por %p151, %p152
      %p154 = scmp.ne.s32.totalorder %s145, %s146
      %p155 = scmp.eq.s32.totalorder %s30, 0
      %p156 = por %p154, %p155
      %p157 = scmp.ne.s32.totalorder %s145, %s146
      %p158 = scmp.eq.s32.totalorder %s31, 1
      %p159 = por %p157, %p158
      %p161 = scmp.ne.s32.totalorder %s146, %s160
      %p162 = scmp.eq.s32.totalorder %s31, 0
      %p163 = por %p161, %p162
      %s165 = sadd.s32 %s164, 1
      %p168 = scmp.eq.s32.totalorder %s25, 1
      %p169 = scmp.ne.s32.totalorder %s164, %s166
      %p170 = scmp.eq.s32.totalorder %s25, 0
      %p171 = por %p169, %p170
      %p172 = scmp.ne.s32.totalorder %s164, %s166
      %p173 = scmp.eq.s32.totalorder %s30, 1
      %p174 = por %p172, %p173
      %p175 = scmp.ne.s32.totalorder %s166, %s167
      %p176 = scmp.eq.s32.totalorder %s30, 0
      %p177 = por %p175, %p176
      %p178 = scmp.ne.s32.totalorder %s166, %s167
      %p179 = scmp.eq.s32.totalorder %s31, 1
      %p180 = por %p178, %p179
      %p182 = scmp.ne.s32.totalorder %s167, %s181
      %p183 = scmp.eq.s32.totalorder %s31, 0
      %p184 = por %p182, %p183
      %s186 = sadd.s32 %s185, 1
      %p189 = scmp.eq.s32.totalorder %s25, 1
      %p190 = scmp.ne.s32.totalorder %s185, %s187
      %p191 = scmp.eq.s32.totalorder %s25, 0
      %p192 = por %p190, %p191
      %p193 = scmp.ne.s32.totalorder %s185, %s187
      %p194 = scmp.eq.s32.totalorder %s30, 1
      %p195 = por %p193, %p194
      %p196 = scmp.ne.s32.totalorder %s187, %s188
      %p197 = scmp.eq.s32.totalorder %s30, 0
      %p198 = por %p196, %p197
      %p199 = scmp.ne.s32.totalorder %s187, %s188
      %p200 = scmp.eq.s32.totalorder %s31, 1
      %p201 = por %p199, %p200
      %p203 = scmp.ne.s32.totalorder %s188, %s202
      %p204 = scmp.eq.s32.totalorder %s31, 0
      %p205 = por %p203, %p204
      %s207 = sadd.s32 %s206, 1
      %p210 = scmp.eq.s32.totalorder %s25, 1
      %p211 = scmp.ne.s32.totalorder %s206, %s208
      %p212 = scmp.eq.s32.totalorder %s25, 0
      %p213 = por %p211, %p212
      %p214 = scmp.ne.s32.totalorder %s206, %s208
      %p215 = scmp.eq.s32.totalorder %s30, 1
      %p216 = por %p214, %p215
      %p217 = scmp.ne.s32.totalorder %s208, %s209
      %p218 = scmp.eq.s32.totalorder %s30, 0
      %p219 = por %p217, %p218
      %p220 = scmp.ne.s32.totalorder %s208, %s209
      %p221 = scmp.eq.s32.totalorder %s31, 1
      %p222 = por %p220, %p221
      %p224 = scmp.ne.s32.totalorder %s209, %s223
      %p225 = scmp.eq.s32.totalorder %s31, 0
      %p226 = por %p224, %p225
      %s228 = sadd.s32 %s227, 1
      %p231 = scmp.eq.s32.totalorder %s25, 1
      %p232 = scmp.ne.s32.totalorder %s227, %s229
      %p233 = scmp.eq.s32.totalorder %s25, 0
      %p234 = por %p232, %p233
      %p235 = scmp.ne.s32.totalorder %s227, %s229
      %p236 = scmp.eq.s32.totalorder %s30, 1
      %p237 = por %p235, %p236
      %p238 = scmp.ne.s32.totalorder %s229, %s230
      %p239 = scmp.eq.s32.totalorder %s30, 0
      %p240 = por %p238, %p239
      %p241 = scmp.ne.s32.totalorder %s229, %s230
      %p242 = scmp.eq.s32.totalorder %s31, 1
      %p243 = por %p241, %p242
      %p245 = scmp.ne.s32.totalorder %s230, %s244
      %p246 = scmp.eq.s32.totalorder %s31, 0
      %p247 = por %p245, %p246
      %s249 = sadd.s32 %s248, 1
      %p252 = scmp.eq.s32.totalorder %s25, 1
      %p253 = scmp.ne.s32.totalorder %s248, %s250
      %p254 = scmp.eq.s32.totalorder %s25, 0
      %p255 = por %p253, %p254
      %p256 = scmp.ne.s32.totalorder %s248, %s250
      %p257 = scmp.eq.s32.totalorder %s30, 1
      %p258 = por %p256, %p257
      %p259 = scmp.ne.s32.totalorder %s250, %s251
      %p260 = scmp.eq.s32.totalorder %s30, 0
      %p261 = por %p259, %p260
      %p262 = scmp.ne.s32.totalorder %s250, %s251
      %p263 = scmp.eq.s32.totalorder %s31, 1
      %p264 = por %p262, %p263
      %p266 = scmp.ne.s32.totalorder %s251, %s265
      %p267 = scmp.eq.s32.totalorder %s31, 0
      %p268 = por %p266, %p267
      %s270 = sadd.s32 %s269, 1
      %p273 = scmp.eq.s32.totalorder %s25, 1
      %p274 = scmp.ne.s32.totalorder %s269, %s271
      %p275 = scmp.eq.s32.totalorder %s25, 0
      %p276 = por %p274, %p275
      %p277 = scmp.ne.s32.totalorder %s269, %s271
      %p278 = scmp.eq.s32.totalorder %s30, 1
      %p279 = por %p277, %p278
      %p280 = scmp.ne.s32.totalorder %s271, %s272
      %p281 = scmp.eq.s32.totalorder %s30, 0
      %p282 = por %p280, %p281
      %p283 = scmp.ne.s32.totalorder %s271, %s272
      %p284 = scmp.eq.s32.totalorder %s31, 1
      %p285 = por %p283, %p284
      %p287 = scmp.ne.s32.totalorder %s272, %s286
      %p288 = scmp.eq.s32.totalorder %s31, 0
      %p289 = por %p287, %p288
      %s291 = sadd.s32 %s290, 1
      %p294 = scmp.eq.s32.totalorder %s25, 1
      %p295 = scmp.ne.s32.totalorder %s290, %s292
      %p296 = scmp.eq.s32.totalorder %s25, 0
      %p297 = por %p295, %p296
      %p298 = scmp.ne.s32.totalorder %s290, %s292
      %p299 = scmp.eq.s32.totalorder %s30, 1
      %p300 = por %p298, %p299
      %p301 = scmp.ne.s32.totalorder %s292, %s293
      %p302 = scmp.eq.s32.totalorder %s30, 0
      %p303 = por %p301, %p302
      %p304 = scmp.ne.s32.totalorder %s292, %s293
      %p305 = scmp.eq.s32.totalorder %s31, 1
      %p306 = por %p304, %p305
      %p308 = scmp.ne.s32.totalorder %s293, %s307
      %p309 = scmp.eq.s32.totalorder %s31, 0
      %p310 = por %p308, %p309
      %s311 = ssub.s32 %s25, %s32
      %p312 = scmp.eq.s32.totalorder %s311, 0
      %s314 = sadd.s32 %s313, 1
      %s315 = scalar_select %p312, %s313, %s314
      %p318 = pneg %p312
      %p319 = scmp.eq.s32.totalorder %s25, 1
      %p320 = por %p318, %p319
      %p321 = scmp.ne.s32.totalorder %s313, %s316
      %p322 = scmp.eq.s32.totalorder %s25, 0
      %p323 = por %p321, %p322
      %p324 = scmp.ne.s32.totalorder %s313, %s316
      %p325 = scmp.eq.s32.totalorder %s30, 1
      %p326 = por %p324, %p325
      %p327 = scmp.ne.s32.totalorder %s316, %s317
      %p328 = scmp.eq.s32.totalorder %s30, 0
      %p329 = por %p327, %p328
      %p330 = scmp.ne.s32.totalorder %s316, %s317
      %p331 = scmp.eq.s32.totalorder %s31, 1
      %p332 = por %p330, %p331
      %p334 = scmp.ne.s32.totalorder %s317, %s333
      %p335 = scmp.eq.s32.totalorder %s31, 0
      %p336 = por %p334, %p335
      %p337 = scmp.le.s32.totalorder 1, %s25
      %p338 = scmp.lt.s32.totalorder %s25, 3
      %p339 = pnand %p337, %p338
      %p340 = pneg %p339
      // Predicated region
      $region9: #{tpu_custom_call.1} parent=5 // pred_check
        _
      $region10: #{tpu_custom_call.1} parent=5 // pred_check_branch
        %342 = sbr.rel (%p339) target = $region12
      $region11: #{tpu_custom_call.1} parent=5 // pred_region
        %s343 = ssub.s32 %s25, 1
        // Predicated region
        $region13: #{tpu_custom_call.1} parent=11 // pred_check
          %p344 = pneg %p72
        $region14: #{tpu_custom_call.1} parent=11 // pred_check_branch
          %346 = sbr.rel (%p344) target = $region16
        $region15: #{tpu_custom_call.1} parent=11 // pred_region
          _
        $region16: #{tpu_custom_call.1} parent=11 // pred_fallthru
          _
        // Predicated region
        $region17: #{tpu_custom_call.1} parent=11 // pred_check
          %p347 = pneg %p93
        $region18: #{tpu_custom_call.1} parent=11 // pred_check_branch
          %349 = sbr.rel (%p347) target = $region20
        $region19: #{tpu_custom_call.1} parent=11 // pred_region
          _
        $region20: #{tpu_custom_call.1} parent=11 // pred_fallthru
          _
        // Predicated region
        $region21: #{tpu_custom_call.1} parent=11 // pred_check
          %p350 = pneg %p114
        $region22: #{tpu_custom_call.1} parent=11 // pred_check_branch
          %352 = sbr.rel (%p350) target = $region24
        $region23: #{tpu_custom_call.1} parent=11 // pred_region
          _
        $region24: #{tpu_custom_call.1} parent=11 // pred_fallthru
          _
        // Predicated region
        $region25: #{tpu_custom_call.1} parent=11 // pred_check
          %p353 = pneg %p135
        $region26: #{tpu_custom_call.1} parent=11 // pred_check_branch
          %355 = sbr.rel (%p353) target = $region28
        $region27: #{tpu_custom_call.1} parent=11 // pred_region
          %s357 = ssub.s32 16, 16
          %358 = vsyncadd [#allocation3], %s357
          %s360 = sshll.u32 [#allocation2], 4
          %s361 = int_to_ptr.vmem [resolvable:$true] %s360
          %363 = dma.hbm_to_vmem [thread:$0]  %s4, 16, %s361, [#allocation3]
        $region28: #{tpu_custom_call.1} parent=11 // pred_fallthru
          _
        // Predicated region
        $region29: #{tpu_custom_call.1} parent=11 // pred_check
          %p364 = pneg %p156
        $region30: #{tpu_custom_call.1} parent=11 // pred_check_branch
          %366 = sbr.rel (%p364) target = $region32
        $region31: #{tpu_custom_call.1} parent=11 // pred_region
          _
        $region32: #{tpu_custom_call.1} parent=11 // pred_fallthru
          _
        // Predicated region
        $region33: #{tpu_custom_call.1} parent=11 // pred_check
          %p367 = pneg %p177
        $region34: #{tpu_custom_call.1} parent=11 // pred_check_branch
          %369 = sbr.rel (%p367) target = $region36
        $region35: #{tpu_custom_call.1} parent=11 // pred_region
          %s371 = ssub.s32 16, 16
          %372 = vsyncadd [#allocation6], %s371
          %s374 = sshll.u32 [#allocation5], 4
          %s375 = int_to_ptr.vmem [resolvable:$true] %s374
          %377 = dma.hbm_to_vmem [thread:$0]  %s6, 16, %s375, [#allocation6]
        $region36: #{tpu_custom_call.1} parent=11 // pred_fallthru
          _
        // Predicated region
        $region37: #{tpu_custom_call.1} parent=11 // pred_check
          %p378 = pneg %p198
        $region38: #{tpu_custom_call.1} parent=11 // pred_check_branch
          %380 = sbr.rel (%p378) target = $region40
        $region39: #{tpu_custom_call.1} parent=11 // pred_region
          %s382 = ssub.s32 16, 16
          %383 = vsyncadd [#allocation6], %s382
          %s385 = sshll.u32 [#allocation7], 4
          %s386 = int_to_ptr.vmem [resolvable:$true] %s385
          %388 = dma.hbm_to_vmem [thread:$0]  %s7, 16, %s386, [#allocation6]
        $region40: #{tpu_custom_call.1} parent=11 // pred_fallthru
          _
        // Predicated region
        $region41: #{tpu_custom_call.1} parent=11 // pred_check
          %p389 = pneg %p219
        $region42: #{tpu_custom_call.1} parent=11 // pred_check_branch
          %391 = sbr.rel (%p389) target = $region44
        $region43: #{tpu_custom_call.1} parent=11 // pred_region
          %s393 = ssub.s32 16, 16
          %394 = vsyncadd [#allocation9], %s393
          %s396 = sshll.u32 [#allocation8], 4
          %s397 = int_to_ptr.vmem [resolvable:$true] %s396
          %399 = dma.hbm_to_vmem [thread:$0]  %s8, 16, %s397, [#allocation9]
        $region44: #{tpu_custom_call.1} parent=11 // pred_fallthru
          _
        // Predicated region
        $region45: #{tpu_custom_call.1} parent=11 // pred_check
          %p400 = pneg %p240
        $region46: #{tpu_custom_call.1} parent=11 // pred_check_branch
          %402 = sbr.rel (%p400) target = $region48
        $region47: #{tpu_custom_call.1} parent=11 // pred_region
          _
        $region48: #{tpu_custom_call.1} parent=11 // pred_fallthru
          _
        // Predicated region
        $region49: #{tpu_custom_call.1} parent=11 // pred_check
          %p403 = pneg %p261
        $region50: #{tpu_custom_call.1} parent=11 // pred_check_branch
          %405 = sbr.rel (%p403) target = $region52
        $region51: #{tpu_custom_call.1} parent=11 // pred_region
          _
        $region52: #{tpu_custom_call.1} parent=11 // pred_fallthru
          _
        // Predicated region
        $region53: #{tpu_custom_call.1} parent=11 // pred_check
          %p406 = pneg %p282
        $region54: #{tpu_custom_call.1} parent=11 // pred_check_branch
          %408 = sbr.rel (%p406) target = $region56
        $region55: #{tpu_custom_call.1} parent=11 // pred_region
          _
        $region56: #{tpu_custom_call.1} parent=11 // pred_fallthru
          _
        // Predicated region
        $region57: #{tpu_custom_call.1} parent=11 // pred_check
          %p409 = pneg %p303
        $region58: #{tpu_custom_call.1} parent=11 // pred_check_branch
          %411 = sbr.rel (%p409) target = $region60
        $region59: #{tpu_custom_call.1} parent=11 // pred_region
          _
        $region60: #{tpu_custom_call.1} parent=11 // pred_fallthru
          _
      $region12: #{tpu_custom_call.1} parent=5 // pred_fallthru
        _
      %p412 = scmp.lt.s32.totalorder %s25, 2
      // Predicated region
      $region61: #{tpu_custom_call.1} parent=5 // pred_check
        %p413 = pneg %p412
      $region62: #{tpu_custom_call.1} parent=5 // pred_check_branch
        %415 = sbr.rel (%p413) target = $region64
      $region63: #{tpu_custom_call.1} parent=5 // pred_region
        // Predicated region
        $region65: #{tpu_custom_call.1} parent=63 // pred_check
          %p416 = pneg %p45
        $region66: #{tpu_custom_call.1} parent=63 // pred_check_branch
          %418 = sbr.rel (%p416) target = $region68
        $region67: #{tpu_custom_call.1} parent=63 // pred_region
          %p419 = scmp.lt.s32.totalorder %s25, 1
          %s420 = scalar_select %p419, %s25, 1
          %s421 = smul.addr %s420, 8
          %s422 = scalar_lea.vmem %s0, %s421
        $region68: #{tpu_custom_call.1} parent=63 // pred_fallthru
          _
      $region64: #{tpu_custom_call.1} parent=5 // pred_fallthru
        _
      %p423 = scmp.le.s32.totalorder 1, %s25
      %p424 = scmp.lt.s32.totalorder %s25, 3
      %p425 = pnand %p423, %p424
      %p426 = pneg %p425
      // Predicated region
      $region69: #{tpu_custom_call.1} parent=5 // pred_check
        _
      $region70: #{tpu_custom_call.1} parent=5 // pred_check_branch
        %428 = sbr.rel (%p425) target = $region72
      $region71: #{tpu_custom_call.1} parent=5 // pred_region
        %s429 = ssub.s32 %s25, 1
        // Predicated region
        $region73: #{tpu_custom_call.1} parent=71 // pred_check
          %p430 = pneg %p135
        $region74: #{tpu_custom_call.1} parent=71 // pred_check_branch
          %432 = sbr.rel (%p430) target = $region76
        $region75: #{tpu_custom_call.1} parent=71 // pred_region
          %433 = dma.done [#allocation3], 16
        $region76: #{tpu_custom_call.1} parent=71 // pred_fallthru
          _
        // Predicated region
        $region77: #{tpu_custom_call.1} parent=71 // pred_check
          %p434 = pneg %p177
        $region78: #{tpu_custom_call.1} parent=71 // pred_check_branch
          %436 = sbr.rel (%p434) target = $region80
        $region79: #{tpu_custom_call.1} parent=71 // pred_region
          %437 = dma.done [#allocation6], 16
        $region80: #{tpu_custom_call.1} parent=71 // pred_fallthru
          _
        // Predicated region
        $region81: #{tpu_custom_call.1} parent=71 // pred_check
          %p438 = pneg %p198
        $region82: #{tpu_custom_call.1} parent=71 // pred_check_branch
          %440 = sbr.rel (%p438) target = $region84
        $region83: #{tpu_custom_call.1} parent=71 // pred_region
          %441 = dma.done [#allocation6], 16
        $region84: #{tpu_custom_call.1} parent=71 // pred_fallthru
          _
        // Predicated region
        $region85: #{tpu_custom_call.1} parent=71 // pred_check
          %p442 = pneg %p219
        $region86: #{tpu_custom_call.1} parent=71 // pred_check_branch
          %444 = sbr.rel (%p442) target = $region88
        $region87: #{tpu_custom_call.1} parent=71 // pred_region
          %445 = dma.done [#allocation9], 16
        $region88: #{tpu_custom_call.1} parent=71 // pred_fallthru
          _
        %p446 = scmp.lt.s32.totalorder %s30, 1
        %s447 = scalar_select %p446, %s30, 1
        %s448 = smul.addr %s447, 8
        %s449 = scalar_lea.vmem %s0, %s448
        %p450 = pneg %p51
        %p451 = pneg %p48
        %p452 = pneg %p72
        %p453 = pneg %p69
        %p454 = pneg %p93
        %p455 = pneg %p90
        %p456 = pneg %p114
        %p457 = pneg %p111
        %p458 = pneg %p135
        %p459 = pneg %p132
        %p460 = pneg %p156
        %p461 = pneg %p153
        %p462 = pneg %p177
        %p463 = pneg %p174
        %p464 = pneg %p198
        %p465 = pneg %p195
        %p466 = pneg %p219
        %p467 = pneg %p216
        %p468 = pneg %p240
        %p469 = pneg %p237
        %p470 = pneg %p261
        %p471 = pneg %p258
        %p472 = pneg %p282
        %p473 = pneg %p279
        %p474 = pneg %p303
        %p475 = pneg %p300
        %p476 = pneg %p329
        %p477 = pneg %p326
        %s478 = sand.u32 %s316, 1
        %s479 = scalar_lea.sflag [#allocation4], %s478
        %s480 = sand.u32 %s316, 1
        %s481 = smul.addr %s480, 8
        %s482 = scalar_lea.vmem [#allocation10], %s481
        %p483 = scmp.lt.s32.totalorder %s30, 1
        %s484 = scalar_select %p483, %s30, 1
        %s485 = smul.addr %s484, 8
        %s486 = scalar_lea.vmem %s0, %s485
        %v488 = vld [vmem:[%s486] sm:$0xff]
        %v489 = vld [vmem:[%s1] sm:$0x1]
        %v490 = vld [vmem:[%s2] sm:$0x1]
        %vm491 = vcmask 261120
        %v492 = vsel %vm491, %v488, 0.0
        %493 = vadd.xlane.f32.xlu0 %v492
        %v494 = vpop.xlane.xlu0 %493
        %v495 = vrcp.pop 32.0
        %v496 = vmul.f32 %v494, %v495
        %v497 = vsub.f32 %v488, %v496
        %v498 = vmul.f32 %v497, %v497
        %v499 = vsel %vm491, %v498, 0.0
        %500 = vadd.xlane.f32.xlu0 %v499
        %v501 = vpop.xlane.xlu0 %500
        %v502 = vmul.f32 %v501, %v495
        %v503 = vadd.f32 %v502, 1e-05
        %v504 = vrsqrt.pop %v503
        %v505 = vmul.f32 %v497, %v504
        %v507 = vlaneseq
        %v508 = vshrl.u32 %v507, 7
        %v509 = vsub.s32 0, %v508
        %v510 = vrot.slane %v489, %v509
        %v512 = vmul.f32 %v505, %v510
        %v514 = vlaneseq
        %v515 = vshrl.u32 %v514, 7
        %v516 = vsub.s32 0, %v515
        %v517 = vrot.slane %v490, %v516
        %v519 = vadd.f32 %v512, %v517
        %v520 = vpack.c.bf16 %v519, %v519
        %v521 = vld [vmem:[%s3] sm:$0xf]
        %v522 = vld [vmem:[%s3 + $0x4] sm:$0xf]
        %v523 = vld [vmem:[%s3 + $0x8] sm:$0xf]
        %v524 = vld [vmem:[%s3 + $0xc] sm:$0xf]
        %v525 = vld [vmem:[#allocation2] sm:$0x1]
        %v527 = vlaneseq
        %v528 = vshrl.u32 %v527, 7
        %v529 = vsub.s32 0, %v528
        %v530 = vrot.slane %v525, %v529
        %v536 = vunpack.c.l.b16 %v521
        %v537 = vunpack.c.l.b16 %v522
        %v538 = vunpack.c.l.b16 %v523
        %v539 = vunpack.c.l.b16 %v524
        %v540 = vpack.c.b16 %v537, %v536
        %v541 = vpack.c.b16 %v539, %v538
        %v545 = vsel %vm491, %v520, 0
        %547 = vmatprep.subr.bf16.mxu0 0
        %548 = vmatpush1.bf16.msra.mxu0 %v540
        %549 = vmatprep.subr.bf16.mxu0 0
        %550 = vmatpush1.bf16.msra.mxu0 %v541
        %551 = vmatprep.subr.bf16.mxu0 0
        %552 = vmatpush1.bf16.msra.mxu0 0
        %553 = vmatprep.subr.bf16.mxu0 0
        %554 = vmatpush1.bf16.msra.mxu0 0
        %555 = vmatprep.subr.bf16.mxu0 0
        %556 = vmatpush1.bf16.msra.mxu0 0
        %557 = vmatprep.subr.bf16.mxu0 0
        %558 = vmatpush1.bf16.msra.mxu0 0
        %559 = vmatprep.subr.bf16.mxu0 0
        %560 = vmatpush1.bf16.msra.mxu0 0
        %561 = vmatprep.subr.bf16.mxu0 0
        %562 = vmatpush1.bf16.msra.mxu0 0
        %563 = vmatprep.subr.bf16.mxu0 0
        %564 = vmatpush1.bf16.msra.mxu0 0
        %565 = vmatprep.subr.bf16.mxu0 0
        %566 = vmatpush1.bf16.msra.mxu0 0
        %567 = vmatprep.subr.bf16.mxu0 0
        %568 = vmatpush1.bf16.msra.mxu0 0
        %569 = vmatprep.subr.bf16.mxu0 0
        %570 = vmatpush1.bf16.msra.mxu0 0
        %571 = vmatprep.subr.bf16.mxu0 0
        %572 = vmatpush1.bf16.msra.mxu0 0
        %573 = vmatprep.subr.bf16.mxu0 0
        %574 = vmatpush1.bf16.msra.mxu0 0
        %575 = vmatprep.subr.bf16.mxu0 0
        %576 = vmatpush1.bf16.msra.mxu0 0
        %577 = vmatprep.subr.bf16.mxu0 0
        %578 = vmatpush1.bf16.msra.mxu0 0
        %579 = vmatprep.mubr.bf16.mxu0 0
        %580 = vmatmul.mubr.bf16.gmra.mrb[0].mxu0 %v545
        %v581 = vpop.f32.mrb[0].mxu0
        %v582 = vadd.f32 %v530, %v581
        %v583 = vpop.f32.mrb[0].mxu0
        %v584 = vpop.f32.mrb[0].mxu0
        %v585 = vpop.f32.mrb[0].mxu0
        %586 = vdwg.mxu0
        %588 = vrot.lane.b32.xlu0 %v582, 104
        %v589 = vpop.permute.xlu0 %588
        %591 = vrot.lane.b32.xlu0 %v582, 80
        %v592 = vpop.permute.xlu0 %591
        %594 = vrot.lane.b32.xlu0 %v582, 56
        %v595 = vpop.permute.xlu0 %594
        %v597 = vpack.c.bf16 %v582, %v582
        %v598 = vpack.c.bf16 %v589, %v589
        %v599 = vpack.c.bf16 %v592, %v592
        %v600 = vpack.c.bf16 %v595, %v595
        %602 = vrot.lane.b32.xlu0 %v597, 120
        %v603 = vpop.permute.xlu0 %602
        %vm604 = vcmask 64512
        %v606 = vsel %vm604, %v597, 0
        %v609 = vsel %vm604, %v603, 0
        %611 = vmatprep.subr.bf16.mxu0 0
        %612 = vmatpush1.bf16.xpose.msra.mxu0 %v609
        %613 = vmatprep.subr.bf16.mxu0 0
        %614 = vmatpush1.bf16.xpose.msra.mxu0 0
        %615 = vmatprep.subr.bf16.mxu0 0
        %616 = vmatpush1.bf16.xpose.msra.mxu0 0
        %617 = vmatprep.subr.bf16.mxu0 0
        %618 = vmatpush1.bf16.xpose.msra.mxu0 0
        %619 = vmatprep.subr.bf16.mxu0 0
        %620 = vmatpush1.bf16.xpose.msra.mxu0 0
        %621 = vmatprep.subr.bf16.mxu0 0
        %622 = vmatpush1.bf16.xpose.msra.mxu0 0
        %623 = vmatprep.subr.bf16.mxu0 0
        %624 = vmatpush1.bf16.xpose.msra.mxu0 0
        %625 = vmatprep.subr.bf16.mxu0 0
        %626 = vmatpush1.bf16.xpose.msra.mxu0 0
        %627 = vmatprep.subr.bf16.mxu0 0
        %628 = vmatpush1.bf16.xpose.msra.mxu0 0
        %629 = vmatprep.subr.bf16.mxu0 0
        %630 = vmatpush1.bf16.xpose.msra.mxu0 0
        %631 = vmatprep.subr.bf16.mxu0 0
        %632 = vmatpush1.bf16.xpose.msra.mxu0 0
        %633 = vmatprep.subr.bf16.mxu0 0
        %634 = vmatpush1.bf16.xpose.msra.mxu0 0
        %635 = vmatprep.subr.bf16.mxu0 0
        %636 = vmatpush1.bf16.xpose.msra.mxu0 0
        %637 = vmatprep.subr.bf16.mxu0 0
        %638 = vmatpush1.bf16.xpose.msra.mxu0 0
        %639 = vmatprep.subr.bf16.mxu0 0
        %640 = vmatpush1.bf16.xpose.msra.mxu0 0
        %641 = vmatprep.subr.bf16.mxu0 0
        %642 = vmatpush1.bf16.xpose.msra.mxu0 0
        %643 = vmatprep.mubr.bf16.mxu0 0
        %644 = vmatmul.mubr.bf16.gmra.mrb[0].mxu0 %v606
        %v645 = vpop.f32.mrb[0].mxu0
        %v646 = vadd.f32 0.0, %v645
        %v647 = vpop.f32.mrb[0].mxu0
        %v648 = vpop.f32.mrb[0].mxu0
        %v649 = vpop.f32.mrb[0].mxu0
        %650 = vdwg.mxu0
        %652 = vrot.lane.b32.xlu0 %v598, 120
        %v653 = vpop.permute.xlu0 %652
        %v655 = vsel %vm604, %v598, 0
        %v658 = vsel %vm604, %v653, 0
        %660 = vmatprep.subr.bf16.mxu0 0
        %661 = vmatpush1.bf16.xpose.msra.mxu0 %v658
        %662 = vmatprep.subr.bf16.mxu0 0
        %663 = vmatpush1.bf16.xpose.msra.mxu0 0
        %664 = vmatprep.subr.bf16.mxu0 0
        %665 = vmatpush1.bf16.xpose.msra.mxu0 0
        %666 = vmatprep.subr.bf16.mxu0 0
        %667 = vmatpush1.bf16.xpose.msra.mxu0 0
        %668 = vmatprep.subr.bf16.mxu0 0
        %669 = vmatpush1.bf16.xpose.msra.mxu0 0
        %670 = vmatprep.subr.bf16.mxu0 0
        %671 = vmatpush1.bf16.xpose.msra.mxu0 0
        %672 = vmatprep.subr.bf16.mxu0 0
        %673 = vmatpush1.bf16.xpose.msra.mxu0 0
        %674 = vmatprep.subr.bf16.mxu0 0
        %675 = vmatpush1.bf16.xpose.msra.mxu0 0
        %676 = vmatprep.subr.bf16.mxu0 0
        %677 = vmatpush1.bf16.xpose.msra.mxu0 0
        %678 = vmatprep.subr.bf16.mxu0 0
        %679 = vmatpush1.bf16.xpose.msra.mxu0 0
        %680 = vmatprep.subr.bf16.mxu0 0
        %681 = vmatpush1.bf16.xpose.msra.mxu0 0
        %682 = vmatprep.subr.bf16.mxu0 0
        %683 = vmatpush1.bf16.xpose.msra.mxu0 0
        %684 = vmatprep.subr.bf16.mxu0 0
        %685 = vmatpush1.bf16.xpose.msra.mxu0 0
        %686 = vmatprep.subr.bf16.mxu0 0
        %687 = vmatpush1.bf16.xpose.msra.mxu0 0
        %688 = vmatprep.subr.bf16.mxu0 0
        %689 = vmatpush1.bf16.xpose.msra.mxu0 0
        %690 = vmatprep.subr.bf16.mxu0 0
        %691 = vmatpush1.bf16.xpose.msra.mxu0 0
        %692 = vmatprep.mubr.bf16.mxu0 0
        %693 = vmatmul.mubr.bf16.gmra.mrb[0].mxu0 %v655
        %v694 = vpop.f32.mrb[0].mxu0
        %v695 = vadd.f32 0.0, %v694
        %v696 = vpop.f32.mrb[0].mxu0
        %v697 = vpop.f32.mrb[0].mxu0
        %v698 = vpop.f32.mrb[0].mxu0
        %699 = vdwg.mxu0
        %701 = vrot.lane.b32.xlu0 %v599, 120
        %v702 = vpop.permute.xlu0 %701
        %v704 = vsel %vm604, %v599, 0
        %v707 = vsel %vm604, %v702, 0
        %709 = vmatprep.subr.bf16.mxu0 0
        %710 = vmatpush1.bf16.xpose.msra.mxu0 %v707
        %711 = vmatprep.subr.bf16.mxu0 0
        %712 = vmatpush1.bf16.xpose.msra.mxu0 0
        %713 = vmatprep.subr.bf16.mxu0 0
        %714 = vmatpush1.bf16.xpose.msra.mxu0 0
        %715 = vmatprep.subr.bf16.mxu0 0
        %716 = vmatpush1.bf16.xpose.msra.mxu0 0
        %717 = vmatprep.subr.bf16.mxu0 0
        %718 = vmatpush1.bf16.xpose.msra.mxu0 0
        %719 = vmatprep.subr.bf16.mxu0 0
        %720 = vmatpush1.bf16.xpose.msra.mxu0 0
        %721 = vmatprep.subr.bf16.mxu0 0
        %722 = vmatpush1.bf16.xpose.msra.mxu0 0
        %723 = vmatprep.subr.bf16.mxu0 0
        %724 = vmatpush1.bf16.xpose.msra.mxu0 0
        %725 = vmatprep.subr.bf16.mxu0 0
        %726 = vmatpush1.bf16.xpose.msra.mxu0 0
        %727 = vmatprep.subr.bf16.mxu0 0
        %728 = vmatpush1.bf16.xpose.msra.mxu0 0
        %729 = vmatprep.subr.bf16.mxu0 0
        %730 = vmatpush1.bf16.xpose.msra.mxu0 0
        %731 = vmatprep.subr.bf16.mxu0 0
        %732 = vmatpush1.bf16.xpose.msra.mxu0 0
        %733 = vmatprep.subr.bf16.mxu0 0
        %734 = vmatpush1.bf16.xpose.msra.mxu0 0
        %735 = vmatprep.subr.bf16.mxu0 0
        %736 = vmatpush1.bf16.xpose.msra.mxu0 0
        %737 = vmatprep.subr.bf16.mxu0 0
        %738 = vmatpush1.bf16.xpose.msra.mxu0 0
        %739 = vmatprep.subr.bf16.mxu0 0
        %740 = vmatpush1.bf16.xpose.msra.mxu0 0
        %741 = vmatprep.mubr.bf16.mxu0 0
        %742 = vmatmul.mubr.bf16.gmra.mrb[0].mxu0 %v704
        %v743 = vpop.f32.mrb[0].mxu0
        %v744 = vadd.f32 0.0, %v743
        %v745 = vpop.f32.mrb[0].mxu0
        %v746 = vpop.f32.mrb[0].mxu0
        %v747 = vpop.f32.mrb[0].mxu0
        %748 = vdwg.mxu0
        %750 = vrot.lane.b32.xlu0 %v600, 120
        %v751 = vpop.permute.xlu0 %750
        %v753 = vsel %vm604, %v600, 0
        %v756 = vsel %vm604, %v751, 0
        %758 = vmatprep.subr.bf16.mxu0 0
        %759 = vmatpush1.bf16.xpose.msra.mxu0 %v756
        %760 = vmatprep.subr.bf16.mxu0 0
        %761 = vmatpush1.bf16.xpose.msra.mxu0 0
        %762 = vmatprep.subr.bf16.mxu0 0
        %763 = vmatpush1.bf16.xpose.msra.mxu0 0
        %764 = vmatprep.subr.bf16.mxu0 0
        %765 = vmatpush1.bf16.xpose.msra.mxu0 0
        %766 = vmatprep.subr.bf16.mxu0 0
        %767 = vmatpush1.bf16.xpose.msra.mxu0 0
        %768 = vmatprep.subr.bf16.mxu0 0
        %769 = vmatpush1.bf16.xpose.msra.mxu0 0
        %770 = vmatprep.subr.bf16.mxu0 0
        %771 = vmatpush1.bf16.xpose.msra.mxu0 0
        %772 = vmatprep.subr.bf16.mxu0 0
        %773 = vmatpush1.bf16.xpose.msra.mxu0 0
        %774 = vmatprep.subr.bf16.mxu0 0
        %775 = vmatpush1.bf16.xpose.msra.mxu0 0
        %776 = vmatprep.subr.bf16.mxu0 0
        %777 = vmatpush1.bf16.xpose.msra.mxu0 0
        %778 = vmatprep.subr.bf16.mxu0 0
        %779 = vmatpush1.bf16.xpose.msra.mxu0 0
        %780 = vmatprep.subr.bf16.mxu0 0
        %781 = vmatpush1.bf16.xpose.msra.mxu0 0
        %782 = vmatprep.subr.bf16.mxu0 0
        %783 = vmatpush1.bf16.xpose.msra.mxu0 0
        %784 = vmatprep.subr.bf16.mxu0 0
        %785 = vmatpush1.bf16.xpose.msra.mxu0 0
        %786 = vmatprep.subr.bf16.mxu0 0
        %787 = vmatpush1.bf16.xpose.msra.mxu0 0
        %788 = vmatprep.subr.bf16.mxu0 0
        %789 = vmatpush1.bf16.xpose.msra.mxu0 0
        %790 = vmatprep.mubr.bf16.mxu0 0
        %791 = vmatmul.mubr.bf16.gmra.mrb[0].mxu0 %v753
        %v792 = vpop.f32.mrb[0].mxu0
        %v793 = vadd.f32 0.0, %v792
        %v794 = vpop.f32.mrb[0].mxu0
        %v795 = vpop.f32.mrb[0].mxu0
        %v796 = vpop.f32.mrb[0].mxu0
        %797 = vdwg.mxu0
        %v798 = vsel %vm604, %v646, -inf
        %799 = vmax.xlane.f32.xlu0 %v798
        %v800 = vpop.xlane.xlu0 %799
        %v801 = vsel %vm604, %v695, -inf
        %802 = vmax.xlane.f32.xlu0 %v801
        %v803 = vpop.xlane.xlu0 %802
        %v804 = vsel %vm604, %v744, -inf
        %805 = vmax.xlane.f32.xlu0 %v804
        %v806 = vpop.xlane.xlu0 %805
        %v807 = vsel %vm604, %v793, -inf
        %808 = vmax.xlane.f32.xlu0 %v807
        %v809 = vpop.xlane.xlu0 %808
        %v810 = vsub.f32 %v646, %v800
        %v811 = vsub.f32 %v695, %v803
        %v812 = vsub.f32 %v744, %v806
        %v813 = vsub.f32 %v793, %v809
        %v814 = vmul.f32 %v810, 1.442695
        %v815 = vpow.pop %v814
        %v816 = vmul.f32 %v811, 1.442695
        %v817 = vpow.pop %v816
        %v818 = vmul.f32 %v812, 1.442695
        %v819 = vpow.pop %v818
        %v820 = vmul.f32 %v813, 1.442695
        %v821 = vpow.pop %v820
        %v822 = vsel %vm604, %v815, 0.0
        %823 = vadd.xlane.f32.xlu0 %v822
        %v824 = vpop.xlane.xlu0 %823
        %v825 = vsel %vm604, %v817, 0.0
        %826 = vadd.xlane.f32.xlu0 %v825
        %v827 = vpop.xlane.xlu0 %826
        %v828 = vsel %vm604, %v819, 0.0
        %829 = vadd.xlane.f32.xlu0 %v828
        %v830 = vpop.xlane.xlu0 %829
        %v831 = vsel %vm604, %v821, 0.0
        %832 = vadd.xlane.f32.xlu0 %v831
        %v833 = vpop.xlane.xlu0 %832
        %v834 = vrcp.pop %v824
        %v835 = vrcp.pop %v827
        %v836 = vrcp.pop %v830
        %v837 = vrcp.pop %v833
        %v838 = vmul.f32 %v824, %v834
        %v839 = vmul.f32 %v827, %v835
        %v840 = vmul.f32 %v830, %v836
        %v841 = vmul.f32 %v833, %v837
        %v842 = vsub.f32 2.0, %v838
        %v843 = vsub.f32 2.0, %v839
        %v844 = vsub.f32 2.0, %v840
        %v845 = vsub.f32 2.0, %v841
        %v846 = vmul.f32 %v834, %v842
        %v847 = vmul.f32 %v835, %v843
        %v848 = vmul.f32 %v836, %v844
        %v849 = vmul.f32 %v837, %v845
        %v850 = vmul.f32 %v815, %v846
        %v851 = vmul.f32 %v817, %v847
        %v852 = vmul.f32 %v819, %v848
        %v853 = vmul.f32 %v821, %v849
        %v854 = vpack.c.bf16 %v850, %v850
        %v855 = vpack.c.bf16 %v851, %v851
        %v856 = vpack.c.bf16 %v852, %v852
        %v857 = vpack.c.bf16 %v853, %v853
        %858 = vrot.lane.b32.xlu0 %v597, 112
        %v859 = vpop.permute.xlu0 %858
        %v861 = vsel %vm604, %v854, 0
        %vm863 = vcmask 1043456
        %v865 = vsel %vm863, %v859, 0
        %867 = vmatprep.subr.bf16.mxu0 0
        %868 = vmatpush1.bf16.msra.mxu0 %v865
        %869 = vmatprep.subr.bf16.mxu0 0
        %870 = vmatpush1.bf16.msra.mxu0 0
        %871 = vmatprep.subr.bf16.mxu0 0
        %872 = vmatpush1.bf16.msra.mxu0 0
        %873 = vmatprep.subr.bf16.mxu0 0
        %874 = vmatpush1.bf16.msra.mxu0 0
        %875 = vmatprep.subr.bf16.mxu0 0
        %876 = vmatpush1.bf16.msra.mxu0 0
        %877 = vmatprep.subr.bf16.mxu0 0
        %878 = vmatpush1.bf16.msra.mxu0 0
        %879 = vmatprep.subr.bf16.mxu0 0
        %880 = vmatpush1.bf16.msra.mxu0 0
        %881 = vmatprep.subr.bf16.mxu0 0
        %882 = vmatpush1.bf16.msra.mxu0 0
        %883 = vmatprep.subr.bf16.mxu0 0
        %884 = vmatpush1.bf16.msra.mxu0 0
        %885 = vmatprep.subr.bf16.mxu0 0
        %886 = vmatpush1.bf16.msra.mxu0 0
        %887 = vmatprep.subr.bf16.mxu0 0
        %888 = vmatpush1.bf16.msra.mxu0 0
        %889 = vmatprep.subr.bf16.mxu0 0
        %890 = vmatpush1.bf16.msra.mxu0 0
        %891 = vmatprep.subr.bf16.mxu0 0
        %892 = vmatpush1.bf16.msra.mxu0 0
        %893 = vmatprep.subr.bf16.mxu0 0
        %894 = vmatpush1.bf16.msra.mxu0 0
        %895 = vmatprep.subr.bf16.mxu0 0
        %896 = vmatpush1.bf16.msra.mxu0 0
        %897 = vmatprep.subr.bf16.mxu0 0
        %898 = vmatpush1.bf16.msra.mxu0 0
        %899 = vmatprep.mubr.bf16.mxu0 0
        %900 = vmatmul.mubr.bf16.gmra.mrb[0].mxu0 %v861
        %v901 = vpop.f32.mrb[0].mxu0
        %v902 = vadd.f32 0.0, %v901
        %v903 = vpop.f32.mrb[0].mxu0
        %v904 = vpop.f32.mrb[0].mxu0
        %v905 = vpop.f32.mrb[0].mxu0
        %906 = vdwg.mxu0
        %907 = vrot.lane.b32.xlu0 %v598, 112
        %v908 = vpop.permute.xlu0 %907
        %v910 = vsel %vm604, %v855, 0
        %v913 = vsel %vm863, %v908, 0
        %915 = vmatprep.subr.bf16.mxu0 0
        %916 = vmatpush1.bf16.msra.mxu0 %v913
        %917 = vmatprep.subr.bf16.mxu0 0
        %918 = vmatpush1.bf16.msra.mxu0 0
        %919 = vmatprep.subr.bf16.mxu0 0
        %920 = vmatpush1.bf16.msra.mxu0 0
        %921 = vmatprep.subr.bf16.mxu0 0
        %922 = vmatpush1.bf16.msra.mxu0 0
        %923 = vmatprep.subr.bf16.mxu0 0
        %924 = vmatpush1.bf16.msra.mxu0 0
        %925 = vmatprep.subr.bf16.mxu0 0
        %926 = vmatpush1.bf16.msra.mxu0 0
        %927 = vmatprep.subr.bf16.mxu0 0
        %928 = vmatpush1.bf16.msra.mxu0 0
        %929 = vmatprep.subr.bf16.mxu0 0
        %930 = vmatpush1.bf16.msra.mxu0 0
        %931 = vmatprep.subr.bf16.mxu0 0
        %932 = vmatpush1.bf16.msra.mxu0 0
        %933 = vmatprep.subr.bf16.mxu0 0
        %934 = vmatpush1.bf16.msra.mxu0 0
        %935 = vmatprep.subr.bf16.mxu0 0
        %936 = vmatpush1.bf16.msra.mxu0 0
        %937 = vmatprep.subr.bf16.mxu0 0
        %938 = vmatpush1.bf16.msra.mxu0 0
        %939 = vmatprep.subr.bf16.mxu0 0
        %940 = vmatpush1.bf16.msra.mxu0 0
        %941 = vmatprep.subr.bf16.mxu0 0
        %942 = vmatpush1.bf16.msra.mxu0 0
        %943 = vmatprep.subr.bf16.mxu0 0
        %944 = vmatpush1.bf16.msra.mxu0 0
        %945 = vmatprep.subr.bf16.mxu0 0
        %946 = vmatpush1.bf16.msra.mxu0 0
        %947 = vmatprep.mubr.bf16.mxu0 0
        %948 = vmatmul.mubr.bf16.gmra.mrb[0].mxu0 %v910
        %v949 = vpop.f32.mrb[0].mxu0
        %v950 = vadd.f32 0.0, %v949
        %v951 = vpop.f32.mrb[0].mxu0
        %v952 = vpop.f32.mrb[0].mxu0
        %v953 = vpop.f32.mrb[0].mxu0
        %954 = vdwg.mxu0
        %955 = vrot.lane.b32.xlu0 %v599, 112
        %v956 = vpop.permute.xlu0 %955
        %v958 = vsel %vm604, %v856, 0
        %v961 = vsel %vm863, %v956, 0
        %963 = vmatprep.subr.bf16.mxu0 0
        %964 = vmatpush1.bf16.msra.mxu0 %v961
        %965 = vmatprep.subr.bf16.mxu0 0
        %966 = vmatpush1.bf16.msra.mxu0 0
        %967 = vmatprep.subr.bf16.mxu0 0
        %968 = vmatpush1.bf16.msra.mxu0 0
        %969 = vmatprep.subr.bf16.mxu0 0
        %970 = vmatpush1.bf16.msra.mxu0 0
        %971 = vmatprep.subr.bf16.mxu0 0
        %972 = vmatpush1.bf16.msra.mxu0 0
        %973 = vmatprep.subr.bf16.mxu0 0
        %974 = vmatpush1.bf16.msra.mxu0 0
        %975 = vmatprep.subr.bf16.mxu0 0
        %976 = vmatpush1.bf16.msra.mxu0 0
        %977 = vmatprep.subr.bf16.mxu0 0
        %978 = vmatpush1.bf16.msra.mxu0 0
        %979 = vmatprep.subr.bf16.mxu0 0
        %980 = vmatpush1.bf16.msra.mxu0 0
        %981 = vmatprep.subr.bf16.mxu0 0
        %982 = vmatpush1.bf16.msra.mxu0 0
        %983 = vmatprep.subr.bf16.mxu0 0
        %984 = vmatpush1.bf16.msra.mxu0 0
        %985 = vmatprep.subr.bf16.mxu0 0
        %986 = vmatpush1.bf16.msra.mxu0 0
        %987 = vmatprep.subr.bf16.mxu0 0
        %988 = vmatpush1.bf16.msra.mxu0 0
        %989 = vmatprep.subr.bf16.mxu0 0
        %990 = vmatpush1.bf16.msra.mxu0 0
        %991 = vmatprep.subr.bf16.mxu0 0
        %992 = vmatpush1.bf16.msra.mxu0 0
        %993 = vmatprep.subr.bf16.mxu0 0
        %994 = vmatpush1.bf16.msra.mxu0 0
        %995 = vmatprep.mubr.bf16.mxu0 0
        %996 = vmatmul.mubr.bf16.gmra.mrb[0].mxu0 %v958
        %v997 = vpop.f32.mrb[0].mxu0
        %v998 = vadd.f32 0.0, %v997
        %v999 = vpop.f32.mrb[0].mxu0
        %v1000 = vpop.f32.mrb[0].mxu0
        %v1001 = vpop.f32.mrb[0].mxu0
        %1002 = vdwg.mxu0
        %1003 = vrot.lane.b32.xlu0 %v600, 112
        %v1004 = vpop.permute.xlu0 %1003
        %v1006 = vsel %vm604, %v857, 0
        %v1009 = vsel %vm863, %v1004, 0
        %1011 = vmatprep.subr.bf16.mxu0 0
        %1012 = vmatpush1.bf16.msra.mxu0 %v1009
        %1013 = vmatprep.subr.bf16.mxu0 0
        %1014 = vmatpush1.bf16.msra.mxu0 0
        %1015 = vmatprep.subr.bf16.mxu0 0
        %1016 = vmatpush1.bf16.msra.mxu0 0
        %1017 = vmatprep.subr.bf16.mxu0 0
        %1018 = vmatpush1.bf16.msra.mxu0 0
        %1019 = vmatprep.subr.bf16.mxu0 0
        %1020 = vmatpush1.bf16.msra.mxu0 0
        %1021 = vmatprep.subr.bf16.mxu0 0
        %1022 = vmatpush1.bf16.msra.mxu0 0
        %1023 = vmatprep.subr.bf16.mxu0 0
        %1024 = vmatpush1.bf16.msra.mxu0 0
        %1025 = vmatprep.subr.bf16.mxu0 0
        %1026 = vmatpush1.bf16.msra.mxu0 0
        %1027 = vmatprep.subr.bf16.mxu0 0
        %1028 = vmatpush1.bf16.msra.mxu0 0
        %1029 = vmatprep.subr.bf16.mxu0 0
        %1030 = vmatpush1.bf16.msra.mxu0 0
        %1031 = vmatprep.subr.bf16.mxu0 0
        %1032 = vmatpush1.bf16.msra.mxu0 0
        %1033 = vmatprep.subr.bf16.mxu0 0
        %1034 = vmatpush1.bf16.msra.mxu0 0
        %1035 = vmatprep.subr.bf16.mxu0 0
        %1036 = vmatpush1.bf16.msra.mxu0 0
        %1037 = vmatprep.subr.bf16.mxu0 0
        %1038 = vmatpush1.bf16.msra.mxu0 0
        %1039 = vmatprep.subr.bf16.mxu0 0
        %1040 = vmatpush1.bf16.msra.mxu0 0
        %1041 = vmatprep.subr.bf16.mxu0 0
        %1042 = vmatpush1.bf16.msra.mxu0 0
        %1043 = vmatprep.mubr.bf16.mxu0 0
        %1044 = vmatmul.mubr.bf16.gmra.mrb[0].mxu0 %v1006
        %v1045 = vpop.f32.mrb[0].mxu0
        %v1046 = vadd.f32 0.0, %v1045
        %v1047 = vpop.f32.mrb[0].mxu0
        %v1048 = vpop.f32.mrb[0].mxu0
        %v1049 = vpop.f32.mrb[0].mxu0
        %1050 = vdwg.mxu0
        %1052 = vrot.lane.b32.xlu0 %v950, 8
        %v1053 = vpop.permute.xlu0 %1052
        %1056 = vrot.lane.b32.xlu0 %v998, 16
        %v1057 = vpop.permute.xlu0 %1056
        %1060 = vrot.lane.b32.xlu0 %v1046, 24
        %v1061 = vpop.permute.xlu0 %1060
        %v1063 = vsel %vm604, %v902, %v1053
        %vm1064 = vcmask 130048
        %v1065 = vsel %vm1064, %v1063, %v1057
        %vm1066 = vcmask 195584
        %v1067 = vsel %vm1066, %v1065, %v1061
        %v1068 = vpack.c.bf16 %v1067, %v1067
        %v1069 = vld [vmem:[%s5] sm:$0xf]
        %v1070 = vld [vmem:[%s5 + $0x4] sm:$0xf]
        %v1071 = vld [vmem:[%s5 + $0x8] sm:$0xf]
        %v1072 = vld [vmem:[%s5 + $0xc] sm:$0xf]
        %v1073 = vld [vmem:[#allocation5] sm:$0x1]
        %v1075 = vlaneseq
        %v1076 = vshrl.u32 %v1075, 7
        %v1077 = vsub.s32 0, %v1076
        %v1078 = vrot.slane %v1073, %v1077
        %v1084 = vunpack.c.l.b16 %v1069
        %v1085 = vunpack.c.l.b16 %v1070
        %v1086 = vunpack.c.l.b16 %v1071
        %v1087 = vunpack.c.l.b16 %v1072
        %v1088 = vpack.c.b16 %v1085, %v1084
        %v1089 = vpack.c.b16 %v1087, %v1086
        %v1093 = vsel %vm491, %v1068, 0
        %1095 = vmatprep.subr.bf16.mxu0 0
        %1096 = vmatpush1.bf16.msra.mxu0 %v1088
        %1097 = vmatprep.subr.bf16.mxu0 0
        %1098 = vmatpush1.bf16.msra.mxu0 %v1089
        %1099 = vmatprep.subr.bf16.mxu0 0
        %1100 = vmatpush1.bf16.msra.mxu0 0
        %1101 = vmatprep.subr.bf16.mxu0 0
        %1102 = vmatpush1.bf16.msra.mxu0 0
        %1103 = vmatprep.subr.bf16.mxu0 0
        %1104 = vmatpush1.bf16.msra.mxu0 0
        %1105 = vmatprep.subr.bf16.mxu0 0
        %1106 = vmatpush1.bf16.msra.mxu0 0
        %1107 = vmatprep.subr.bf16.mxu0 0
        %1108 = vmatpush1.bf16.msra.mxu0 0
        %1109 = vmatprep.subr.bf16.mxu0 0
        %1110 = vmatpush1.bf16.msra.mxu0 0
        %1111 = vmatprep.subr.bf16.mxu0 0
        %1112 = vmatpush1.bf16.msra.mxu0 0
        %1113 = vmatprep.subr.bf16.mxu0 0
        %1114 = vmatpush1.bf16.msra.mxu0 0
        %1115 = vmatprep.subr.bf16.mxu0 0
        %1116 = vmatpush1.bf16.msra.mxu0 0
        %1117 = vmatprep.subr.bf16.mxu0 0
        %1118 = vmatpush1.bf16.msra.mxu0 0
        %1119 = vmatprep.subr.bf16.mxu0 0
        %1120 = vmatpush1.bf16.msra.mxu0 0
        %1121 = vmatprep.subr.bf16.mxu0 0
        %1122 = vmatpush1.bf16.msra.mxu0 0
        %1123 = vmatprep.subr.bf16.mxu0 0
        %1124 = vmatpush1.bf16.msra.mxu0 0
        %1125 = vmatprep.subr.bf16.mxu0 0
        %1126 = vmatpush1.bf16.msra.mxu0 0
        %1127 = vmatprep.mubr.bf16.mxu0 0
        %1128 = vmatmul.mubr.bf16.gmra.mrb[0].mxu0 %v1093
        %v1129 = vpop.f32.mrb[0].mxu0
        %v1130 = vadd.f32 %v1078, %v1129
        %v1131 = vpop.f32.mrb[0].mxu0
        %v1132 = vpop.f32.mrb[0].mxu0
        %v1133 = vpop.f32.mrb[0].mxu0
        %1134 = vdwg.mxu0
        %v1135 = vadd.f32 %v488, %v1130
        %v1136 = vld [vmem:[#allocation7] sm:$0x1]
        %v1137 = vld [vmem:[#allocation8] sm:$0x1]
        %v1138 = vsel %vm491, %v1135, 0.0
        %1139 = vadd.xlane.f32.xlu0 %v1138
        %v1140 = vpop.xlane.xlu0 %1139
        %v1141 = vmul.f32 %v1140, %v495
        %v1142 = vsub.f32 %v1135, %v1141
        %v1143 = vmul.f32 %v1142, %v1142
        %v1144 = vsel %vm491, %v1143, 0.0
        %1145 = vadd.xlane.f32.xlu0 %v1144
        %v1146 = vpop.xlane.xlu0 %1145
        %v1147 = vmul.f32 %v1146, %v495
        %v1148 = vadd.f32 %v1147, 1e-05
        %v1149 = vrsqrt.pop %v1148
        %v1150 = vmul.f32 %v1142, %v1149
        %v1152 = vlaneseq
        %v1153 = vshrl.u32 %v1152, 7
        %v1154 = vsub.s32 0, %v1153
        %v1155 = vrot.slane %v1136, %v1154
        %v1157 = vmul.f32 %v1150, %v1155
        %v1159 = vlaneseq
        %v1160 = vshrl.u32 %v1159, 7
        %v1161 = vsub.s32 0, %v1160
        %v1162 = vrot.slane %v1137, %v1161
        %v1164 = vadd.f32 %v1157, %v1162
        %v1165 = vpack.c.bf16 %v1164, %v1164
        %v1166 = vld [vmem:[%s9] sm:$0xf]
        %v1167 = vld [vmem:[%s9 + $0x4] sm:$0xf]
        %v1168 = vld [vmem:[%s9 + $0x8] sm:$0xf]
        %v1169 = vld [vmem:[%s9 + $0xc] sm:$0xf]
        %v1170 = vld [vmem:[%s10] sm:$0x1]
        %v1172 = vlaneseq
        %v1173 = vshrl.u32 %v1172, 7
        %v1174 = vsub.s32 0, %v1173
        %v1175 = vrot.slane %v1170, %v1174
        %v1181 = vunpack.c.l.b16 %v1166
        %v1182 = vunpack.c.l.b16 %v1167
        %v1183 = vunpack.c.l.b16 %v1168
        %v1184 = vunpack.c.l.b16 %v1169
        %v1185 = vpack.c.b16 %v1182, %v1181
        %v1186 = vpack.c.b16 %v1184, %v1183
        %v1190 = vsel %vm491, %v1165, 0
        %1192 = vmatprep.subr.bf16.mxu0 0
        %1193 = vmatpush1.bf16.msra.mxu0 %v1185
        %1194 = vmatprep.subr.bf16.mxu0 0
        %1195 = vmatpush1.bf16.msra.mxu0 %v1186
        %1196 = vmatprep.subr.bf16.mxu0 0
        %1197 = vmatpush1.bf16.msra.mxu0 0
        %1198 = vmatprep.subr.bf16.mxu0 0
        %1199 = vmatpush1.bf16.msra.mxu0 0
        %1200 = vmatprep.subr.bf16.mxu0 0
        %1201 = vmatpush1.bf16.msra.mxu0 0
        %1202 = vmatprep.subr.bf16.mxu0 0
        %1203 = vmatpush1.bf16.msra.mxu0 0
        %1204 = vmatprep.subr.bf16.mxu0 0
        %1205 = vmatpush1.bf16.msra.mxu0 0
        %1206 = vmatprep.subr.bf16.mxu0 0
        %1207 = vmatpush1.bf16.msra.mxu0 0
        %1208 = vmatprep.subr.bf16.mxu0 0
        %1209 = vmatpush1.bf16.msra.mxu0 0
        %1210 = vmatprep.subr.bf16.mxu0 0
        %1211 = vmatpush1.bf16.msra.mxu0 0
        %1212 = vmatprep.subr.bf16.mxu0 0
        %1213 = vmatpush1.bf16.msra.mxu0 0
        %1214 = vmatprep.subr.bf16.mxu0 0
        %1215 = vmatpush1.bf16.msra.mxu0 0
        %1216 = vmatprep.subr.bf16.mxu0 0
        %1217 = vmatpush1.bf16.msra.mxu0 0
        %1218 = vmatprep.subr.bf16.mxu0 0
        %1219 = vmatpush1.bf16.msra.mxu0 0
        %1220 = vmatprep.subr.bf16.mxu0 0
        %1221 = vmatpush1.bf16.msra.mxu0 0
        %1222 = vmatprep.subr.bf16.mxu0 0
        %1223 = vmatpush1.bf16.msra.mxu0 0
        %1224 = vmatprep.mubr.bf16.mxu0 0
        %1225 = vmatmul.mubr.bf16.gmra.mrb[0].mxu0 %v1190
        %v1226 = vpop.f32.mrb[0].mxu0
        %v1227 = vadd.f32 %v1175, %v1226
        %v1228 = vpop.f32.mrb[0].mxu0
        %v1229 = vpop.f32.mrb[0].mxu0
        %v1230 = vpop.f32.mrb[0].mxu0
        %1231 = vdwg.mxu0
        %v1232 = vmul.f32 %v1227, 0.5
        %v1233 = vmul.f32 %v1227, 0.70710677
        %vm1234 = vcmp.ge.f32.partialorder %v1233, 0.0
        %v1235 = vsel %vm1234, 1.0, -1.0
        %v1236 = vand.u32 2147483647, %v1233
        %v1237 = vmul.f32 %v1236, 0.3275911
        %v1238 = vadd.f32 %v1237, 1.0
        %v1239 = vrcp.pop %v1238
        %v1240 = vmul.f32 %v1238, %v1239
        %v1241 = vsub.f32 2.0, %v1240
        %v1242 = vmul.f32 %v1239, %v1241
        %v1243 = vmul.f32 %v1242, 1.0614054
        %v1244 = vadd.f32 %v1243, -1.4531521
        %v1245 = vmul.f32 %v1244, %v1242
        %v1246 = vadd.f32 %v1245, 1.4214138
        %v1247 = vmul.f32 %v1246, %v1242
        %v1248 = vadd.f32 %v1247, -0.28449672
        %v1249 = vmul.f32 %v1248, %v1242
        %v1250 = vadd.f32 %v1249, 0.2548296
        %v1251 = vmul.f32 %v1250, %v1242
        %v1252 = vsub.f32 0.0, %v1236
        %v1253 = vmul.f32 %v1252, %v1236
        %v1254 = vmul.f32 %v1253, 1.442695
        %v1255 = vpow.pop %v1254
        %v1256 = vmul.f32 %v1251, %v1255
        %v1257 = vsub.f32 1.0, %v1256
        %v1258 = vmul.f32 %v1235, %v1257
        %v1259 = vadd.f32 %v1258, 1.0
        %v1260 = vmul.f32 %v1232, %v1259
        %v1261 = vpack.c.bf16 %v1260, %v1260
        %v1262 = vld [vmem:[%s11] sm:$0xf]
        %v1263 = vld [vmem:[%s11 + $0x4] sm:$0xf]
        %v1264 = vld [vmem:[%s11 + $0x8] sm:$0xf]
        %v1265 = vld [vmem:[%s11 + $0xc] sm:$0xf]
        %v1266 = vld [vmem:[%s11 + $0x10] sm:$0xf]
        %v1267 = vld [vmem:[%s11 + $0x14] sm:$0xf]
        %v1268 = vld [vmem:[%s11 + $0x18] sm:$0xf]
        %v1269 = vld [vmem:[%s11 + $0x1c] sm:$0xf]
        %v1270 = vld [vmem:[%s12] sm:$0x1]
        %v1272 = vlaneseq
        %v1273 = vshrl.u32 %v1272, 7
        %v1274 = vsub.s32 0, %v1273
        %v1275 = vrot.slane %v1270, %v1274
        %v1285 = vunpack.c.l.b16 %v1262
        %v1286 = vunpack.c.l.b16 %v1263
        %v1287 = vunpack.c.l.b16 %v1264
        %v1288 = vunpack.c.l.b16 %v1265
        %v1289 = vunpack.c.l.b16 %v1266
        %v1290 = vunpack.c.l.b16 %v1267
        %v1291 = vunpack.c.l.b16 %v1268
        %v1292 = vunpack.c.l.b16 %v1269
        %v1293 = vpack.c.b16 %v1286, %v1285
        %v1294 = vpack.c.b16 %v1288, %v1287
        %v1295 = vpack.c.b16 %v1290, %v1289
        %v1296 = vpack.c.b16 %v1292, %v1291
        %vm1301 = vcmask 523264
        %v1303 = vsel %vm1301, %v1261, 0
        %1305 = vmatprep.subr.bf16.mxu0 0
        %1306 = vmatpush1.bf16.msra.mxu0 %v1293
        %1307 = vmatprep.subr.bf16.mxu0 0
        %1308 = vmatpush1.bf16.msra.mxu0 %v1294
        %1309 = vmatprep.subr.bf16.mxu0 0
        %1310 = vmatpush1.bf16.msra.mxu0 %v1295
        %1311 = vmatprep.subr.bf16.mxu0 0
        %1312 = vmatpush1.bf16.msra.mxu0 %v1296
        %1313 = vmatprep.subr.bf16.mxu0 0
        %1314 = vmatpush1.bf16.msra.mxu0 0
        %1315 = vmatprep.subr.bf16.mxu0 0
        %1316 = vmatpush1.bf16.msra.mxu0 0
        %1317 = vmatprep.subr.bf16.mxu0 0
        %1318 = vmatpush1.bf16.msra.mxu0 0
        %1319 = vmatprep.subr.bf16.mxu0 0
        %1320 = vmatpush1.bf16.msra.mxu0 0
        %1321 = vmatprep.subr.bf16.mxu0 0
        %1322 = vmatpush1.bf16.msra.mxu0 0
        %1323 = vmatprep.subr.bf16.mxu0 0
        %1324 = vmatpush1.bf16.msra.mxu0 0
        %1325 = vmatprep.subr.bf16.mxu0 0
        %1326 = vmatpush1.bf16.msra.mxu0 0
        %1327 = vmatprep.subr.bf16.mxu0 0
        %1328 = vmatpush1.bf16.msra.mxu0 0
        %1329 = vmatprep.subr.bf16.mxu0 0
        %1330 = vmatpush1.bf16.msra.mxu0 0
        %1331 = vmatprep.subr.bf16.mxu0 0
        %1332 = vmatpush1.bf16.msra.mxu0 0
        %1333 = vmatprep.subr.bf16.mxu0 0
        %1334 = vmatpush1.bf16.msra.mxu0 0
        %1335 = vmatprep.subr.bf16.mxu0 0
        %1336 = vmatpush1.bf16.msra.mxu0 0
        %1337 = vmatprep.mubr.bf16.mxu0 0
        %1338 = vmatmul.mubr.bf16.gmra.mrb[0].mxu0 %v1303
        %v1339 = vpop.f32.mrb[0].mxu0
        %v1340 = vadd.f32 %v1275, %v1339
        %v1341 = vpop.f32.mrb[0].mxu0
        %v1342 = vpop.f32.mrb[0].mxu0
        %v1343 = vpop.f32.mrb[0].mxu0
        %1344 = vdwg.mxu0
        %v1345 = vadd.f32 %v1135, %v1340
        %1346 = vst.msk [vmem:[%s482] sm:$0xff] %vm491, %v1345
        %s1347 = sand.u32 %s316, 1
        %s1348 = scalar_lea.sflag [#allocation4], %s1347
        %s1349 = sand.u32 %s316, 1
        %s1350 = smul.addr %s1349, 8
        %s1351 = scalar_lea.vmem [#allocation10], %s1350
        // Predicated region
        $region89: #{tpu_custom_call.1} parent=71 // pred_check
          %p1352 = pneg %p326
        $region90: #{tpu_custom_call.1} parent=71 // pred_check_branch
          %1354 = sbr.rel (%p1352) target = $region92
        $region91: #{tpu_custom_call.1} parent=71 // pred_region
          %s1356 = ssub.s32 128, 128
          %1357 = vsyncadd %s1348, %s1356
          %s1358 = smul.addr %s30, 128
          %s1359 = scalar_lea.hbm %s13, %s1358
          %s1361 = sshll.u32 %s1351, 4
          %s1362 = int_to_ptr.vmem [resolvable:$true] %s1361
          %1364 = dma.vmem_to_hbm [thread:$0]  %s1362, 128, %s1359, %s1348
        $region92: #{tpu_custom_call.1} parent=71 // pred_fallthru
          _
      $region72: #{tpu_custom_call.1} parent=5 // pred_fallthru
        _
      %p1365 = scmp.le.s32.totalorder 2, %s25
      // Predicated region
      $region93: #{tpu_custom_call.1} parent=5 // pred_check
        %p1366 = pneg %p1365
      $region94: #{tpu_custom_call.1} parent=5 // pred_check_branch
        %1368 = sbr.rel (%p1366) target = $region96
      $region95: #{tpu_custom_call.1} parent=5 // pred_region
        %s1369 = ssub.s32 %s25, 2
        // Predicated region
        $region97: #{tpu_custom_call.1} parent=95 // pred_check
          %p1370 = pneg %p332
        $region98: #{tpu_custom_call.1} parent=95 // pred_check_branch
          %1372 = sbr.rel (%p1370) target = $region100
        $region99: #{tpu_custom_call.1} parent=95 // pred_region
          %s1373 = sand.u32 %s317, 1
          %s1374 = scalar_lea.sflag [#allocation4], %s1373
          %s1375 = sand.u32 %s317, 1
          %s1376 = smul.addr %s1375, 8
          %s1377 = scalar_lea.vmem [#allocation10], %s1376
          %1378 = dma.done %s1374, 128
        $region100: #{tpu_custom_call.1} parent=95 // pred_fallthru
          _
      $region96: #{tpu_custom_call.1} parent=5 // pred_fallthru
        _
    $region6: #{tpu_custom_call.1} parent=1 // loop_footer
      %s29 = sadd.s32 1, %s25
    $region7: #{tpu_custom_call.1} parent=1 // loop_footer_branch
      %24 = sbr.rel target = $region3
    $region8: #{tpu_custom_call.1} parent=1 // loop_exit
      _
    %1379 = vsyncpa [#allocation3], 1
    %s1380 = scalar_lea.sflag [#allocation3], 1
    %1381 = vsyncpa %s1380, 1
    %1382 = vsyncpa [#allocation6], 1
    %1383 = vsyncpa [#allocation9], 1
    %1384 = vsyncpa [#allocation4], 1
    %s1385 = scalar_lea.sflag [#allocation4], 1
    %1386 = vsyncpa %s1385, 1

</llo_original>
